<compile_context>
chip_gen: v6e
topology: v6e:2x2x1
jax: 0.10.0
libtpu: 0.0.40
codegen_flags: <defaults>
</compile_context>

<pallas_src>
import functools

import jax
import jax.numpy as jnp
import numpy as np
from jax.experimental import pallas as pl
from jax.experimental.pallas import tpu as pltpu


def _swish(x):
    return x * jax.nn.sigmoid(x)


def _round_up(x, m):
    return ((x + m - 1) // m) * m


def _device_kind():
    try:
        return jax.devices()[0].device_kind.lower()
    except Exception:
        return ""


def _auto_act_dtype(compute_dtype, kind):
    # bf16 VPU/EUP exists on v6e/v7x; v5e (and older) do swish in f32.
    if np.dtype(compute_dtype) == np.dtype(jnp.bfloat16) and ("v6" in kind or "v7" in kind):
        return jnp.bfloat16
    return jnp.float32


def _default_tm(kind):
    if "v7" in kind:
        return 256           # 64 MiB physical VMEM; keep tiles modest
    if "v5" in kind or "v6" in kind:
        return 512           # 128 MiB VMEM; amortize per-step overhead
    return 256


# ----------------------------- Pallas kernel --------------------------------

def pointconv_kernel(x_ref, v_ref, m_ref, w1_ref, b1_ref, w2_ref, b2_ref,
                     w3_ref, b3_ref, wl_ref, bl_ref, o_ref, *,
                     K, tm, ci_chunk, act_dtype):
    # x_ref : (d,  P)  deltas,  P = tm*K, lanes neighbor-major (p = n*tm + t)
    # v_ref : (ci, P)  neighborhood values
    # m_ref : (1,  P)  {0,1} mask
    # w*_ref: pre-transposed weights (out_f, in_f); b*_ref: (out_f, 1) f32
    # wl_ref: (ci*chout, cm)  final Linear, rearranged in the wrapper
    # bl_ref: (chout, 1) f32
    # o_ref : (chout, tm)  lane-dense output tile
    f32 = jnp.float32
    chout = o_ref.shape[0]
    ci = v_ref.shape[0]

    x = x_ref[...]                            # (d, P)  compute dtype
    msk = m_ref[...]                          # (1, P)  {0,1}
    v = v_ref[...] * msk                      # single mask multiply (binary mask)
    cdt = x.dtype

    def dense(w_ref, b_ref, h):
        # skinny MXU matmul, f32 accumulation; bias already shaped (out_f, 1)
        return jnp.dot(w_ref[...], h, preferred_element_type=f32) + b_ref[...]

    def act(z):
        # swish on EUP/VPU; bf16 on v6e/v7x, f32 on v5e (act_dtype chosen in wrapper)
        return _swish(z.astype(act_dtype)).astype(cdt)

    # WeightNet MLP: xyz_dim -> 32 -> 32 -> cm, fully lane-dense vregs.
    h = act(dense(w1_ref, b1_ref, x))         # (32, P)
    h = act(dense(w2_ref, b2_ref, h))         # (32, P)
    kw = act(dense(w3_ref, b3_ref, h))        # (cm, P)

    # Final Linear applied per (query, neighbor) point BEFORE the neighbor sum,
    # chunked over input channels so intermediates stay bounded at large ci:
    #   mm[(c,o), p] = sum_k wl[(c,o), k] * kw[k, p]      (MXU, N = P)
    #   y[o, p]     += v[c, p] * mm[(c,o), p]             (VPU broadcasts)
    y = None
    for c0 in range(0, ci, ci_chunk):
        c1 = min(c0 + ci_chunk, ci)
        nc = c1 - c0
        mm = jnp.dot(wl_ref[c0 * chout:c1 * chout, :], kw,
                     preferred_element_type=f32)          # (nc*chout, P) f32
        vc = v[c0:c1, :].astype(f32)                      # (nc, P)
        part = None
        for cc in range(nc):
            term = vc[cc:cc + 1, :] * mm[cc * chout:(cc + 1) * chout, :]
            part = term if part is None else part + term
        y = part if y is None else y + part               # (chout, P) f32

    # Neighbor reduction: lanes are neighbor-major within the tile, so this is
    # K-1 full-lane, 128-aligned VPU adds of (chout, tm) slabs (no transposes).
    out = y[:, 0:tm]
    for n in range(1, K):
        out = out + y[:, n * tm:(n + 1) * tm]

    o_ref[...] = out + bl_ref[...]            # (chout, tm) + (chout, 1)


# ----------------------------- Wrapper ---------------------------------------

def point_convolve_pallas(deltas, nbhd_vals, nbhd_mask, params, *,
                          compute_dtype=jnp.float32, tm=None, ci_chunk=8):
    """deltas (bs,m,K,d), nbhd_vals (bs,m,K,ci), nbhd_mask (bs,m,K) -> (bs,m,chout)."""
    bs, m, K, d = deltas.shape
    ci = nbhd_vals.shape[-1]
    cm = params['w3'].shape[-1]              # cmco_ci (=16)
    chout = params['bl'].shape[-1]
    BM = bs * m

    kind = _device_kind()
    if tm is None:
        tm = _default_tm(kind)
    assert tm % 128 == 0

    tm_eff = min(tm, _round_up(BM, 128))
    if "v7" in kind and BM > 128:
        # keep the grid >= 2 steps so both v7x TensorCores get work
        while tm_eff > 128 and -(-BM // tm_eff) < 2:
            tm_eff -= 128
    BM_pad = _round_up(BM, tm_eff)
    G = BM_pad // tm_eff
    P_blk = tm_eff * K

    cd = compute_dtype
    f32 = jnp.float32
    act_dtype = _auto_act_dtype(cd, kind)

    # Per-field lane-dense slab: (nf, G*K*tm), column = g*(K*tm) + n*tm + t
    # (neighbor-major within each query tile).
    def to_slab(a, nf):                       # a: (bs, m, K, nf)
        a = a.reshape(BM, K, nf)
        if BM_pad != BM:
            a = jnp.concatenate(
                [a, jnp.zeros((BM_pad - BM, K, nf), a.dtype)], axis=0)
        a = a.reshape(G, tm_eff, K, nf).transpose(3, 0, 2, 1)   # (nf, G, K, tm)
        return a.reshape(nf, G * K * tm_eff).astype(cd)

    x_slab = to_slab(deltas, d)                               # (d,  G*P)
    v_slab = to_slab(nbhd_vals, ci)                           # (ci, G*P)
    m_slab = to_slab(nbhd_mask[..., None], 1)                 # (1,  G*P)

    # Pre-transposed / pre-shaped weights (no per-step broadcasts in-kernel).
    w1t = params['w1'].T.astype(cd)          # (32, d)
    w2t = params['w2'].T.astype(cd)          # (32, 32)
    w3t = params['w3'].T.astype(cd)          # (cm, 32)
    # torch's Linear(cm*chin, chout) sees `partial` flattened as column c*cm + k;
    # params['wl'] is that Linear's weight.T, i.e. (ci*cm, chout).  Rearranged to
    # (ci*chout, cm) so the kernel applies it as MXU matmuls against kw (cm, P).
    wlt = (params['wl'].reshape(ci, cm, chout)
           .transpose(0, 2, 1).reshape(ci * chout, cm).astype(cd))
    b1 = params['b1'].reshape(-1, 1).astype(f32)     # (32, 1)
    b2 = params['b2'].reshape(-1, 1).astype(f32)
    b3 = params['b3'].reshape(-1, 1).astype(f32)
    bl = params['bl'].reshape(-1, 1).astype(f32)     # (chout, 1)

    const = lambda a: pl.BlockSpec(a.shape, lambda i: (0, 0))
    kernel = functools.partial(pointconv_kernel, K=K, tm=tm_eff,
                               ci_chunk=ci_chunk, act_dtype=act_dtype)

    cp_kwargs = dict(dimension_semantics=("parallel",))
    if "v7" in kind:
        cp_kwargs["vmem_limit_bytes"] = 48 * 1024 * 1024   # 64 MiB physical
    elif "v5" in kind or "v6" in kind:
        cp_kwargs["vmem_limit_bytes"] = 96 * 1024 * 1024   # 128 MiB physical

    outT = pl.pallas_call(
        kernel,
        out_shape=jax.ShapeDtypeStruct((chout, BM_pad), jnp.float32),
        grid=(G,),
        in_specs=[
            pl.BlockSpec((d, P_blk), lambda i: (0, i)),
            pl.BlockSpec((ci, P_blk), lambda i: (0, i)),
            pl.BlockSpec((1, P_blk), lambda i: (0, i)),
            const(w1t), const(b1), const(w2t), const(b2),
            const(w3t), const(b3), const(wlt), const(bl),
        ],
        out_specs=pl.BlockSpec((chout, tm_eff), lambda i: (0, i)),
        compiler_params=pltpu.CompilerParams(**cp_kwargs),
    )(x_slab, v_slab, m_slab, w1t, b1, w2t, b2, w3t, b3, wlt, bl)

    return outT[:, :BM].T.reshape(bs, m, chout)


# ----------------------------- JAX glue (kNN etc.) --------------------------

def knn_point(nbhd, inp_xyz, query_xyz, mask):
    d2 = jnp.sum((query_xyz[:, :, None, :] - inp_xyz[:, None, :, :]) ** 2, axis=-1)
    d2 = jnp.where(mask[:, None, :], d2, 1e8)
    _, idx = jax.lax.top_k(-d2, nbhd)  # NOTE: tie-breaking may differ from torch.topk
    return idx                          # (bs, m, nbhd)


def index_points(points, idx):
    bs = points.shape[0]
    b_idx = jnp.arange(bs)[:, None, None]
    return points[b_idx, idx]


def pointconv_forward(xyz, vals, mask, params, nbhd=32, knn_channels=None,
                      compute_dtype=jnp.float32, tm=None):
    # FarthestSubsample(ds_frac=1) is the identity.
    query_xyz, sub_vals, sub_mask = xyz, vals, mask
    n = xyz.shape[1]
    k = min(nbhd, n)
    # TODO(synk): kNN top_k + neighborhood gather are data-dependent gathers
    # kept in plain JAX (no clean rectangular-BlockSpec Pallas equivalent).
    idx = knn_point(k, xyz[:, :, :knn_channels], query_xyz[:, :, :knn_channels], mask)
    nbhd_xyz = index_points(xyz, idx)
    nbhd_vals = index_points(vals, idx)
    nbhd_mask = index_points(mask, idx)
    deltas = query_xyz[:, :, None, :] - nbhd_xyz
    conv = point_convolve_pallas(deltas, nbhd_vals, nbhd_mask, params,
                                 compute_dtype=compute_dtype, tm=tm)
    conv = conv * sub_mask[..., None].astype(conv.dtype)   # torch.where in forward
    return query_xyz, conv, sub_mask


# pure-JAX reference of the convolve step (mirrors the kernel's dtype choices)
def point_convolve_ref(deltas, nbhd_vals, nbhd_mask, params,
                       compute_dtype=jnp.float32, act_dtype=jnp.float32):
    cd = compute_dtype
    f32 = jnp.float32

    def lin(x, w, b):
        return jnp.einsum('...i,io->...o', x.astype(cd), w.astype(cd),
                          preferred_element_type=f32) + b.astype(f32)

    def act(z):
        return _swish(z.astype(act_dtype)).astype(cd)

    h = act(lin(deltas.astype(f32), params['w1'], params['b1']))
    h = act(lin(h, params['w2'], params['b2']))
    kw = act(lin(h, params['w3'], params['b3']))
    m3 = nbhd_mask[..., None].astype(cd)
    kw_m = kw * m3
    vals_m = nbhd_vals.astype(cd) * m3
    partial = jnp.einsum('bmnc,bmnk->bmck', vals_m, kw_m,
                         preferred_element_type=f32)
    bs, mm = partial.shape[:2]
    partial = partial.reshape(bs, mm, -1)
    out = jnp.einsum('bmf,fo->bmo', partial, params['wl'].astype(cd),
                     preferred_element_type=f32) + params['bl'].astype(f32)
    return out


# ----------------------------- Parameter init -------------------------------

def init_params(key, chin, chout, xyz_dim=3, cmco_ci=16, k=32):
    ks = jax.random.split(key, 8)
    s = 0.1
    return {
        'w1': s * jax.random.normal(ks[0], (xyz_dim, k), jnp.float32),
        'b1': s * jax.random.normal(ks[1], (1, k), jnp.float32),
        'w2': s * jax.random.normal(ks[2], (k, k), jnp.float32),
        'b2': s * jax.random.normal(ks[3], (1, k), jnp.float32),
        'w3': s * jax.random.normal(ks[4], (k, cmco_ci), jnp.float32),
        'b3': s * jax.random.normal(ks[5], (1, cmco_ci), jnp.float32),
        # (cmco_ci*chin, chout), row index = c*cmco_ci + k  (== torch Linear weight.T)
        'wl': s * jax.random.normal(ks[6], (cmco_ci * chin, chout), jnp.float32),
        'bl': s * jax.random.normal(ks[7], (1, chout), jnp.float32),
    }


# ----------------------------- Main ------------------------------------------

if __name__ == "__main__":
    bs, n, xyz_dim = 2, 16, 3
    chin, chout = 4, 8

    key = jax.random.PRNGKey(0)
    kx, kv, km, kp = jax.random.split(key, 4)
    xyz = jax.random.normal(kx, (bs, n, xyz_dim), jnp.float32)
    vals = jax.random.normal(kv, (bs, n, chin), jnp.float32)
    mask = jax.random.uniform(km, (bs, n)) > 0.2

    params = init_params(kp, chin, chout, xyz_dim=xyz_dim)

    # reference neighborhood (same glue the forward uses)
    k = min(32, n)
    idx = knn_point(k, xyz, xyz, mask)
    nbhd_xyz = index_points(xyz, idx)
    nbhd_vals = index_points(vals, idx)
    nbhd_mask = index_points(mask, idx)
    deltas = xyz[:, :, None, :] - nbhd_xyz

    kind = _device_kind()

    # ---- f32 run (tight correctness check) ----
    q_xyz, conv, out_mask = pointconv_forward(xyz, vals, mask, params, nbhd=32,
                                              compute_dtype=jnp.float32)
    conv = jax.block_until_ready(conv)
    ref = point_convolve_ref(deltas, nbhd_vals, nbhd_mask, params,
                             compute_dtype=jnp.float32, act_dtype=jnp.float32)
    ref = ref * mask[..., None].astype(jnp.float32)
    assert conv.shape == (bs, n, chout)
    np.testing.assert_allclose(np.asarray(conv), np.asarray(ref),
                               rtol=1e-4, atol=1e-4)

    # ---- bf16-operand run (half HBM traffic, bf16 MXU; bf16 swish on v6e/v7x) ----
    _, conv_bf, _ = pointconv_forward(xyz, vals, mask, params, nbhd=32,
                                      compute_dtype=jnp.bfloat16)
    conv_bf = jax.block_until_ready(conv_bf)
    act_dt = _auto_act_dtype(jnp.bfloat16, kind)
    ref_bf = point_convolve_ref(deltas, nbhd_vals, nbhd_mask, params,
                                compute_dtype=jnp.bfloat16, act_dtype=act_dt)
    ref_bf = ref_bf * mask[..., None].astype(jnp.float32)
    np.testing.assert_allclose(np.asarray(conv_bf), np.asarray(ref_bf),
                               rtol=2e-2, atol=2e-2)

    print("KERNEL_OK")
</pallas_src>

<mosaic_0001>
module attributes {stable_mosaic.version = 11 : i64} {
  func.func @pointconv_kernel(%arg0: i32, %arg1: memref<3x2048xf32, #tpu.memory_space<vmem>>, %arg2: memref<4x2048xf32, #tpu.memory_space<vmem>>, %arg3: memref<1x2048xf32, #tpu.memory_space<vmem>>, %arg4: memref<32x3xf32, #tpu.memory_space<vmem>>, %arg5: memref<32x1xf32, #tpu.memory_space<vmem>>, %arg6: memref<32x32xf32, #tpu.memory_space<vmem>>, %arg7: memref<32x1xf32, #tpu.memory_space<vmem>>, %arg8: memref<16x32xf32, #tpu.memory_space<vmem>>, %arg9: memref<16x1xf32, #tpu.memory_space<vmem>>, %arg10: memref<32x16xf32, #tpu.memory_space<vmem>>, %arg11: memref<8x1xf32, #tpu.memory_space<vmem>>, %arg12: memref<8x128xf32, #tpu.memory_space<vmem>>) attributes {dimension_semantics = [#tpu.dimension_semantics<parallel>], iteration_bounds = array<i64: 1>, scalar_prefetch = 0 : i64, scratch_operands = 0 : i64, tpu.core_type = #tpu.core_type<tc>, window_params = [{transform_indices = @transform_0, window_bounds = array<i64: 3, 2048>}, {transform_indices = @transform_1, window_bounds = array<i64: 4, 2048>}, {transform_indices = @transform_2, window_bounds = array<i64: 1, 2048>}, {pipeline_mode = #tpu.pipeline_mode<synchronous>, transform_indices = @transform_3, window_bounds = array<i64: 32, 3>}, {pipeline_mode = #tpu.pipeline_mode<synchronous>, transform_indices = @transform_4, window_bounds = array<i64: 32, 1>}, {pipeline_mode = #tpu.pipeline_mode<synchronous>, transform_indices = @transform_5, window_bounds = array<i64: 32, 32>}, {pipeline_mode = #tpu.pipeline_mode<synchronous>, transform_indices = @transform_6, window_bounds = array<i64: 32, 1>}, {pipeline_mode = #tpu.pipeline_mode<synchronous>, transform_indices = @transform_7, window_bounds = array<i64: 16, 32>}, {pipeline_mode = #tpu.pipeline_mode<synchronous>, transform_indices = @transform_8, window_bounds = array<i64: 16, 1>}, {pipeline_mode = #tpu.pipeline_mode<synchronous>, transform_indices = @transform_9, window_bounds = array<i64: 32, 16>}, {pipeline_mode = #tpu.pipeline_mode<synchronous>, transform_indices = @transform_10, window_bounds = array<i64: 8, 1>}, {transform_indices = @transform_11, window_bounds = array<i64: 8, 128>}]} {
    %c0 = arith.constant 0 : index
    %c0_0 = arith.constant 0 : index
    %0 = vector.load %arg1[%c0, %c0_0] : memref<3x2048xf32, #tpu.memory_space<vmem>>, vector<3x2048xf32>
    %c0_1 = arith.constant 0 : index
    %c0_2 = arith.constant 0 : index
    %1 = vector.load %arg3[%c0_1, %c0_2] : memref<1x2048xf32, #tpu.memory_space<vmem>>, vector<1x2048xf32>
    %c0_3 = arith.constant 0 : index
    %c0_4 = arith.constant 0 : index
    %2 = vector.load %arg2[%c0_3, %c0_4] : memref<4x2048xf32, #tpu.memory_space<vmem>>, vector<4x2048xf32>
    %3 = vector.broadcast %1 : vector<1x2048xf32> to vector<4x2048xf32>
    %4 = arith.mulf %2, %3 : vector<4x2048xf32>
    %c0_5 = arith.constant 0 : index
    %c0_6 = arith.constant 0 : index
    %5 = vector.load %arg4[%c0_5, %c0_6] : memref<32x3xf32, #tpu.memory_space<vmem>>, vector<32x3xf32>
    %cst = arith.constant dense<0.000000e+00> : vector<32x2048xf32>
    %6 = tpu.matmul %5, %0, %cst {dimension_numbers = #tpu.dot_dimension_numbers<[1], [0], [0], [1], [0, 0, 1, 1], [], []>} : vector<32x3xf32>, vector<3x2048xf32>, vector<32x2048xf32> -> vector<32x2048xf32>
    %c0_7 = arith.constant 0 : index
    %c0_8 = arith.constant 0 : index
    %7 = vector.load %arg5[%c0_7, %c0_8] : memref<32x1xf32, #tpu.memory_space<vmem>>, vector<32x1xf32>
    %8 = vector.broadcast %7 : vector<32x1xf32> to vector<32x2048xf32>
    %9 = arith.addf %6, %8 : vector<32x2048xf32>
    %10 = arith.negf %9 : vector<32x2048xf32>
    %11 = math.exp %10 : vector<32x2048xf32>
    %cst_9 = arith.constant 1.000000e+00 : f32
    %12 = vector.broadcast %cst_9 : f32 to vector<32x2048xf32>
    %13 = arith.addf %12, %11 : vector<32x2048xf32>
    %14 = arith.divf %12, %13 : vector<32x2048xf32>
    %15 = arith.mulf %9, %14 : vector<32x2048xf32>
    %c0_10 = arith.constant 0 : index
    %c0_11 = arith.constant 0 : index
    %16 = vector.load %arg6[%c0_10, %c0_11] : memref<32x32xf32, #tpu.memory_space<vmem>>, vector<32x32xf32>
    %cst_12 = arith.constant dense<0.000000e+00> : vector<32x2048xf32>
    %17 = tpu.matmul %16, %15, %cst_12 {dimension_numbers = #tpu.dot_dimension_numbers<[1], [0], [0], [1], [0, 0, 1, 1], [], []>} : vector<32x32xf32>, vector<32x2048xf32>, vector<32x2048xf32> -> vector<32x2048xf32>
    %c0_13 = arith.constant 0 : index
    %c0_14 = arith.constant 0 : index
    %18 = vector.load %arg7[%c0_13, %c0_14] : memref<32x1xf32, #tpu.memory_space<vmem>>, vector<32x1xf32>
    %19 = vector.broadcast %18 : vector<32x1xf32> to vector<32x2048xf32>
    %20 = arith.addf %17, %19 : vector<32x2048xf32>
    %21 = arith.negf %20 : vector<32x2048xf32>
    %22 = math.exp %21 : vector<32x2048xf32>
    %cst_15 = arith.constant 1.000000e+00 : f32
    %23 = vector.broadcast %cst_15 : f32 to vector<32x2048xf32>
    %24 = arith.addf %23, %22 : vector<32x2048xf32>
    %25 = arith.divf %23, %24 : vector<32x2048xf32>
    %26 = arith.mulf %20, %25 : vector<32x2048xf32>
    %c0_16 = arith.constant 0 : index
    %c0_17 = arith.constant 0 : index
    %27 = vector.load %arg8[%c0_16, %c0_17] : memref<16x32xf32, #tpu.memory_space<vmem>>, vector<16x32xf32>
    %cst_18 = arith.constant dense<0.000000e+00> : vector<16x2048xf32>
    %28 = tpu.matmul %27, %26, %cst_18 {dimension_numbers = #tpu.dot_dimension_numbers<[1], [0], [0], [1], [0, 0, 1, 1], [], []>} : vector<16x32xf32>, vector<32x2048xf32>, vector<16x2048xf32> -> vector<16x2048xf32>
    %c0_19 = arith.constant 0 : index
    %c0_20 = arith.constant 0 : index
    %29 = vector.load %arg9[%c0_19, %c0_20] : memref<16x1xf32, #tpu.memory_space<vmem>>, vector<16x1xf32>
    %30 = vector.broadcast %29 : vector<16x1xf32> to vector<16x2048xf32>
    %31 = arith.addf %28, %30 : vector<16x2048xf32>
    %32 = arith.negf %31 : vector<16x2048xf32>
    %33 = math.exp %32 : vector<16x2048xf32>
    %cst_21 = arith.constant 1.000000e+00 : f32
    %34 = vector.broadcast %cst_21 : f32 to vector<16x2048xf32>
    %35 = arith.addf %34, %33 : vector<16x2048xf32>
    %36 = arith.divf %34, %35 : vector<16x2048xf32>
    %37 = arith.mulf %31, %36 : vector<16x2048xf32>
    %c0_22 = arith.constant 0 : index
    %c0_23 = arith.constant 0 : index
    %38 = vector.load %arg10[%c0_22, %c0_23] : memref<32x16xf32, #tpu.memory_space<vmem>>, vector<32x16xf32>
    %cst_24 = arith.constant dense<0.000000e+00> : vector<32x2048xf32>
    %39 = tpu.matmul %38, %37, %cst_24 {dimension_numbers = #tpu.dot_dimension_numbers<[1], [0], [0], [1], [0, 0, 1, 1], [], []>} : vector<32x16xf32>, vector<16x2048xf32>, vector<32x2048xf32> -> vector<32x2048xf32>
    %40 = vector.extract_strided_slice %4 {offsets = [0, 0], sizes = [1, 2048], strides = [1, 1]} : vector<4x2048xf32> to vector<1x2048xf32>
    %41 = vector.extract_strided_slice %39 {offsets = [0, 0], sizes = [8, 2048], strides = [1, 1]} : vector<32x2048xf32> to vector<8x2048xf32>
    %42 = vector.broadcast %40 : vector<1x2048xf32> to vector<8x2048xf32>
    %43 = arith.mulf %42, %41 : vector<8x2048xf32>
    %44 = vector.extract_strided_slice %4 {offsets = [1, 0], sizes = [1, 2048], strides = [1, 1]} : vector<4x2048xf32> to vector<1x2048xf32>
    %45 = vector.extract_strided_slice %39 {offsets = [8, 0], sizes = [8, 2048], strides = [1, 1]} : vector<32x2048xf32> to vector<8x2048xf32>
    %46 = vector.broadcast %44 : vector<1x2048xf32> to vector<8x2048xf32>
    %47 = arith.mulf %46, %45 : vector<8x2048xf32>
    %48 = arith.addf %43, %47 : vector<8x2048xf32>
    %49 = vector.extract_strided_slice %4 {offsets = [2, 0], sizes = [1, 2048], strides = [1, 1]} : vector<4x2048xf32> to vector<1x2048xf32>
    %50 = vector.extract_strided_slice %39 {offsets = [16, 0], sizes = [8, 2048], strides = [1, 1]} : vector<32x2048xf32> to vector<8x2048xf32>
    %51 = vector.broadcast %49 : vector<1x2048xf32> to vector<8x2048xf32>
    %52 = arith.mulf %51, %50 : vector<8x2048xf32>
    %53 = arith.addf %48, %52 : vector<8x2048xf32>
    %54 = vector.extract_strided_slice %4 {offsets = [3, 0], sizes = [1, 2048], strides = [1, 1]} : vector<4x2048xf32> to vector<1x2048xf32>
    %55 = vector.extract_strided_slice %39 {offsets = [24, 0], sizes = [8, 2048], strides = [1, 1]} : vector<32x2048xf32> to vector<8x2048xf32>
    %56 = vector.broadcast %54 : vector<1x2048xf32> to vector<8x2048xf32>
    %57 = arith.mulf %56, %55 : vector<8x2048xf32>
    %58 = arith.addf %53, %57 : vector<8x2048xf32>
    %59 = vector.extract_strided_slice %58 {offsets = [0, 0], sizes = [8, 128], strides = [1, 1]} : vector<8x2048xf32> to vector<8x128xf32>
    %60 = vector.extract_strided_slice %58 {offsets = [0, 128], sizes = [8, 128], strides = [1, 1]} : vector<8x2048xf32> to vector<8x128xf32>
    %61 = arith.addf %59, %60 : vector<8x128xf32>
    %62 = vector.extract_strided_slice %58 {offsets = [0, 256], sizes = [8, 128], strides = [1, 1]} : vector<8x2048xf32> to vector<8x128xf32>
    %63 = arith.addf %61, %62 : vector<8x128xf32>
    %64 = vector.extract_strided_slice %58 {offsets = [0, 384], sizes = [8, 128], strides = [1, 1]} : vector<8x2048xf32> to vector<8x128xf32>
    %65 = arith.addf %63, %64 : vector<8x128xf32>
    %66 = vector.extract_strided_slice %58 {offsets = [0, 512], sizes = [8, 128], strides = [1, 1]} : vector<8x2048xf32> to vector<8x128xf32>
    %67 = arith.addf %65, %66 : vector<8x128xf32>
    %68 = vector.extract_strided_slice %58 {offsets = [0, 640], sizes = [8, 128], strides = [1, 1]} : vector<8x2048xf32> to vector<8x128xf32>
    %69 = arith.addf %67, %68 : vector<8x128xf32>
    %70 = vector.extract_strided_slice %58 {offsets = [0, 768], sizes = [8, 128], strides = [1, 1]} : vector<8x2048xf32> to vector<8x128xf32>
    %71 = arith.addf %69, %70 : vector<8x128xf32>
    %72 = vector.extract_strided_slice %58 {offsets = [0, 896], sizes = [8, 128], strides = [1, 1]} : vector<8x2048xf32> to vector<8x128xf32>
    %73 = arith.addf %71, %72 : vector<8x128xf32>
    %74 = vector.extract_strided_slice %58 {offsets = [0, 1024], sizes = [8, 128], strides = [1, 1]} : vector<8x2048xf32> to vector<8x128xf32>
    %75 = arith.addf %73, %74 : vector<8x128xf32>
    %76 = vector.extract_strided_slice %58 {offsets = [0, 1152], sizes = [8, 128], strides = [1, 1]} : vector<8x2048xf32> to vector<8x128xf32>
    %77 = arith.addf %75, %76 : vector<8x128xf32>
    %78 = vector.extract_strided_slice %58 {offsets = [0, 1280], sizes = [8, 128], strides = [1, 1]} : vector<8x2048xf32> to vector<8x128xf32>
    %79 = arith.addf %77, %78 : vector<8x128xf32>
    %80 = vector.extract_strided_slice %58 {offsets = [0, 1408], sizes = [8, 128], strides = [1, 1]} : vector<8x2048xf32> to vector<8x128xf32>
    %81 = arith.addf %79, %80 : vector<8x128xf32>
    %82 = vector.extract_strided_slice %58 {offsets = [0, 1536], sizes = [8, 128], strides = [1, 1]} : vector<8x2048xf32> to vector<8x128xf32>
    %83 = arith.addf %81, %82 : vector<8x128xf32>
    %84 = vector.extract_strided_slice %58 {offsets = [0, 1664], sizes = [8, 128], strides = [1, 1]} : vector<8x2048xf32> to vector<8x128xf32>
    %85 = arith.addf %83, %84 : vector<8x128xf32>
    %86 = vector.extract_strided_slice %58 {offsets = [0, 1792], sizes = [8, 128], strides = [1, 1]} : vector<8x2048xf32> to vector<8x128xf32>
    %87 = arith.addf %85, %86 : vector<8x128xf32>
    %88 = vector.extract_strided_slice %58 {offsets = [0, 1920], sizes = [8, 128], strides = [1, 1]} : vector<8x2048xf32> to vector<8x128xf32>
    %89 = arith.addf %87, %88 : vector<8x128xf32>
    %c0_25 = arith.constant 0 : index
    %c0_26 = arith.constant 0 : index
    %90 = vector.load %arg11[%c0_25, %c0_26] : memref<8x1xf32, #tpu.memory_space<vmem>>, vector<8x1xf32>
    %91 = vector.broadcast %90 : vector<8x1xf32> to vector<8x128xf32>
    %92 = arith.addf %89, %91 : vector<8x128xf32>
    %c0_27 = arith.constant 0 : index
    %c0_28 = arith.constant 0 : index
    %93 = vector.load %arg12[%c0_27, %c0_28] : memref<8x128xf32, #tpu.memory_space<vmem>>, vector<8x128xf32>
    tpu.vector_store %arg12[%c0_27, %c0_28], %92 {strides = array<i32>} : memref<8x128xf32, #tpu.memory_space<vmem>>, vector<8x128xf32>,
    return
  }
  func.func @transform_0(%arg0: i32) -> (i32, i32) {
    %c0_i32 = arith.constant 0 : i32
    %c0_i32_0 = arith.constant 0 : i32
    return %c0_i32, %arg0 : i32, i32
  }
  func.func @transform_1(%arg0: i32) -> (i32, i32) {
    %c0_i32 = arith.constant 0 : i32
    %c0_i32_0 = arith.constant 0 : i32
    return %c0_i32, %arg0 : i32, i32
  }
  func.func @transform_2(%arg0: i32) -> (i32, i32) {
    %c0_i32 = arith.constant 0 : i32
    %c0_i32_0 = arith.constant 0 : i32
    return %c0_i32, %arg0 : i32, i32
  }
  func.func @transform_3(%arg0: i32) -> (i32, i32) {
    %c0_i32 = arith.constant 0 : i32
    %c0_i32_0 = arith.constant 0 : i32
    %c0_i32_1 = arith.constant 0 : i32
    return %c0_i32, %c0_i32_0 : i32, i32
  }
  func.func @transform_4(%arg0: i32) -> (i32, i32) {
    %c0_i32 = arith.constant 0 : i32
    %c0_i32_0 = arith.constant 0 : i32
    %c0_i32_1 = arith.constant 0 : i32
    return %c0_i32, %c0_i32_0 : i32, i32
  }
  func.func @transform_5(%arg0: i32) -> (i32, i32) {
    %c0_i32 = arith.constant 0 : i32
    %c0_i32_0 = arith.constant 0 : i32
    %c0_i32_1 = arith.constant 0 : i32
    return %c0_i32, %c0_i32_0 : i32, i32
  }
  func.func @transform_6(%arg0: i32) -> (i32, i32) {
    %c0_i32 = arith.constant 0 : i32
    %c0_i32_0 = arith.constant 0 : i32
    %c0_i32_1 = arith.constant 0 : i32
    return %c0_i32, %c0_i32_0 : i32, i32
  }
  func.func @transform_7(%arg0: i32) -> (i32, i32) {
    %c0_i32 = arith.constant 0 : i32
    %c0_i32_0 = arith.constant 0 : i32
    %c0_i32_1 = arith.constant 0 : i32
    return %c0_i32, %c0_i32_0 : i32, i32
  }
  func.func @transform_8(%arg0: i32) -> (i32, i32) {
    %c0_i32 = arith.constant 0 : i32
    %c0_i32_0 = arith.constant 0 : i32
    %c0_i32_1 = arith.constant 0 : i32
    return %c0_i32, %c0_i32_0 : i32, i32
  }
  func.func @transform_9(%arg0: i32) -> (i32, i32) {
    %c0_i32 = arith.constant 0 : i32
    %c0_i32_0 = arith.constant 0 : i32
    %c0_i32_1 = arith.constant 0 : i32
    return %c0_i32, %c0_i32_0 : i32, i32
  }
  func.func @transform_10(%arg0: i32) -> (i32, i32) {
    %c0_i32 = arith.constant 0 : i32
    %c0_i32_0 = arith.constant 0 : i32
    %c0_i32_1 = arith.constant 0 : i32
    return %c0_i32, %c0_i32_0 : i32, i32
  }
  func.func @transform_11(%arg0: i32) -> (i32, i32) {
    %c0_i32 = arith.constant 0 : i32
    %c0_i32_0 = arith.constant 0 : i32
    return %c0_i32, %arg0 : i32, i32
  }
}

</mosaic_0001>

<llo_original>
// kernel: tpu_custom_call.1
$region0: #{tpu_custom_call.1}
  #allocation0 [shape = 'u32[]', space=smem, size = 0x4, offset = 0x4, fixed_abs, tag = 'smem constant byte address 0x4 - core index']
  #allocation1 [shape = 'u32[144,128]{1,0:T(1,128)}', space=vmem, size = 0x12000, scoped, tag = 'internal scratch']
  %s0 = inlined_call_operand.vmem [shape: f32[3,2048], index: 0, kind: input, shape index: {}]
  %s1 = inlined_call_operand.vmem [shape: f32[4,2048], index: 1, kind: input, shape index: {}]
  %s2 = inlined_call_operand.hbm [shape: f32[1,2048], index: 2, kind: input, shape index: {}]
  %s3 = inlined_call_operand.vmem [shape: f32[32,3], index: 3, kind: input, shape index: {}]
  %s4 = inlined_call_operand.vmem [shape: f32[32,1], index: 4, kind: input, shape index: {}]
  %s5 = inlined_call_operand.vmem [shape: f32[32,32], index: 5, kind: input, shape index: {}]
  %s6 = inlined_call_operand.vmem [shape: f32[32,1], index: 6, kind: input, shape index: {}]
  %s7 = inlined_call_operand.hbm [shape: f32[16,32], index: 7, kind: input, shape index: {}]
  %s8 = inlined_call_operand.vmem [shape: f32[16,1], index: 8, kind: input, shape index: {}]
  %s9 = inlined_call_operand.vmem [shape: f32[32,16], index: 9, kind: input, shape index: {}]
  %s10 = inlined_call_operand.vmem [shape: f32[8,1], index: 10, kind: input, shape index: {}]
  %s11 = inlined_call_operand.hbm [shape: f32[8,128], index: 11, kind: output, shape index: {}]
  %s12 = sld [smem:[#allocation0]]
  $region62: #{tpu_custom_call.1} parent=0
    _
  %s14 = ssub.s32 1, %s12
  %s15 = scalar_select 0, %s14, %s12
  $region1: #{tpu_custom_call.1} parent=0
    #allocation2 [shape = 'u8[8192]{0}', space=vmem, size = 0x2000, scoped, tag = 'input window, operand 2, single buffered']
    #allocation3 [shape = 's32[1]{0}', space=sflag, size = 0x4, scoped, tag = 'scoped memory for tpu_custom_call.1']
    #allocation4 [shape = 's32[1]{0}', space=sflag, size = 0x4, scoped, tag = 'scoped memory for tpu_custom_call.1']
    #allocation5 [shape = 'u8[8192]{0}', space=vmem, size = 0x2000, scoped, tag = 'input window, operand 7, single buffered']
    #allocation6 [shape = 's32[1]{0}', space=sflag, size = 0x4, scoped, tag = 'scoped memory for tpu_custom_call.1']
    #allocation7 [shape = 'u8[4096]{0}', space=vmem, size = 0x1000, scoped, tag = 'output window, operand 0, single buffered']
    %16 = vsyncpa [#allocation3], 0
    %17 = vsyncpa [#allocation6], 0
    %18 = vsyncpa [#allocation4], 0
    // Predicated region
    $region2: #{tpu_custom_call.1} parent=1 // pred_check
      _
    $region3: #{tpu_custom_call.1} parent=1 // pred_check_branch
      %20 = sbr.rel (0) target = $region5
    $region4: #{tpu_custom_call.1} parent=1 // pred_region
      _
    $region5: #{tpu_custom_call.1} parent=1 // pred_fallthru
      _
    // Predicated region
    $region6: #{tpu_custom_call.1} parent=1 // pred_check
      _
    $region7: #{tpu_custom_call.1} parent=1 // pred_check_branch
      %22 = sbr.rel (0) target = $region9
    $region8: #{tpu_custom_call.1} parent=1 // pred_region
      _
    $region9: #{tpu_custom_call.1} parent=1 // pred_fallthru
      _
    // Predicated region
    $region10: #{tpu_custom_call.1} parent=1 // pred_check
      _
    $region11: #{tpu_custom_call.1} parent=1 // pred_check_branch
      %24 = sbr.rel (0) target = $region13
    $region12: #{tpu_custom_call.1} parent=1 // pred_region
      %s26 = ssub.s32 256, 256
      %27 = vsyncadd [#allocation3], %s26
      %s29 = sshll.u32 [#allocation2], 4
      %s30 = int_to_ptr.vmem [resolvable:$true] %s29
      %32 = dma.hbm_to_vmem [thread:$0]  %s2, 256, %s30, [#allocation3]
    $region13: #{tpu_custom_call.1} parent=1 // pred_fallthru
      _
    // Predicated region
    $region14: #{tpu_custom_call.1} parent=1 // pred_check
      _
    $region15: #{tpu_custom_call.1} parent=1 // pred_check_branch
      %34 = sbr.rel (0) target = $region17
    $region16: #{tpu_custom_call.1} parent=1 // pred_region
      _
    $region17: #{tpu_custom_call.1} parent=1 // pred_fallthru
      _
    // Predicated region
    $region18: #{tpu_custom_call.1} parent=1 // pred_check
      _
    $region19: #{tpu_custom_call.1} parent=1 // pred_check_branch
      %36 = sbr.rel (0) target = $region21
    $region20: #{tpu_custom_call.1} parent=1 // pred_region
      _
    $region21: #{tpu_custom_call.1} parent=1 // pred_fallthru
      _
    // Predicated region
    $region22: #{tpu_custom_call.1} parent=1 // pred_check
      _
    $region23: #{tpu_custom_call.1} parent=1 // pred_check_branch
      %38 = sbr.rel (0) target = $region25
    $region24: #{tpu_custom_call.1} parent=1 // pred_region
      _
    $region25: #{tpu_custom_call.1} parent=1 // pred_fallthru
      _
    // Predicated region
    $region26: #{tpu_custom_call.1} parent=1 // pred_check
      _
    $region27: #{tpu_custom_call.1} parent=1 // pred_check_branch
      %40 = sbr.rel (0) target = $region29
    $region28: #{tpu_custom_call.1} parent=1 // pred_region
      _
    $region29: #{tpu_custom_call.1} parent=1 // pred_fallthru
      _
    // Predicated region
    $region30: #{tpu_custom_call.1} parent=1 // pred_check
      _
    $region31: #{tpu_custom_call.1} parent=1 // pred_check_branch
      %42 = sbr.rel (0) target = $region33
    $region32: #{tpu_custom_call.1} parent=1 // pred_region
      %s44 = ssub.s32 256, 256
      %45 = vsyncadd [#allocation6], %s44
      %s46 = sshll.u32 [#allocation5], 4
      %s47 = int_to_ptr.vmem [resolvable:$true] %s46
      %52 = dma.hbm_to_vmem [thread:$0]  %s7, 256, %s47, [#allocation6], 128, 128, 8
    $region33: #{tpu_custom_call.1} parent=1 // pred_fallthru
      _
    // Predicated region
    $region34: #{tpu_custom_call.1} parent=1 // pred_check
      _
    $region35: #{tpu_custom_call.1} parent=1 // pred_check_branch
      %54 = sbr.rel (0) target = $region37
    $region36: #{tpu_custom_call.1} parent=1 // pred_region
      _
    $region37: #{tpu_custom_call.1} parent=1 // pred_fallthru
      _
    // Predicated region
    $region38: #{tpu_custom_call.1} parent=1 // pred_check
      _
    $region39: #{tpu_custom_call.1} parent=1 // pred_check_branch
      %56 = sbr.rel (0) target = $region41
    $region40: #{tpu_custom_call.1} parent=1 // pred_region
      _
    $region41: #{tpu_custom_call.1} parent=1 // pred_fallthru
      _
    // Predicated region
    $region42: #{tpu_custom_call.1} parent=1 // pred_check
      _
    $region43: #{tpu_custom_call.1} parent=1 // pred_check_branch
      %58 = sbr.rel (0) target = $region45
    $region44: #{tpu_custom_call.1} parent=1 // pred_region
      _
    $region45: #{tpu_custom_call.1} parent=1 // pred_fallthru
      _
    // Predicated region
    $region46: #{tpu_custom_call.1} parent=1 // pred_check
      _
    $region47: #{tpu_custom_call.1} parent=1 // pred_check_branch
      %60 = sbr.rel (0) target = $region49
    $region48: #{tpu_custom_call.1} parent=1 // pred_region
      %61 = dma.done [#allocation3], 256
    $region49: #{tpu_custom_call.1} parent=1 // pred_fallthru
      _
    // Predicated region
    $region50: #{tpu_custom_call.1} parent=1 // pred_check
      _
    $region51: #{tpu_custom_call.1} parent=1 // pred_check_branch
      %63 = sbr.rel (0) target = $region53
    $region52: #{tpu_custom_call.1} parent=1 // pred_region
      %64 = dma.done [#allocation6], 256
    $region53: #{tpu_custom_call.1} parent=1 // pred_fallthru
      _
    %v65 = vld [vmem:[%s0] sm:$0x77]
    %v66 = vld [vmem:[%s0 + $0x8] sm:$0x77]
    %v67 = vld [vmem:[%s0 + $0x10] sm:$0x77]
    %v68 = vld [vmem:[%s0 + $0x18] sm:$0x77]
    %v69 = vld [vmem:[%s0 + $0x20] sm:$0x77]
    %v70 = vld [vmem:[%s0 + $0x28] sm:$0x77]
    %v71 = vld [vmem:[%s0 + $0x30] sm:$0x77]
    %v72 = vld [vmem:[%s0 + $0x38] sm:$0x77]
    %v73 = vld [vmem:[#allocation2] sm:$0xff]
    %v74 = vld [vmem:[#allocation2 + $0x8] sm:$0xff]
    %v75 = vld [vmem:[%s1] sm:$0xff]
    %v76 = vld [vmem:[%s1 + $0x8] sm:$0xff]
    %v77 = vld [vmem:[%s1 + $0x10] sm:$0xff]
    %v78 = vld [vmem:[%s1 + $0x18] sm:$0xff]
    %v79 = vld [vmem:[%s1 + $0x20] sm:$0xff]
    %v80 = vld [vmem:[%s1 + $0x28] sm:$0xff]
    %v81 = vld [vmem:[%s1 + $0x30] sm:$0xff]
    %v82 = vld [vmem:[%s1 + $0x38] sm:$0xff]
    %v85 = vlaneseq
    %v86 = vshrl.u32 %v85, 7
    %v87 = vsub.s32 0, %v86
    %v88 = vrot.slane %v73, %v87
    %v89 = vlaneseq
    %v90 = vshrl.u32 %v89, 7
    %v91 = vsub.s32 1, %v90
    %v92 = vrot.slane %v73, %v91
    %v93 = vlaneseq
    %v94 = vshrl.u32 %v93, 7
    %v95 = vsub.s32 2, %v94
    %v96 = vrot.slane %v73, %v95
    %v97 = vlaneseq
    %v98 = vshrl.u32 %v97, 7
    %v99 = vsub.s32 3, %v98
    %v100 = vrot.slane %v73, %v99
    %v101 = vlaneseq
    %v102 = vshrl.u32 %v101, 7
    %v103 = vsub.s32 4, %v102
    %v104 = vrot.slane %v73, %v103
    %v105 = vlaneseq
    %v106 = vshrl.u32 %v105, 7
    %v107 = vsub.s32 5, %v106
    %v108 = vrot.slane %v73, %v107
    %v109 = vlaneseq
    %v110 = vshrl.u32 %v109, 7
    %v111 = vsub.s32 6, %v110
    %v112 = vrot.slane %v73, %v111
    %v113 = vlaneseq
    %v114 = vshrl.u32 %v113, 7
    %v115 = vsub.s32 7, %v114
    %v116 = vrot.slane %v73, %v115
    %v117 = vlaneseq
    %v118 = vshrl.u32 %v117, 7
    %v119 = vsub.s32 0, %v118
    %v120 = vrot.slane %v74, %v119
    %v121 = vlaneseq
    %v122 = vshrl.u32 %v121, 7
    %v123 = vsub.s32 1, %v122
    %v124 = vrot.slane %v74, %v123
    %v125 = vlaneseq
    %v126 = vshrl.u32 %v125, 7
    %v127 = vsub.s32 2, %v126
    %v128 = vrot.slane %v74, %v127
    %v129 = vlaneseq
    %v130 = vshrl.u32 %v129, 7
    %v131 = vsub.s32 3, %v130
    %v132 = vrot.slane %v74, %v131
    %v133 = vlaneseq
    %v134 = vshrl.u32 %v133, 7
    %v135 = vsub.s32 4, %v134
    %v136 = vrot.slane %v74, %v135
    %v137 = vlaneseq
    %v138 = vshrl.u32 %v137, 7
    %v139 = vsub.s32 5, %v138
    %v140 = vrot.slane %v74, %v139
    %v141 = vlaneseq
    %v142 = vshrl.u32 %v141, 7
    %v143 = vsub.s32 6, %v142
    %v144 = vrot.slane %v74, %v143
    %v145 = vlaneseq
    %v146 = vshrl.u32 %v145, 7
    %v147 = vsub.s32 7, %v146
    %v148 = vrot.slane %v74, %v147
    %v149 = vcombine.low %v88, %v92
    %v150 = vcombine.low %v96, %v100
    %v151 = vcombine.low %v104, %v108
    %v152 = vcombine.low %v112, %v116
    %v153 = vcombine.low %v120, %v124
    %v154 = vcombine.low %v128, %v132
    %v155 = vcombine.low %v136, %v140
    %v156 = vcombine.low %v144, %v148
    %v165 = vmul.f32 %v75, %v149
    %v166 = vmul.f32 %v76, %v150
    %v167 = vmul.f32 %v77, %v151
    %v168 = vmul.f32 %v78, %v152
    %v169 = vmul.f32 %v79, %v153
    %v170 = vmul.f32 %v80, %v154
    %v171 = vmul.f32 %v81, %v155
    %v172 = vmul.f32 %v82, %v156
    %v173 = vld [vmem:[%s3] sm:$0xff]
    %v174 = vld [vmem:[%s3 + $0x8] sm:$0xff]
    %v175 = vld [vmem:[%s3 + $0x10] sm:$0xff]
    %v176 = vld [vmem:[%s3 + $0x18] sm:$0xff]
    %v177 = vld [vmem:[%s4] sm:$0xff]
    %v178 = vld [vmem:[%s4 + $0x8] sm:$0xff]
    %v179 = vld [vmem:[%s4 + $0x10] sm:$0xff]
    %v180 = vld [vmem:[%s4 + $0x18] sm:$0xff]
    %182 = vset.pattern.permute.xlu0 0
    %183 = vperm.xlu0 %182, %v177
    %v184 = vpop.permute.xlu0 %183
    %187 = vset.pattern.permute.xlu0 0
    %188 = vperm.xlu0 %187, %v178
    %v189 = vpop.permute.xlu0 %188
    %192 = vset.pattern.permute.xlu0 0
    %193 = vperm.xlu0 %192, %v179
    %v194 = vpop.permute.xlu0 %193
    %197 = vset.pattern.permute.xlu0 0
    %198 = vperm.xlu0 %197, %v180
    %v199 = vpop.permute.xlu0 %198
    %v209 = vcombine.high %v65, %v65
    %v210 = vcombine.high %v66, %v66
    %v211 = vcombine.high %v67, %v67
    %v212 = vcombine.high %v68, %v68
    %v213 = vcombine.high %v69, %v69
    %v214 = vcombine.high %v70, %v70
    %v215 = vcombine.high %v71, %v71
    %v216 = vcombine.high %v72, %v72
    %vm217 = vcmask 23552
    %v219 = vsel %vm217, %v173, 0
    %v222 = vsel %vm217, %v174, 0
    %v225 = vsel %vm217, %v175, 0
    %v228 = vsel %vm217, %v176, 0
    %vm230 = vcmask 1042432
    %v231 = vsel %vm230, %v65, 0
    %v233 = vsel %vm230, %v209, 0
    %v235 = vsel %vm230, %v66, 0
    %v237 = vsel %vm230, %v210, 0
    %v239 = vsel %vm230, %v67, 0
    %v241 = vsel %vm230, %v211, 0
    %v243 = vsel %vm230, %v68, 0
    %v245 = vsel %vm230, %v212, 0
    %v247 = vsel %vm230, %v69, 0
    %v249 = vsel %vm230, %v213, 0
    %v251 = vsel %vm230, %v70, 0
    %v253 = vsel %vm230, %v214, 0
    %v255 = vsel %vm230, %v71, 0
    %v257 = vsel %vm230, %v215, 0
    %v259 = vsel %vm230, %v72, 0
    %v261 = vsel %vm230, %v216, 0
    %263 = vmatprep.subr.mxu0 0.0
    %264 = vmatpush1.msra.mxu0 0.0
    %265 = vmatprep.subr.mxu0 0.0
    %266 = vmatpush1.msra.mxu0 0.0
    %267 = vmatprep.subr.mxu0 0.0
    %268 = vmatpush1.msra.mxu0 0.0
    %269 = vmatprep.subr.mxu0 0.0
    %270 = vmatpush1.msra.mxu0 0.0
    %271 = vmatprep.subr.mxu0 0.0
    %272 = vmatpush1.msra.mxu0 0.0
    %273 = vmatprep.subr.mxu0 0.0
    %274 = vmatpush1.msra.mxu0 0.0
    %275 = vmatprep.subr.mxu0 0.0
    %276 = vmatpush1.msra.mxu0 0.0
    %277 = vmatprep.subr.mxu0 0.0
    %278 = vmatpush1.msra.mxu0 0.0
    %279 = vmatprep.subr.mxu0 0.0
    %280 = vmatpush1.msra.mxu0 0.0
    %281 = vmatprep.subr.mxu0 0.0
    %282 = vmatpush1.msra.mxu0 0.0
    %283 = vmatprep.subr.mxu0 0.0
    %284 = vmatpush1.msra.mxu0 0.0
    %285 = vmatprep.subr.mxu0 0.0
    %286 = vmatpush1.msra.mxu0 0.0
    %287 = vmatprep.subr.mxu0 0.0
    %288 = vmatpush1.msra.mxu0 0.0
    %289 = vmatprep.subr.mxu0 0.0
    %290 = vmatpush1.msra.mxu0 0.0
    %291 = vmatprep.subr.mxu0 0.0
    %292 = vmatpush1.msra.mxu0 0.0
    %293 = vmatprep.subr.mxu0 %v233
    %294 = vmatpush1.msra.mxu0 %v231
    %295 = vmatprep.subr.mxu0 0.0
    %296 = vmatpush2.msra.mxu0 0.0
    %297 = vmatprep.subr.mxu0 0.0
    %298 = vmatpush2.msra.mxu0 0.0
    %299 = vmatprep.subr.mxu0 0.0
    %300 = vmatpush2.msra.mxu0 0.0
    %301 = vmatprep.subr.mxu0 0.0
    %302 = vmatpush2.msra.mxu0 0.0
    %303 = vmatprep.subr.mxu0 0.0
    %304 = vmatpush2.msra.mxu0 0.0
    %305 = vmatprep.subr.mxu0 0.0
    %306 = vmatpush2.msra.mxu0 0.0
    %307 = vmatprep.subr.mxu0 0.0
    %308 = vmatpush2.msra.mxu0 0.0
    %309 = vmatprep.subr.mxu0 0.0
    %310 = vmatpush2.msra.mxu0 0.0
    %311 = vmatprep.subr.mxu0 0.0
    %312 = vmatpush2.msra.mxu0 0.0
    %313 = vmatprep.subr.mxu0 0.0
    %314 = vmatpush2.msra.mxu0 0.0
    %315 = vmatprep.subr.mxu0 0.0
    %316 = vmatpush2.msra.mxu0 0.0
    %317 = vmatprep.subr.mxu0 0.0
    %318 = vmatpush2.msra.mxu0 0.0
    %319 = vmatprep.subr.mxu0 0.0
    %320 = vmatpush2.msra.mxu0 0.0
    %321 = vmatprep.subr.mxu0 0.0
    %322 = vmatpush2.msra.mxu0 0.0
    %323 = vmatprep.subr.mxu0 0.0
    %324 = vmatpush2.msra.mxu0 0.0
    %325 = vmatprep.subr.mxu0 0.0
    %326 = vmatpush2.msra.mxu0 0.0
    %327 = vmatprep.mubr.f32.mxu0 0.0
    %328 = vmatmul.mubr.f32.gmra.mxu0 %v219
    %v329 = vpop.f32.mrf.mxu0
    %v330 = vadd.f32 %v184, %v329
    %v331 = vpop.f32.mrf.mxu0
    %v332 = vadd.f32 %v184, %v331
    %333 = vmatprep.mubr.f32.mxu0 0.0
    %334 = vmatmul.mubr.f32.gmra.mxu0 %v222
    %v335 = vpop.f32.mrf.mxu0
    %v336 = vadd.f32 %v189, %v335
    %v337 = vpop.f32.mrf.mxu0
    %v338 = vadd.f32 %v189, %v337
    %339 = vmatprep.mubr.f32.mxu0 0.0
    %340 = vmatmul.mubr.f32.gmra.mxu0 %v225
    %v341 = vpop.f32.mrf.mxu0
    %v342 = vadd.f32 %v194, %v341
    %v343 = vpop.f32.mrf.mxu0
    %v344 = vadd.f32 %v194, %v343
    %345 = vmatprep.mubr.f32.mxu0 0.0
    %346 = vmatmul.mubr.f32.gmra.mxu0 %v228
    %v347 = vpop.f32.mrf.mxu0
    %v348 = vadd.f32 %v199, %v347
    %v349 = vpop.f32.mrf.mxu0
    %v350 = vadd.f32 %v199, %v349
    %351 = vdwg.mxu0
    %352 = vmatprep.subr.mxu0 0.0
    %353 = vmatpush1.msra.mxu0 0.0
    %354 = vmatprep.subr.mxu0 0.0
    %355 = vmatpush1.msra.mxu0 0.0
    %356 = vmatprep.subr.mxu0 0.0
    %357 = vmatpush1.msra.mxu0 0.0
    %358 = vmatprep.subr.mxu0 0.0
    %359 = vmatpush1.msra.mxu0 0.0
    %360 = vmatprep.subr.mxu0 0.0
    %361 = vmatpush1.msra.mxu0 0.0
    %362 = vmatprep.subr.mxu0 0.0
    %363 = vmatpush1.msra.mxu0 0.0
    %364 = vmatprep.subr.mxu0 0.0
    %365 = vmatpush1.msra.mxu0 0.0
    %366 = vmatprep.subr.mxu0 0.0
    %367 = vmatpush1.msra.mxu0 0.0
    %368 = vmatprep.subr.mxu0 0.0
    %369 = vmatpush1.msra.mxu0 0.0
    %370 = vmatprep.subr.mxu0 0.0
    %371 = vmatpush1.msra.mxu0 0.0
    %372 = vmatprep.subr.mxu0 0.0
    %373 = vmatpush1.msra.mxu0 0.0
    %374 = vmatprep.subr.mxu0 0.0
    %375 = vmatpush1.msra.mxu0 0.0
    %376 = vmatprep.subr.mxu0 0.0
    %377 = vmatpush1.msra.mxu0 0.0
    %378 = vmatprep.subr.mxu0 0.0
    %379 = vmatpush1.msra.mxu0 0.0
    %380 = vmatprep.subr.mxu0 0.0
    %381 = vmatpush1.msra.mxu0 0.0
    %382 = vmatprep.subr.mxu0 %v237
    %383 = vmatpush1.msra.mxu0 %v235
    %384 = vmatprep.subr.mxu0 0.0
    %385 = vmatpush2.msra.mxu0 0.0
    %386 = vmatprep.subr.mxu0 0.0
    %387 = vmatpush2.msra.mxu0 0.0
    %388 = vmatprep.subr.mxu0 0.0
    %389 = vmatpush2.msra.mxu0 0.0
    %390 = vmatprep.subr.mxu0 0.0
    %391 = vmatpush2.msra.mxu0 0.0
    %392 = vmatprep.subr.mxu0 0.0
    %393 = vmatpush2.msra.mxu0 0.0
    %394 = vmatprep.subr.mxu0 0.0
    %395 = vmatpush2.msra.mxu0 0.0
    %396 = vmatprep.subr.mxu0 0.0
    %397 = vmatpush2.msra.mxu0 0.0
    %398 = vmatprep.subr.mxu0 0.0
    %399 = vmatpush2.msra.mxu0 0.0
    %400 = vmatprep.subr.mxu0 0.0
    %401 = vmatpush2.msra.mxu0 0.0
    %402 = vmatprep.subr.mxu0 0.0
    %403 = vmatpush2.msra.mxu0 0.0
    %404 = vmatprep.subr.mxu0 0.0
    %405 = vmatpush2.msra.mxu0 0.0
    %406 = vmatprep.subr.mxu0 0.0
    %407 = vmatpush2.msra.mxu0 0.0
    %408 = vmatprep.subr.mxu0 0.0
    %409 = vmatpush2.msra.mxu0 0.0
    %410 = vmatprep.subr.mxu0 0.0
    %411 = vmatpush2.msra.mxu0 0.0
    %412 = vmatprep.subr.mxu0 0.0
    %413 = vmatpush2.msra.mxu0 0.0
    %414 = vmatprep.subr.mxu0 0.0
    %415 = vmatpush2.msra.mxu0 0.0
    %416 = vmatprep.mubr.f32.mxu0 0.0
    %417 = vmatmul.mubr.f32.gmra.mxu0 %v219
    %v418 = vpop.f32.mrf.mxu0
    %v419 = vadd.f32 %v184, %v418
    %v420 = vpop.f32.mrf.mxu0
    %v421 = vadd.f32 %v184, %v420
    %422 = vmatprep.mubr.f32.mxu0 0.0
    %423 = vmatmul.mubr.f32.gmra.mxu0 %v222
    %v424 = vpop.f32.mrf.mxu0
    %v425 = vadd.f32 %v189, %v424
    %v426 = vpop.f32.mrf.mxu0
    %v427 = vadd.f32 %v189, %v426
    %428 = vmatprep.mubr.f32.mxu0 0.0
    %429 = vmatmul.mubr.f32.gmra.mxu0 %v225
    %v430 = vpop.f32.mrf.mxu0
    %v431 = vadd.f32 %v194, %v430
    %v432 = vpop.f32.mrf.mxu0
    %v433 = vadd.f32 %v194, %v432
    %434 = vmatprep.mubr.f32.mxu0 0.0
    %435 = vmatmul.mubr.f32.gmra.mxu0 %v228
    %v436 = vpop.f32.mrf.mxu0
    %v437 = vadd.f32 %v199, %v436
    %v438 = vpop.f32.mrf.mxu0
    %v439 = vadd.f32 %v199, %v438
    %440 = vdwg.mxu0
    %441 = vmatprep.subr.mxu0 0.0
    %442 = vmatpush1.msra.mxu0 0.0
    %443 = vmatprep.subr.mxu0 0.0
    %444 = vmatpush1.msra.mxu0 0.0
    %445 = vmatprep.subr.mxu0 0.0
    %446 = vmatpush1.msra.mxu0 0.0
    %447 = vmatprep.subr.mxu0 0.0
    %448 = vmatpush1.msra.mxu0 0.0
    %449 = vmatprep.subr.mxu0 0.0
    %450 = vmatpush1.msra.mxu0 0.0
    %451 = vmatprep.subr.mxu0 0.0
    %452 = vmatpush1.msra.mxu0 0.0
    %453 = vmatprep.subr.mxu0 0.0
    %454 = vmatpush1.msra.mxu0 0.0
    %455 = vmatprep.subr.mxu0 0.0
    %456 = vmatpush1.msra.mxu0 0.0
    %457 = vmatprep.subr.mxu0 0.0
    %458 = vmatpush1.msra.mxu0 0.0
    %459 = vmatprep.subr.mxu0 0.0
    %460 = vmatpush1.msra.mxu0 0.0
    %461 = vmatprep.subr.mxu0 0.0
    %462 = vmatpush1.msra.mxu0 0.0
    %463 = vmatprep.subr.mxu0 0.0
    %464 = vmatpush1.msra.mxu0 0.0
    %465 = vmatprep.subr.mxu0 0.0
    %466 = vmatpush1.msra.mxu0 0.0
    %467 = vmatprep.subr.mxu0 0.0
    %468 = vmatpush1.msra.mxu0 0.0
    %469 = vmatprep.subr.mxu0 0.0
    %470 = vmatpush1.msra.mxu0 0.0
    %471 = vmatprep.subr.mxu0 %v241
    %472 = vmatpush1.msra.mxu0 %v239
    %473 = vmatprep.subr.mxu0 0.0
    %474 = vmatpush2.msra.mxu0 0.0
    %475 = vmatprep.subr.mxu0 0.0
    %476 = vmatpush2.msra.mxu0 0.0
    %477 = vmatprep.subr.mxu0 0.0
    %478 = vmatpush2.msra.mxu0 0.0
    %479 = vmatprep.subr.mxu0 0.0
    %480 = vmatpush2.msra.mxu0 0.0
    %481 = vmatprep.subr.mxu0 0.0
    %482 = vmatpush2.msra.mxu0 0.0
    %483 = vmatprep.subr.mxu0 0.0
    %484 = vmatpush2.msra.mxu0 0.0
    %485 = vmatprep.subr.mxu0 0.0
    %486 = vmatpush2.msra.mxu0 0.0
    %487 = vmatprep.subr.mxu0 0.0
    %488 = vmatpush2.msra.mxu0 0.0
    %489 = vmatprep.subr.mxu0 0.0
    %490 = vmatpush2.msra.mxu0 0.0
    %491 = vmatprep.subr.mxu0 0.0
    %492 = vmatpush2.msra.mxu0 0.0
    %493 = vmatprep.subr.mxu0 0.0
    %494 = vmatpush2.msra.mxu0 0.0
    %495 = vmatprep.subr.mxu0 0.0
    %496 = vmatpush2.msra.mxu0 0.0
    %497 = vmatprep.subr.mxu0 0.0
    %498 = vmatpush2.msra.mxu0 0.0
    %499 = vmatprep.subr.mxu0 0.0
    %500 = vmatpush2.msra.mxu0 0.0
    %501 = vmatprep.subr.mxu0 0.0
    %502 = vmatpush2.msra.mxu0 0.0
    %503 = vmatprep.subr.mxu0 0.0
    %504 = vmatpush2.msra.mxu0 0.0
    %505 = vmatprep.mubr.f32.mxu0 0.0
    %506 = vmatmul.mubr.f32.gmra.mxu0 %v219
    %v507 = vpop.f32.mrf.mxu0
    %v508 = vadd.f32 %v184, %v507
    %v509 = vpop.f32.mrf.mxu0
    %v510 = vadd.f32 %v184, %v509
    %511 = vmatprep.mubr.f32.mxu0 0.0
    %512 = vmatmul.mubr.f32.gmra.mxu0 %v222
    %v513 = vpop.f32.mrf.mxu0
    %v514 = vadd.f32 %v189, %v513
    %v515 = vpop.f32.mrf.mxu0
    %v516 = vadd.f32 %v189, %v515
    %517 = vmatprep.mubr.f32.mxu0 0.0
    %518 = vmatmul.mubr.f32.gmra.mxu0 %v225
    %v519 = vpop.f32.mrf.mxu0
    %v520 = vadd.f32 %v194, %v519
    %v521 = vpop.f32.mrf.mxu0
    %v522 = vadd.f32 %v194, %v521
    %523 = vmatprep.mubr.f32.mxu0 0.0
    %524 = vmatmul.mubr.f32.gmra.mxu0 %v228
    %v525 = vpop.f32.mrf.mxu0
    %v526 = vadd.f32 %v199, %v525
    %v527 = vpop.f32.mrf.mxu0
    %v528 = vadd.f32 %v199, %v527
    %529 = vdwg.mxu0
    %530 = vmatprep.subr.mxu0 0.0
    %531 = vmatpush1.msra.mxu0 0.0
    %532 = vmatprep.subr.mxu0 0.0
    %533 = vmatpush1.msra.mxu0 0.0
    %534 = vmatprep.subr.mxu0 0.0
    %535 = vmatpush1.msra.mxu0 0.0
    %536 = vmatprep.subr.mxu0 0.0
    %537 = vmatpush1.msra.mxu0 0.0
    %538 = vmatprep.subr.mxu0 0.0
    %539 = vmatpush1.msra.mxu0 0.0
    %540 = vmatprep.subr.mxu0 0.0
    %541 = vmatpush1.msra.mxu0 0.0
    %542 = vmatprep.subr.mxu0 0.0
    %543 = vmatpush1.msra.mxu0 0.0
    %544 = vmatprep.subr.mxu0 0.0
    %545 = vmatpush1.msra.mxu0 0.0
    %546 = vmatprep.subr.mxu0 0.0
    %547 = vmatpush1.msra.mxu0 0.0
    %548 = vmatprep.subr.mxu0 0.0
    %549 = vmatpush1.msra.mxu0 0.0
    %550 = vmatprep.subr.mxu0 0.0
    %551 = vmatpush1.msra.mxu0 0.0
    %552 = vmatprep.subr.mxu0 0.0
    %553 = vmatpush1.msra.mxu0 0.0
    %554 = vmatprep.subr.mxu0 0.0
    %555 = vmatpush1.msra.mxu0 0.0
    %556 = vmatprep.subr.mxu0 0.0
    %557 = vmatpush1.msra.mxu0 0.0
    %558 = vmatprep.subr.mxu0 0.0
    %559 = vmatpush1.msra.mxu0 0.0
    %560 = vmatprep.subr.mxu0 %v245
    %561 = vmatpush1.msra.mxu0 %v243
    %562 = vmatprep.subr.mxu0 0.0
    %563 = vmatpush2.msra.mxu0 0.0
    %564 = vmatprep.subr.mxu0 0.0
    %565 = vmatpush2.msra.mxu0 0.0
    %566 = vmatprep.subr.mxu0 0.0
    %567 = vmatpush2.msra.mxu0 0.0
    %568 = vmatprep.subr.mxu0 0.0
    %569 = vmatpush2.msra.mxu0 0.0
    %570 = vmatprep.subr.mxu0 0.0
    %571 = vmatpush2.msra.mxu0 0.0
    %572 = vmatprep.subr.mxu0 0.0
    %573 = vmatpush2.msra.mxu0 0.0
    %574 = vmatprep.subr.mxu0 0.0
    %575 = vmatpush2.msra.mxu0 0.0
    %576 = vmatprep.subr.mxu0 0.0
    %577 = vmatpush2.msra.mxu0 0.0
    %578 = vmatprep.subr.mxu0 0.0
    %579 = vmatpush2.msra.mxu0 0.0
    %580 = vmatprep.subr.mxu0 0.0
    %581 = vmatpush2.msra.mxu0 0.0
    %582 = vmatprep.subr.mxu0 0.0
    %583 = vmatpush2.msra.mxu0 0.0
    %584 = vmatprep.subr.mxu0 0.0
    %585 = vmatpush2.msra.mxu0 0.0
    %586 = vmatprep.subr.mxu0 0.0
    %587 = vmatpush2.msra.mxu0 0.0
    %588 = vmatprep.subr.mxu0 0.0
    %589 = vmatpush2.msra.mxu0 0.0
    %590 = vmatprep.subr.mxu0 0.0
    %591 = vmatpush2.msra.mxu0 0.0
    %592 = vmatprep.subr.mxu0 0.0
    %593 = vmatpush2.msra.mxu0 0.0
    %594 = vmatprep.mubr.f32.mxu0 0.0
    %595 = vmatmul.mubr.f32.gmra.mxu0 %v219
    %v596 = vpop.f32.mrf.mxu0
    %v597 = vadd.f32 %v184, %v596
    %v598 = vpop.f32.mrf.mxu0
    %v599 = vadd.f32 %v184, %v598
    %600 = vmatprep.mubr.f32.mxu0 0.0
    %601 = vmatmul.mubr.f32.gmra.mxu0 %v222
    %v602 = vpop.f32.mrf.mxu0
    %v603 = vadd.f32 %v189, %v602
    %v604 = vpop.f32.mrf.mxu0
    %v605 = vadd.f32 %v189, %v604
    %606 = vmatprep.mubr.f32.mxu0 0.0
    %607 = vmatmul.mubr.f32.gmra.mxu0 %v225
    %v608 = vpop.f32.mrf.mxu0
    %v609 = vadd.f32 %v194, %v608
    %v610 = vpop.f32.mrf.mxu0
    %v611 = vadd.f32 %v194, %v610
    %612 = vmatprep.mubr.f32.mxu0 0.0
    %613 = vmatmul.mubr.f32.gmra.mxu0 %v228
    %v614 = vpop.f32.mrf.mxu0
    %v615 = vadd.f32 %v199, %v614
    %v616 = vpop.f32.mrf.mxu0
    %v617 = vadd.f32 %v199, %v616
    %618 = vdwg.mxu0
    %619 = vmatprep.subr.mxu0 0.0
    %620 = vmatpush1.msra.mxu0 0.0
    %621 = vmatprep.subr.mxu0 0.0
    %622 = vmatpush1.msra.mxu0 0.0
    %623 = vmatprep.subr.mxu0 0.0
    %624 = vmatpush1.msra.mxu0 0.0
    %625 = vmatprep.subr.mxu0 0.0
    %626 = vmatpush1.msra.mxu0 0.0
    %627 = vmatprep.subr.mxu0 0.0
    %628 = vmatpush1.msra.mxu0 0.0
    %629 = vmatprep.subr.mxu0 0.0
    %630 = vmatpush1.msra.mxu0 0.0
    %631 = vmatprep.subr.mxu0 0.0
    %632 = vmatpush1.msra.mxu0 0.0
    %633 = vmatprep.subr.mxu0 0.0
    %634 = vmatpush1.msra.mxu0 0.0
    %635 = vmatprep.subr.mxu0 0.0
    %636 = vmatpush1.msra.mxu0 0.0
    %637 = vmatprep.subr.mxu0 0.0
    %638 = vmatpush1.msra.mxu0 0.0
    %639 = vmatprep.subr.mxu0 0.0
    %640 = vmatpush1.msra.mxu0 0.0
    %641 = vmatprep.subr.mxu0 0.0
    %642 = vmatpush1.msra.mxu0 0.0
    %643 = vmatprep.subr.mxu0 0.0
    %644 = vmatpush1.msra.mxu0 0.0
    %645 = vmatprep.subr.mxu0 0.0
    %646 = vmatpush1.msra.mxu0 0.0
    %647 = vmatprep.subr.mxu0 0.0
    %648 = vmatpush1.msra.mxu0 0.0
    %649 = vmatprep.subr.mxu0 %v249
    %650 = vmatpush1.msra.mxu0 %v247
    %651 = vmatprep.subr.mxu0 0.0
    %652 = vmatpush2.msra.mxu0 0.0
    %653 = vmatprep.subr.mxu0 0.0
    %654 = vmatpush2.msra.mxu0 0.0
    %655 = vmatprep.subr.mxu0 0.0
    %656 = vmatpush2.msra.mxu0 0.0
    %657 = vmatprep.subr.mxu0 0.0
    %658 = vmatpush2.msra.mxu0 0.0
    %659 = vmatprep.subr.mxu0 0.0
    %660 = vmatpush2.msra.mxu0 0.0
    %661 = vmatprep.subr.mxu0 0.0
    %662 = vmatpush2.msra.mxu0 0.0
    %663 = vmatprep.subr.mxu0 0.0
    %664 = vmatpush2.msra.mxu0 0.0
    %665 = vmatprep.subr.mxu0 0.0
    %666 = vmatpush2.msra.mxu0 0.0
    %667 = vmatprep.subr.mxu0 0.0
    %668 = vmatpush2.msra.mxu0 0.0
    %669 = vmatprep.subr.mxu0 0.0
    %670 = vmatpush2.msra.mxu0 0.0
    %671 = vmatprep.subr.mxu0 0.0
    %672 = vmatpush2.msra.mxu0 0.0
    %673 = vmatprep.subr.mxu0 0.0
    %674 = vmatpush2.msra.mxu0 0.0
    %675 = vmatprep.subr.mxu0 0.0
    %676 = vmatpush2.msra.mxu0 0.0
    %677 = vmatprep.subr.mxu0 0.0
    %678 = vmatpush2.msra.mxu0 0.0
    %679 = vmatprep.subr.mxu0 0.0
    %680 = vmatpush2.msra.mxu0 0.0
    %681 = vmatprep.subr.mxu0 0.0
    %682 = vmatpush2.msra.mxu0 0.0
    %683 = vmatprep.mubr.f32.mxu0 0.0
    %684 = vmatmul.mubr.f32.gmra.mxu0 %v219
    %v685 = vpop.f32.mrf.mxu0
    %v686 = vadd.f32 %v184, %v685
    %v687 = vpop.f32.mrf.mxu0
    %v688 = vadd.f32 %v184, %v687
    %689 = vmatprep.mubr.f32.mxu0 0.0
    %690 = vmatmul.mubr.f32.gmra.mxu0 %v222
    %v691 = vpop.f32.mrf.mxu0
    %v692 = vadd.f32 %v189, %v691
    %v693 = vpop.f32.mrf.mxu0
    %v694 = vadd.f32 %v189, %v693
    %695 = vmatprep.mubr.f32.mxu0 0.0
    %696 = vmatmul.mubr.f32.gmra.mxu0 %v225
    %v697 = vpop.f32.mrf.mxu0
    %v698 = vadd.f32 %v194, %v697
    %v699 = vpop.f32.mrf.mxu0
    %v700 = vadd.f32 %v194, %v699
    %701 = vmatprep.mubr.f32.mxu0 0.0
    %702 = vmatmul.mubr.f32.gmra.mxu0 %v228
    %v703 = vpop.f32.mrf.mxu0
    %v704 = vadd.f32 %v199, %v703
    %v705 = vpop.f32.mrf.mxu0
    %v706 = vadd.f32 %v199, %v705
    %707 = vdwg.mxu0
    %708 = vmatprep.subr.mxu0 0.0
    %709 = vmatpush1.msra.mxu0 0.0
    %710 = vmatprep.subr.mxu0 0.0
    %711 = vmatpush1.msra.mxu0 0.0
    %712 = vmatprep.subr.mxu0 0.0
    %713 = vmatpush1.msra.mxu0 0.0
    %714 = vmatprep.subr.mxu0 0.0
    %715 = vmatpush1.msra.mxu0 0.0
    %716 = vmatprep.subr.mxu0 0.0
    %717 = vmatpush1.msra.mxu0 0.0
    %718 = vmatprep.subr.mxu0 0.0
    %719 = vmatpush1.msra.mxu0 0.0
    %720 = vmatprep.subr.mxu0 0.0
    %721 = vmatpush1.msra.mxu0 0.0
    %722 = vmatprep.subr.mxu0 0.0
    %723 = vmatpush1.msra.mxu0 0.0
    %724 = vmatprep.subr.mxu0 0.0
    %725 = vmatpush1.msra.mxu0 0.0
    %726 = vmatprep.subr.mxu0 0.0
    %727 = vmatpush1.msra.mxu0 0.0
    %728 = vmatprep.subr.mxu0 0.0
    %729 = vmatpush1.msra.mxu0 0.0
    %730 = vmatprep.subr.mxu0 0.0
    %731 = vmatpush1.msra.mxu0 0.0
    %732 = vmatprep.subr.mxu0 0.0
    %733 = vmatpush1.msra.mxu0 0.0
    %734 = vmatprep.subr.mxu0 0.0
    %735 = vmatpush1.msra.mxu0 0.0
    %736 = vmatprep.subr.mxu0 0.0
    %737 = vmatpush1.msra.mxu0 0.0
    %738 = vmatprep.subr.mxu0 %v253
    %739 = vmatpush1.msra.mxu0 %v251
    %740 = vmatprep.subr.mxu0 0.0
    %741 = vmatpush2.msra.mxu0 0.0
    %742 = vmatprep.subr.mxu0 0.0
    %743 = vmatpush2.msra.mxu0 0.0
    %744 = vmatprep.subr.mxu0 0.0
    %745 = vmatpush2.msra.mxu0 0.0
    %746 = vmatprep.subr.mxu0 0.0
    %747 = vmatpush2.msra.mxu0 0.0
    %748 = vmatprep.subr.mxu0 0.0
    %749 = vmatpush2.msra.mxu0 0.0
    %750 = vmatprep.subr.mxu0 0.0
    %751 = vmatpush2.msra.mxu0 0.0
    %752 = vmatprep.subr.mxu0 0.0
    %753 = vmatpush2.msra.mxu0 0.0
    %754 = vmatprep.subr.mxu0 0.0
    %755 = vmatpush2.msra.mxu0 0.0
    %756 = vmatprep.subr.mxu0 0.0
    %757 = vmatpush2.msra.mxu0 0.0
    %758 = vmatprep.subr.mxu0 0.0
    %759 = vmatpush2.msra.mxu0 0.0
    %760 = vmatprep.subr.mxu0 0.0
    %761 = vmatpush2.msra.mxu0 0.0
    %762 = vmatprep.subr.mxu0 0.0
    %763 = vmatpush2.msra.mxu0 0.0
    %764 = vmatprep.subr.mxu0 0.0
    %765 = vmatpush2.msra.mxu0 0.0
    %766 = vmatprep.subr.mxu0 0.0
    %767 = vmatpush2.msra.mxu0 0.0
    %768 = vmatprep.subr.mxu0 0.0
    %769 = vmatpush2.msra.mxu0 0.0
    %770 = vmatprep.subr.mxu0 0.0
    %771 = vmatpush2.msra.mxu0 0.0
    %772 = vmatprep.mubr.f32.mxu0 0.0
    %773 = vmatmul.mubr.f32.gmra.mxu0 %v219
    %v774 = vpop.f32.mrf.mxu0
    %v775 = vadd.f32 %v184, %v774
    %v776 = vpop.f32.mrf.mxu0
    %v777 = vadd.f32 %v184, %v776
    %778 = vmatprep.mubr.f32.mxu0 0.0
    %779 = vmatmul.mubr.f32.gmra.mxu0 %v222
    %v780 = vpop.f32.mrf.mxu0
    %v781 = vadd.f32 %v189, %v780
    %v782 = vpop.f32.mrf.mxu0
    %v783 = vadd.f32 %v189, %v782
    %784 = vmatprep.mubr.f32.mxu0 0.0
    %785 = vmatmul.mubr.f32.gmra.mxu0 %v225
    %v786 = vpop.f32.mrf.mxu0
    %v787 = vadd.f32 %v194, %v786
    %v788 = vpop.f32.mrf.mxu0
    %v789 = vadd.f32 %v194, %v788
    %790 = vmatprep.mubr.f32.mxu0 0.0
    %791 = vmatmul.mubr.f32.gmra.mxu0 %v228
    %v792 = vpop.f32.mrf.mxu0
    %v793 = vadd.f32 %v199, %v792
    %v794 = vpop.f32.mrf.mxu0
    %v795 = vadd.f32 %v199, %v794
    %796 = vdwg.mxu0
    %797 = vmatprep.subr.mxu0 0.0
    %798 = vmatpush1.msra.mxu0 0.0
    %799 = vmatprep.subr.mxu0 0.0
    %800 = vmatpush1.msra.mxu0 0.0
    %801 = vmatprep.subr.mxu0 0.0
    %802 = vmatpush1.msra.mxu0 0.0
    %803 = vmatprep.subr.mxu0 0.0
    %804 = vmatpush1.msra.mxu0 0.0
    %805 = vmatprep.subr.mxu0 0.0
    %806 = vmatpush1.msra.mxu0 0.0
    %807 = vmatprep.subr.mxu0 0.0
    %808 = vmatpush1.msra.mxu0 0.0
    %809 = vmatprep.subr.mxu0 0.0
    %810 = vmatpush1.msra.mxu0 0.0
    %811 = vmatprep.subr.mxu0 0.0
    %812 = vmatpush1.msra.mxu0 0.0
    %813 = vmatprep.subr.mxu0 0.0
    %814 = vmatpush1.msra.mxu0 0.0
    %815 = vmatprep.subr.mxu0 0.0
    %816 = vmatpush1.msra.mxu0 0.0
    %817 = vmatprep.subr.mxu0 0.0
    %818 = vmatpush1.msra.mxu0 0.0
    %819 = vmatprep.subr.mxu0 0.0
    %820 = vmatpush1.msra.mxu0 0.0
    %821 = vmatprep.subr.mxu0 0.0
    %822 = vmatpush1.msra.mxu0 0.0
    %823 = vmatprep.subr.mxu0 0.0
    %824 = vmatpush1.msra.mxu0 0.0
    %825 = vmatprep.subr.mxu0 0.0
    %826 = vmatpush1.msra.mxu0 0.0
    %827 = vmatprep.subr.mxu0 %v257
    %828 = vmatpush1.msra.mxu0 %v255
    %829 = vmatprep.subr.mxu0 0.0
    %830 = vmatpush2.msra.mxu0 0.0
    %831 = vmatprep.subr.mxu0 0.0
    %832 = vmatpush2.msra.mxu0 0.0
    %833 = vmatprep.subr.mxu0 0.0
    %834 = vmatpush2.msra.mxu0 0.0
    %835 = vmatprep.subr.mxu0 0.0
    %836 = vmatpush2.msra.mxu0 0.0
    %837 = vmatprep.subr.mxu0 0.0
    %838 = vmatpush2.msra.mxu0 0.0
    %839 = vmatprep.subr.mxu0 0.0
    %840 = vmatpush2.msra.mxu0 0.0
    %841 = vmatprep.subr.mxu0 0.0
    %842 = vmatpush2.msra.mxu0 0.0
    %843 = vmatprep.subr.mxu0 0.0
    %844 = vmatpush2.msra.mxu0 0.0
    %845 = vmatprep.subr.mxu0 0.0
    %846 = vmatpush2.msra.mxu0 0.0
    %847 = vmatprep.subr.mxu0 0.0
    %848 = vmatpush2.msra.mxu0 0.0
    %849 = vmatprep.subr.mxu0 0.0
    %850 = vmatpush2.msra.mxu0 0.0
    %851 = vmatprep.subr.mxu0 0.0
    %852 = vmatpush2.msra.mxu0 0.0
    %853 = vmatprep.subr.mxu0 0.0
    %854 = vmatpush2.msra.mxu0 0.0
    %855 = vmatprep.subr.mxu0 0.0
    %856 = vmatpush2.msra.mxu0 0.0
    %857 = vmatprep.subr.mxu0 0.0
    %858 = vmatpush2.msra.mxu0 0.0
    %859 = vmatprep.subr.mxu0 0.0
    %860 = vmatpush2.msra.mxu0 0.0
    %861 = vmatprep.mubr.f32.mxu0 0.0
    %862 = vmatmul.mubr.f32.gmra.mxu0 %v219
    %v863 = vpop.f32.mrf.mxu0
    %v864 = vadd.f32 %v184, %v863
    %v865 = vpop.f32.mrf.mxu0
    %v866 = vadd.f32 %v184, %v865
    %867 = vmatprep.mubr.f32.mxu0 0.0
    %868 = vmatmul.mubr.f32.gmra.mxu0 %v222
    %v869 = vpop.f32.mrf.mxu0
    %v870 = vadd.f32 %v189, %v869
    %v871 = vpop.f32.mrf.mxu0
    %v872 = vadd.f32 %v189, %v871
    %873 = vmatprep.mubr.f32.mxu0 0.0
    %874 = vmatmul.mubr.f32.gmra.mxu0 %v225
    %v875 = vpop.f32.mrf.mxu0
    %v876 = vadd.f32 %v194, %v875
    %v877 = vpop.f32.mrf.mxu0
    %v878 = vadd.f32 %v194, %v877
    %879 = vmatprep.mubr.f32.mxu0 0.0
    %880 = vmatmul.mubr.f32.gmra.mxu0 %v228
    %v881 = vpop.f32.mrf.mxu0
    %v882 = vadd.f32 %v199, %v881
    %v883 = vpop.f32.mrf.mxu0
    %v884 = vadd.f32 %v199, %v883
    %885 = vdwg.mxu0
    %886 = vmatprep.subr.mxu0 0.0
    %887 = vmatpush1.msra.mxu0 0.0
    %888 = vmatprep.subr.mxu0 0.0
    %889 = vmatpush1.msra.mxu0 0.0
    %890 = vmatprep.subr.mxu0 0.0
    %891 = vmatpush1.msra.mxu0 0.0
    %892 = vmatprep.subr.mxu0 0.0
    %893 = vmatpush1.msra.mxu0 0.0
    %894 = vmatprep.subr.mxu0 0.0
    %895 = vmatpush1.msra.mxu0 0.0
    %896 = vmatprep.subr.mxu0 0.0
    %897 = vmatpush1.msra.mxu0 0.0
    %898 = vmatprep.subr.mxu0 0.0
    %899 = vmatpush1.msra.mxu0 0.0
    %900 = vmatprep.subr.mxu0 0.0
    %901 = vmatpush1.msra.mxu0 0.0
    %902 = vmatprep.subr.mxu0 0.0
    %903 = vmatpush1.msra.mxu0 0.0
    %904 = vmatprep.subr.mxu0 0.0
    %905 = vmatpush1.msra.mxu0 0.0
    %906 = vmatprep.subr.mxu0 0.0
    %907 = vmatpush1.msra.mxu0 0.0
    %908 = vmatprep.subr.mxu0 0.0
    %909 = vmatpush1.msra.mxu0 0.0
    %910 = vmatprep.subr.mxu0 0.0
    %911 = vmatpush1.msra.mxu0 0.0
    %912 = vmatprep.subr.mxu0 0.0
    %913 = vmatpush1.msra.mxu0 0.0
    %914 = vmatprep.subr.mxu0 0.0
    %915 = vmatpush1.msra.mxu0 0.0
    %916 = vmatprep.subr.mxu0 %v261
    %917 = vmatpush1.msra.mxu0 %v259
    %918 = vmatprep.subr.mxu0 0.0
    %919 = vmatpush2.msra.mxu0 0.0
    %920 = vmatprep.subr.mxu0 0.0
    %921 = vmatpush2.msra.mxu0 0.0
    %922 = vmatprep.subr.mxu0 0.0
    %923 = vmatpush2.msra.mxu0 0.0
    %924 = vmatprep.subr.mxu0 0.0
    %925 = vmatpush2.msra.mxu0 0.0
    %926 = vmatprep.subr.mxu0 0.0
    %927 = vmatpush2.msra.mxu0 0.0
    %928 = vmatprep.subr.mxu0 0.0
    %929 = vmatpush2.msra.mxu0 0.0
    %930 = vmatprep.subr.mxu0 0.0
    %931 = vmatpush2.msra.mxu0 0.0
    %932 = vmatprep.subr.mxu0 0.0
    %933 = vmatpush2.msra.mxu0 0.0
    %934 = vmatprep.subr.mxu0 0.0
    %935 = vmatpush2.msra.mxu0 0.0
    %936 = vmatprep.subr.mxu0 0.0
    %937 = vmatpush2.msra.mxu0 0.0
    %938 = vmatprep.subr.mxu0 0.0
    %939 = vmatpush2.msra.mxu0 0.0
    %940 = vmatprep.subr.mxu0 0.0
    %941 = vmatpush2.msra.mxu0 0.0
    %942 = vmatprep.subr.mxu0 0.0
    %943 = vmatpush2.msra.mxu0 0.0
    %944 = vmatprep.subr.mxu0 0.0
    %945 = vmatpush2.msra.mxu0 0.0
    %946 = vmatprep.subr.mxu0 0.0
    %947 = vmatpush2.msra.mxu0 0.0
    %948 = vmatprep.subr.mxu0 0.0
    %949 = vmatpush2.msra.mxu0 0.0
    %950 = vmatprep.mubr.f32.mxu0 0.0
    %951 = vmatmul.mubr.f32.gmra.mxu0 %v219
    %v952 = vpop.f32.mrf.mxu0
    %v953 = vadd.f32 %v184, %v952
    %v954 = vpop.f32.mrf.mxu0
    %v955 = vadd.f32 %v184, %v954
    %956 = vmatprep.mubr.f32.mxu0 0.0
    %957 = vmatmul.mubr.f32.gmra.mxu0 %v222
    %v958 = vpop.f32.mrf.mxu0
    %v959 = vadd.f32 %v189, %v958
    %v960 = vpop.f32.mrf.mxu0
    %v961 = vadd.f32 %v189, %v960
    %962 = vmatprep.mubr.f32.mxu0 0.0
    %963 = vmatmul.mubr.f32.gmra.mxu0 %v225
    %v964 = vpop.f32.mrf.mxu0
    %v965 = vadd.f32 %v194, %v964
    %v966 = vpop.f32.mrf.mxu0
    %v967 = vadd.f32 %v194, %v966
    %968 = vmatprep.mubr.f32.mxu0 0.0
    %969 = vmatmul.mubr.f32.gmra.mxu0 %v228
    %v970 = vpop.f32.mrf.mxu0
    %v971 = vadd.f32 %v199, %v970
    %v972 = vpop.f32.mrf.mxu0
    %v973 = vadd.f32 %v199, %v972
    %974 = vdwg.mxu0
    %v975 = vxor.u32 %v330, 2147483648
    %v976 = vxor.u32 %v332, 2147483648
    %v977 = vxor.u32 %v419, 2147483648
    %v978 = vxor.u32 %v421, 2147483648
    %v979 = vxor.u32 %v508, 2147483648
    %v980 = vxor.u32 %v510, 2147483648
    %v981 = vxor.u32 %v597, 2147483648
    %v982 = vxor.u32 %v599, 2147483648
    %v983 = vxor.u32 %v686, 2147483648
    %v984 = vxor.u32 %v688, 2147483648
    %v985 = vxor.u32 %v775, 2147483648
    %v986 = vxor.u32 %v777, 2147483648
    %v987 = vxor.u32 %v864, 2147483648
    %v988 = vxor.u32 %v866, 2147483648
    %v989 = vxor.u32 %v953, 2147483648
    %v990 = vxor.u32 %v955, 2147483648
    %v991 = vxor.u32 %v336, 2147483648
    %v992 = vxor.u32 %v338, 2147483648
    %v993 = vxor.u32 %v425, 2147483648
    %v994 = vxor.u32 %v427, 2147483648
    %v995 = vxor.u32 %v514, 2147483648
    %v996 = vxor.u32 %v516, 2147483648
    %v997 = vxor.u32 %v603, 2147483648
    %v998 = vxor.u32 %v605, 2147483648
    %v999 = vxor.u32 %v692, 2147483648
    %v1000 = vxor.u32 %v694, 2147483648
    %v1001 = vxor.u32 %v781, 2147483648
    %v1002 = vxor.u32 %v783, 2147483648
    %v1003 = vxor.u32 %v870, 2147483648
    %v1004 = vxor.u32 %v872, 2147483648
    %v1005 = vxor.u32 %v959, 2147483648
    %v1006 = vxor.u32 %v961, 2147483648
    %v1007 = vxor.u32 %v342, 2147483648
    %v1008 = vxor.u32 %v344, 2147483648
    %v1009 = vxor.u32 %v431, 2147483648
    %v1010 = vxor.u32 %v433, 2147483648
    %v1011 = vxor.u32 %v520, 2147483648
    %v1012 = vxor.u32 %v522, 2147483648
    %v1013 = vxor.u32 %v609, 2147483648
    %v1014 = vxor.u32 %v611, 2147483648
    %v1015 = vxor.u32 %v698, 2147483648
    %v1016 = vxor.u32 %v700, 2147483648
    %v1017 = vxor.u32 %v787, 2147483648
    %v1018 = vxor.u32 %v789, 2147483648
    %v1019 = vxor.u32 %v876, 2147483648
    %v1020 = vxor.u32 %v878, 2147483648
    %v1021 = vxor.u32 %v965, 2147483648
    %v1022 = vxor.u32 %v967, 2147483648
    %v1023 = vxor.u32 %v348, 2147483648
    %v1024 = vxor.u32 %v350, 2147483648
    %v1025 = vxor.u32 %v437, 2147483648
    %v1026 = vxor.u32 %v439, 2147483648
    %v1027 = vxor.u32 %v526, 2147483648
    %v1028 = vxor.u32 %v528, 2147483648
    %v1029 = vxor.u32 %v615, 2147483648
    %v1030 = vxor.u32 %v617, 2147483648
    %v1031 = vxor.u32 %v704, 2147483648
    %v1032 = vxor.u32 %v706, 2147483648
    %v1033 = vxor.u32 %v793, 2147483648
    %v1034 = vxor.u32 %v795, 2147483648
    %v1035 = vxor.u32 %v882, 2147483648
    %v1036 = vxor.u32 %v884, 2147483648
    %v1037 = vxor.u32 %v971, 2147483648
    %v1038 = vxor.u32 %v973, 2147483648
    %v1039 = vmul.f32 %v975, 1.442695
    %v1040 = vpow.pop %v1039
    %v1041 = vmul.f32 %v976, 1.442695
    %v1042 = vpow.pop %v1041
    %v1043 = vmul.f32 %v977, 1.442695
    %v1044 = vpow.pop %v1043
    %v1045 = vmul.f32 %v978, 1.442695
    %v1046 = vpow.pop %v1045
    %v1047 = vmul.f32 %v979, 1.442695
    %v1048 = vpow.pop %v1047
    %v1049 = vmul.f32 %v980, 1.442695
    %v1050 = vpow.pop %v1049
    %v1051 = vmul.f32 %v981, 1.442695
    %v1052 = vpow.pop %v1051
    %v1053 = vmul.f32 %v982, 1.442695
    %v1054 = vpow.pop %v1053
    %v1055 = vmul.f32 %v983, 1.442695
    %v1056 = vpow.pop %v1055
    %v1057 = vmul.f32 %v984, 1.442695
    %v1058 = vpow.pop %v1057
    %v1059 = vmul.f32 %v985, 1.442695
    %v1060 = vpow.pop %v1059
    %v1061 = vmul.f32 %v986, 1.442695
    %v1062 = vpow.pop %v1061
    %v1063 = vmul.f32 %v987, 1.442695
    %v1064 = vpow.pop %v1063
    %v1065 = vmul.f32 %v988, 1.442695
    %v1066 = vpow.pop %v1065
    %v1067 = vmul.f32 %v989, 1.442695
    %v1068 = vpow.pop %v1067
    %v1069 = vmul.f32 %v990, 1.442695
    %v1070 = vpow.pop %v1069
    %v1071 = vmul.f32 %v991, 1.442695
    %v1072 = vpow.pop %v1071
    %v1073 = vmul.f32 %v992, 1.442695
    %v1074 = vpow.pop %v1073
    %v1075 = vmul.f32 %v993, 1.442695
    %v1076 = vpow.pop %v1075
    %v1077 = vmul.f32 %v994, 1.442695
    %v1078 = vpow.pop %v1077
    %v1079 = vmul.f32 %v995, 1.442695
    %v1080 = vpow.pop %v1079
    %v1081 = vmul.f32 %v996, 1.442695
    %v1082 = vpow.pop %v1081
    %v1083 = vmul.f32 %v997, 1.442695
    %v1084 = vpow.pop %v1083
    %v1085 = vmul.f32 %v998, 1.442695
    %v1086 = vpow.pop %v1085
    %v1087 = vmul.f32 %v999, 1.442695
    %v1088 = vpow.pop %v1087
    %v1089 = vmul.f32 %v1000, 1.442695
    %v1090 = vpow.pop %v1089
    %v1091 = vmul.f32 %v1001, 1.442695
    %v1092 = vpow.pop %v1091
    %v1093 = vmul.f32 %v1002, 1.442695
    %v1094 = vpow.pop %v1093
    %v1095 = vmul.f32 %v1003, 1.442695
    %v1096 = vpow.pop %v1095
    %v1097 = vmul.f32 %v1004, 1.442695
    %v1098 = vpow.pop %v1097
    %v1099 = vmul.f32 %v1005, 1.442695
    %v1100 = vpow.pop %v1099
    %v1101 = vmul.f32 %v1006, 1.442695
    %v1102 = vpow.pop %v1101
    %v1103 = vmul.f32 %v1007, 1.442695
    %v1104 = vpow.pop %v1103
    %v1105 = vmul.f32 %v1008, 1.442695
    %v1106 = vpow.pop %v1105
    %v1107 = vmul.f32 %v1009, 1.442695
    %v1108 = vpow.pop %v1107
    %v1109 = vmul.f32 %v1010, 1.442695
    %v1110 = vpow.pop %v1109
    %v1111 = vmul.f32 %v1011, 1.442695
    %v1112 = vpow.pop %v1111
    %v1113 = vmul.f32 %v1012, 1.442695
    %v1114 = vpow.pop %v1113
    %v1115 = vmul.f32 %v1013, 1.442695
    %v1116 = vpow.pop %v1115
    %v1117 = vmul.f32 %v1014, 1.442695
    %v1118 = vpow.pop %v1117
    %v1119 = vmul.f32 %v1015, 1.442695
    %v1120 = vpow.pop %v1119
    %v1121 = vmul.f32 %v1016, 1.442695
    %v1122 = vpow.pop %v1121
    %v1123 = vmul.f32 %v1017, 1.442695
    %v1124 = vpow.pop %v1123
    %v1125 = vmul.f32 %v1018, 1.442695
    %v1126 = vpow.pop %v1125
    %v1127 = vmul.f32 %v1019, 1.442695
    %v1128 = vpow.pop %v1127
    %v1129 = vmul.f32 %v1020, 1.442695
    %v1130 = vpow.pop %v1129
    %v1131 = vmul.f32 %v1021, 1.442695
    %v1132 = vpow.pop %v1131
    %v1133 = vmul.f32 %v1022, 1.442695
    %v1134 = vpow.pop %v1133
    %v1135 = vmul.f32 %v1023, 1.442695
    %v1136 = vpow.pop %v1135
    %v1137 = vmul.f32 %v1024, 1.442695
    %v1138 = vpow.pop %v1137
    %v1139 = vmul.f32 %v1025, 1.442695
    %v1140 = vpow.pop %v1139
    %v1141 = vmul.f32 %v1026, 1.442695
    %v1142 = vpow.pop %v1141
    %v1143 = vmul.f32 %v1027, 1.442695
    %v1144 = vpow.pop %v1143
    %v1145 = vmul.f32 %v1028, 1.442695
    %v1146 = vpow.pop %v1145
    %v1147 = vmul.f32 %v1029, 1.442695
    %v1148 = vpow.pop %v1147
    %v1149 = vmul.f32 %v1030, 1.442695
    %v1150 = vpow.pop %v1149
    %v1151 = vmul.f32 %v1031, 1.442695
    %v1152 = vpow.pop %v1151
    %v1153 = vmul.f32 %v1032, 1.442695
    %v1154 = vpow.pop %v1153
    %v1155 = vmul.f32 %v1033, 1.442695
    %v1156 = vpow.pop %v1155
    %v1157 = vmul.f32 %v1034, 1.442695
    %v1158 = vpow.pop %v1157
    %v1159 = vmul.f32 %v1035, 1.442695
    %v1160 = vpow.pop %v1159
    %v1161 = vmul.f32 %v1036, 1.442695
    %v1162 = vpow.pop %v1161
    %v1163 = vmul.f32 %v1037, 1.442695
    %v1164 = vpow.pop %v1163
    %v1165 = vmul.f32 %v1038, 1.442695
    %v1166 = vpow.pop %v1165
    %v1167 = vadd.f32 %v1040, 1.0
    %v1168 = vadd.f32 %v1042, 1.0
    %v1169 = vadd.f32 %v1044, 1.0
    %v1170 = vadd.f32 %v1046, 1.0
    %v1171 = vadd.f32 %v1048, 1.0
    %v1172 = vadd.f32 %v1050, 1.0
    %v1173 = vadd.f32 %v1052, 1.0
    %v1174 = vadd.f32 %v1054, 1.0
    %v1175 = vadd.f32 %v1056, 1.0
    %v1176 = vadd.f32 %v1058, 1.0
    %v1177 = vadd.f32 %v1060, 1.0
    %v1178 = vadd.f32 %v1062, 1.0
    %v1179 = vadd.f32 %v1064, 1.0
    %v1180 = vadd.f32 %v1066, 1.0
    %v1181 = vadd.f32 %v1068, 1.0
    %v1182 = vadd.f32 %v1070, 1.0
    %v1183 = vadd.f32 %v1072, 1.0
    %v1184 = vadd.f32 %v1074, 1.0
    %v1185 = vadd.f32 %v1076, 1.0
    %v1186 = vadd.f32 %v1078, 1.0
    %v1187 = vadd.f32 %v1080, 1.0
    %v1188 = vadd.f32 %v1082, 1.0
    %v1189 = vadd.f32 %v1084, 1.0
    %v1190 = vadd.f32 %v1086, 1.0
    %v1191 = vadd.f32 %v1088, 1.0
    %v1192 = vadd.f32 %v1090, 1.0
    %v1193 = vadd.f32 %v1092, 1.0
    %v1194 = vadd.f32 %v1094, 1.0
    %v1195 = vadd.f32 %v1096, 1.0
    %v1196 = vadd.f32 %v1098, 1.0
    %v1197 = vadd.f32 %v1100, 1.0
    %v1198 = vadd.f32 %v1102, 1.0
    %v1199 = vadd.f32 %v1104, 1.0
    %v1200 = vadd.f32 %v1106, 1.0
    %v1201 = vadd.f32 %v1108, 1.0
    %v1202 = vadd.f32 %v1110, 1.0
    %v1203 = vadd.f32 %v1112, 1.0
    %v1204 = vadd.f32 %v1114, 1.0
    %v1205 = vadd.f32 %v1116, 1.0
    %v1206 = vadd.f32 %v1118, 1.0
    %v1207 = vadd.f32 %v1120, 1.0
    %v1208 = vadd.f32 %v1122, 1.0
    %v1209 = vadd.f32 %v1124, 1.0
    %v1210 = vadd.f32 %v1126, 1.0
    %v1211 = vadd.f32 %v1128, 1.0
    %v1212 = vadd.f32 %v1130, 1.0
    %v1213 = vadd.f32 %v1132, 1.0
    %v1214 = vadd.f32 %v1134, 1.0
    %v1215 = vadd.f32 %v1136, 1.0
    %v1216 = vadd.f32 %v1138, 1.0
    %v1217 = vadd.f32 %v1140, 1.0
    %v1218 = vadd.f32 %v1142, 1.0
    %v1219 = vadd.f32 %v1144, 1.0
    %v1220 = vadd.f32 %v1146, 1.0
    %v1221 = vadd.f32 %v1148, 1.0
    %v1222 = vadd.f32 %v1150, 1.0
    %v1223 = vadd.f32 %v1152, 1.0
    %v1224 = vadd.f32 %v1154, 1.0
    %v1225 = vadd.f32 %v1156, 1.0
    %v1226 = vadd.f32 %v1158, 1.0
    %v1227 = vadd.f32 %v1160, 1.0
    %v1228 = vadd.f32 %v1162, 1.0
    %v1229 = vadd.f32 %v1164, 1.0
    %v1230 = vadd.f32 %v1166, 1.0
    %v1231 = vrcp.pop %v1167
    %v1232 = vmul.f32 1.0, %v1231
    %v1233 = vrcp.pop %v1168
    %v1234 = vmul.f32 1.0, %v1233
    %v1235 = vrcp.pop %v1169
    %v1236 = vmul.f32 1.0, %v1235
    %v1237 = vrcp.pop %v1170
    %v1238 = vmul.f32 1.0, %v1237
    %v1239 = vrcp.pop %v1171
    %v1240 = vmul.f32 1.0, %v1239
    %v1241 = vrcp.pop %v1172
    %v1242 = vmul.f32 1.0, %v1241
    %v1243 = vrcp.pop %v1173
    %v1244 = vmul.f32 1.0, %v1243
    %v1245 = vrcp.pop %v1174
    %v1246 = vmul.f32 1.0, %v1245
    %v1247 = vrcp.pop %v1175
    %v1248 = vmul.f32 1.0, %v1247
    %v1249 = vrcp.pop %v1176
    %v1250 = vmul.f32 1.0, %v1249
    %v1251 = vrcp.pop %v1177
    %v1252 = vmul.f32 1.0, %v1251
    %v1253 = vrcp.pop %v1178
    %v1254 = vmul.f32 1.0, %v1253
    %v1255 = vrcp.pop %v1179
    %v1256 = vmul.f32 1.0, %v1255
    %v1257 = vrcp.pop %v1180
    %v1258 = vmul.f32 1.0, %v1257
    %v1259 = vrcp.pop %v1181
    %v1260 = vmul.f32 1.0, %v1259
    %v1261 = vrcp.pop %v1182
    %v1262 = vmul.f32 1.0, %v1261
    %v1263 = vrcp.pop %v1183
    %v1264 = vmul.f32 1.0, %v1263
    %v1265 = vrcp.pop %v1184
    %v1266 = vmul.f32 1.0, %v1265
    %v1267 = vrcp.pop %v1185
    %v1268 = vmul.f32 1.0, %v1267
    %v1269 = vrcp.pop %v1186
    %v1270 = vmul.f32 1.0, %v1269
    %v1271 = vrcp.pop %v1187
    %v1272 = vmul.f32 1.0, %v1271
    %v1273 = vrcp.pop %v1188
    %v1274 = vmul.f32 1.0, %v1273
    %v1275 = vrcp.pop %v1189
    %v1276 = vmul.f32 1.0, %v1275
    %v1277 = vrcp.pop %v1190
    %v1278 = vmul.f32 1.0, %v1277
    %v1279 = vrcp.pop %v1191
    %v1280 = vmul.f32 1.0, %v1279
    %v1281 = vrcp.pop %v1192
    %v1282 = vmul.f32 1.0, %v1281
    %v1283 = vrcp.pop %v1193
    %v1284 = vmul.f32 1.0, %v1283
    %v1285 = vrcp.pop %v1194
    %v1286 = vmul.f32 1.0, %v1285
    %v1287 = vrcp.pop %v1195
    %v1288 = vmul.f32 1.0, %v1287
    %v1289 = vrcp.pop %v1196
    %v1290 = vmul.f32 1.0, %v1289
    %v1291 = vrcp.pop %v1197
    %v1292 = vmul.f32 1.0, %v1291
    %v1293 = vrcp.pop %v1198
    %v1294 = vmul.f32 1.0, %v1293
    %v1295 = vrcp.pop %v1199
    %v1296 = vmul.f32 1.0, %v1295
    %v1297 = vrcp.pop %v1200
    %v1298 = vmul.f32 1.0, %v1297
    %v1299 = vrcp.pop %v1201
    %v1300 = vmul.f32 1.0, %v1299
    %v1301 = vrcp.pop %v1202
    %v1302 = vmul.f32 1.0, %v1301
    %v1303 = vrcp.pop %v1203
    %v1304 = vmul.f32 1.0, %v1303
    %v1305 = vrcp.pop %v1204
    %v1306 = vmul.f32 1.0, %v1305
    %v1307 = vrcp.pop %v1205
    %v1308 = vmul.f32 1.0, %v1307
    %v1309 = vrcp.pop %v1206
    %v1310 = vmul.f32 1.0, %v1309
    %v1311 = vrcp.pop %v1207
    %v1312 = vmul.f32 1.0, %v1311
    %v1313 = vrcp.pop %v1208
    %v1314 = vmul.f32 1.0, %v1313
    %v1315 = vrcp.pop %v1209
    %v1316 = vmul.f32 1.0, %v1315
    %v1317 = vrcp.pop %v1210
    %v1318 = vmul.f32 1.0, %v1317
    %v1319 = vrcp.pop %v1211
    %v1320 = vmul.f32 1.0, %v1319
    %v1321 = vrcp.pop %v1212
    %v1322 = vmul.f32 1.0, %v1321
    %v1323 = vrcp.pop %v1213
    %v1324 = vmul.f32 1.0, %v1323
    %v1325 = vrcp.pop %v1214
    %v1326 = vmul.f32 1.0, %v1325
    %v1327 = vrcp.pop %v1215
    %v1328 = vmul.f32 1.0, %v1327
    %v1329 = vrcp.pop %v1216
    %v1330 = vmul.f32 1.0, %v1329
    %v1331 = vrcp.pop %v1217
    %v1332 = vmul.f32 1.0, %v1331
    %v1333 = vrcp.pop %v1218
    %v1334 = vmul.f32 1.0, %v1333
    %v1335 = vrcp.pop %v1219
    %v1336 = vmul.f32 1.0, %v1335
    %v1337 = vrcp.pop %v1220
    %v1338 = vmul.f32 1.0, %v1337
    %v1339 = vrcp.pop %v1221
    %v1340 = vmul.f32 1.0, %v1339
    %v1341 = vrcp.pop %v1222
    %v1342 = vmul.f32 1.0, %v1341
    %v1343 = vrcp.pop %v1223
    %v1344 = vmul.f32 1.0, %v1343
    %v1345 = vrcp.pop %v1224
    %v1346 = vmul.f32 1.0, %v1345
    %v1347 = vrcp.pop %v1225
    %v1348 = vmul.f32 1.0, %v1347
    %v1349 = vrcp.pop %v1226
    %v1350 = vmul.f32 1.0, %v1349
    %v1351 = vrcp.pop %v1227
    %v1352 = vmul.f32 1.0, %v1351
    %v1353 = vrcp.pop %v1228
    %v1354 = vmul.f32 1.0, %v1353
    %v1355 = vrcp.pop %v1229
    %v1356 = vmul.f32 1.0, %v1355
    %v1357 = vrcp.pop %v1230
    %v1358 = vmul.f32 1.0, %v1357
    %v1359 = vmul.f32 %v330, %v1232
    %v1360 = vmul.f32 %v332, %v1234
    %v1361 = vmul.f32 %v419, %v1236
    %v1362 = vmul.f32 %v421, %v1238
    %v1363 = vmul.f32 %v508, %v1240
    %v1364 = vmul.f32 %v510, %v1242
    %v1365 = vmul.f32 %v597, %v1244
    %v1366 = vmul.f32 %v599, %v1246
    %v1367 = vmul.f32 %v686, %v1248
    %v1368 = vmul.f32 %v688, %v1250
    %v1369 = vmul.f32 %v775, %v1252
    %v1370 = vmul.f32 %v777, %v1254
    %v1371 = vmul.f32 %v864, %v1256
    %v1372 = vmul.f32 %v866, %v1258
    %v1373 = vmul.f32 %v953, %v1260
    %v1374 = vmul.f32 %v955, %v1262
    %v1375 = vmul.f32 %v336, %v1264
    %v1376 = vmul.f32 %v338, %v1266
    %v1377 = vmul.f32 %v425, %v1268
    %v1378 = vmul.f32 %v427, %v1270
    %v1379 = vmul.f32 %v514, %v1272
    %v1380 = vmul.f32 %v516, %v1274
    %v1381 = vmul.f32 %v603, %v1276
    %v1382 = vmul.f32 %v605, %v1278
    %v1383 = vmul.f32 %v692, %v1280
    %v1384 = vmul.f32 %v694, %v1282
    %v1385 = vmul.f32 %v781, %v1284
    %v1386 = vmul.f32 %v783, %v1286
    %v1387 = vmul.f32 %v870, %v1288
    %v1388 = vmul.f32 %v872, %v1290
    %v1389 = vmul.f32 %v959, %v1292
    %v1390 = vmul.f32 %v961, %v1294
    %v1391 = vmul.f32 %v342, %v1296
    %v1392 = vmul.f32 %v344, %v1298
    %v1393 = vmul.f32 %v431, %v1300
    %v1394 = vmul.f32 %v433, %v1302
    %v1395 = vmul.f32 %v520, %v1304
    %v1396 = vmul.f32 %v522, %v1306
    %v1397 = vmul.f32 %v609, %v1308
    %v1398 = vmul.f32 %v611, %v1310
    %v1399 = vmul.f32 %v698, %v1312
    %v1400 = vmul.f32 %v700, %v1314
    %v1401 = vmul.f32 %v787, %v1316
    %v1402 = vmul.f32 %v789, %v1318
    %v1403 = vmul.f32 %v876, %v1320
    %v1404 = vmul.f32 %v878, %v1322
    %v1405 = vmul.f32 %v965, %v1324
    %v1406 = vmul.f32 %v967, %v1326
    %v1407 = vmul.f32 %v348, %v1328
    %v1408 = vmul.f32 %v350, %v1330
    %v1409 = vmul.f32 %v437, %v1332
    %v1410 = vmul.f32 %v439, %v1334
    %v1411 = vmul.f32 %v526, %v1336
    %v1412 = vmul.f32 %v528, %v1338
    %v1413 = vmul.f32 %v615, %v1340
    %v1414 = vmul.f32 %v617, %v1342
    %v1415 = vmul.f32 %v704, %v1344
    %v1416 = vmul.f32 %v706, %v1346
    %v1417 = vmul.f32 %v793, %v1348
    %v1418 = vmul.f32 %v795, %v1350
    %v1419 = vmul.f32 %v882, %v1352
    %v1420 = vmul.f32 %v884, %v1354
    %v1421 = vmul.f32 %v971, %v1356
    %v1422 = vmul.f32 %v973, %v1358
    %v1423 = vld [vmem:[%s5] sm:$0xff]
    %v1424 = vld [vmem:[%s5 + $0x8] sm:$0xff]
    %v1425 = vld [vmem:[%s5 + $0x10] sm:$0xff]
    %v1426 = vld [vmem:[%s5 + $0x18] sm:$0xff]
    %v1427 = vld [vmem:[%s6] sm:$0xff]
    %v1428 = vld [vmem:[%s6 + $0x8] sm:$0xff]
    %v1429 = vld [vmem:[%s6 + $0x10] sm:$0xff]
    %v1430 = vld [vmem:[%s6 + $0x18] sm:$0xff]
    %1432 = vset.pattern.permute.xlu0 0
    %1433 = vperm.xlu0 %1432, %v1427
    %v1434 = vpop.permute.xlu0 %1433
    %1437 = vset.pattern.permute.xlu0 0
    %1438 = vperm.xlu0 %1437, %v1428
    %v1439 = vpop.permute.xlu0 %1438
    %1442 = vset.pattern.permute.xlu0 0
    %1443 = vperm.xlu0 %1442, %v1429
    %v1444 = vpop.permute.xlu0 %1443
    %1447 = vset.pattern.permute.xlu0 0
    %1448 = vperm.xlu0 %1447, %v1430
    %v1449 = vpop.permute.xlu0 %1448
    %vm1451 = vcmask 261120
    %v1453 = vsel %vm1451, %v1423, 0
    %v1456 = vsel %vm1451, %v1424, 0
    %v1459 = vsel %vm1451, %v1425, 0
    %v1462 = vsel %vm1451, %v1426, 0
    %1464 = vmatprep.subr.mxu0 0.0
    %1465 = vmatpush1.msra.mxu0 0.0
    %1466 = vmatprep.subr.mxu0 0.0
    %1467 = vmatpush1.msra.mxu0 0.0
    %1468 = vmatprep.subr.mxu0 0.0
    %1469 = vmatpush1.msra.mxu0 0.0
    %1470 = vmatprep.subr.mxu0 0.0
    %1471 = vmatpush1.msra.mxu0 0.0
    %1472 = vmatprep.subr.mxu0 0.0
    %1473 = vmatpush1.msra.mxu0 0.0
    %1474 = vmatprep.subr.mxu0 0.0
    %1475 = vmatpush1.msra.mxu0 0.0
    %1476 = vmatprep.subr.mxu0 0.0
    %1477 = vmatpush1.msra.mxu0 0.0
    %1478 = vmatprep.subr.mxu0 0.0
    %1479 = vmatpush1.msra.mxu0 0.0
    %1480 = vmatprep.subr.mxu0 0.0
    %1481 = vmatpush1.msra.mxu0 0.0
    %1482 = vmatprep.subr.mxu0 0.0
    %1483 = vmatpush1.msra.mxu0 0.0
    %1484 = vmatprep.subr.mxu0 0.0
    %1485 = vmatpush1.msra.mxu0 0.0
    %1486 = vmatprep.subr.mxu0 0.0
    %1487 = vmatpush1.msra.mxu0 0.0
    %1488 = vmatprep.subr.mxu0 %v1408
    %1489 = vmatpush1.msra.mxu0 %v1407
    %1490 = vmatprep.subr.mxu0 %v1392
    %1491 = vmatpush1.msra.mxu0 %v1391
    %1492 = vmatprep.subr.mxu0 %v1376
    %1493 = vmatpush1.msra.mxu0 %v1375
    %1494 = vmatprep.subr.mxu0 %v1360
    %1495 = vmatpush1.msra.mxu0 %v1359
    %1496 = vmatprep.subr.mxu0 0.0
    %1497 = vmatpush2.msra.mxu0 0.0
    %1498 = vmatprep.subr.mxu0 0.0
    %1499 = vmatpush2.msra.mxu0 0.0
    %1500 = vmatprep.subr.mxu0 0.0
    %1501 = vmatpush2.msra.mxu0 0.0
    %1502 = vmatprep.subr.mxu0 0.0
    %1503 = vmatpush2.msra.mxu0 0.0
    %1504 = vmatprep.subr.mxu0 0.0
    %1505 = vmatpush2.msra.mxu0 0.0
    %1506 = vmatprep.subr.mxu0 0.0
    %1507 = vmatpush2.msra.mxu0 0.0
    %1508 = vmatprep.subr.mxu0 0.0
    %1509 = vmatpush2.msra.mxu0 0.0
    %1510 = vmatprep.subr.mxu0 0.0
    %1511 = vmatpush2.msra.mxu0 0.0
    %1512 = vmatprep.subr.mxu0 0.0
    %1513 = vmatpush2.msra.mxu0 0.0
    %1514 = vmatprep.subr.mxu0 0.0
    %1515 = vmatpush2.msra.mxu0 0.0
    %1516 = vmatprep.subr.mxu0 0.0
    %1517 = vmatpush2.msra.mxu0 0.0
    %1518 = vmatprep.subr.mxu0 0.0
    %1519 = vmatpush2.msra.mxu0 0.0
    %1520 = vmatprep.subr.mxu0 0.0
    %1521 = vmatpush2.msra.mxu0 0.0
    %1522 = vmatprep.subr.mxu0 0.0
    %1523 = vmatpush2.msra.mxu0 0.0
    %1524 = vmatprep.subr.mxu0 0.0
    %1525 = vmatpush2.msra.mxu0 0.0
    %1526 = vmatprep.subr.mxu0 0.0
    %1527 = vmatpush2.msra.mxu0 0.0
    %1528 = vmatprep.mubr.f32.mxu0 0.0
    %1529 = vmatmul.mubr.f32.gmra.mxu0 %v1453
    %v1530 = vpop.f32.mrf.mxu0
    %v1531 = vadd.f32 %v1434, %v1530
    %v1532 = vpop.f32.mrf.mxu0
    %v1533 = vadd.f32 %v1434, %v1532
    %1534 = vmatprep.mubr.f32.mxu0 0.0
    %1535 = vmatmul.mubr.f32.gmra.mxu0 %v1456
    %v1536 = vpop.f32.mrf.mxu0
    %v1537 = vadd.f32 %v1439, %v1536
    %v1538 = vpop.f32.mrf.mxu0
    %v1539 = vadd.f32 %v1439, %v1538
    %1540 = vmatprep.mubr.f32.mxu0 0.0
    %1541 = vmatmul.mubr.f32.gmra.mxu0 %v1459
    %v1542 = vpop.f32.mrf.mxu0
    %v1543 = vadd.f32 %v1444, %v1542
    %v1544 = vpop.f32.mrf.mxu0
    %v1545 = vadd.f32 %v1444, %v1544
    %1546 = vmatprep.mubr.f32.mxu0 0.0
    %1547 = vmatmul.mubr.f32.gmra.mxu0 %v1462
    %v1548 = vpop.f32.mrf.mxu0
    %v1549 = vadd.f32 %v1449, %v1548
    %v1550 = vpop.f32.mrf.mxu0
    %v1551 = vadd.f32 %v1449, %v1550
    %1552 = vdwg.mxu0
    %1553 = vmatprep.subr.mxu0 0.0
    %1554 = vmatpush1.msra.mxu0 0.0
    %1555 = vmatprep.subr.mxu0 0.0
    %1556 = vmatpush1.msra.mxu0 0.0
    %1557 = vmatprep.subr.mxu0 0.0
    %1558 = vmatpush1.msra.mxu0 0.0
    %1559 = vmatprep.subr.mxu0 0.0
    %1560 = vmatpush1.msra.mxu0 0.0
    %1561 = vmatprep.subr.mxu0 0.0
    %1562 = vmatpush1.msra.mxu0 0.0
    %1563 = vmatprep.subr.mxu0 0.0
    %1564 = vmatpush1.msra.mxu0 0.0
    %1565 = vmatprep.subr.mxu0 0.0
    %1566 = vmatpush1.msra.mxu0 0.0
    %1567 = vmatprep.subr.mxu0 0.0
    %1568 = vmatpush1.msra.mxu0 0.0
    %1569 = vmatprep.subr.mxu0 0.0
    %1570 = vmatpush1.msra.mxu0 0.0
    %1571 = vmatprep.subr.mxu0 0.0
    %1572 = vmatpush1.msra.mxu0 0.0
    %1573 = vmatprep.subr.mxu0 0.0
    %1574 = vmatpush1.msra.mxu0 0.0
    %1575 = vmatprep.subr.mxu0 0.0
    %1576 = vmatpush1.msra.mxu0 0.0
    %1577 = vmatprep.subr.mxu0 %v1410
    %1578 = vmatpush1.msra.mxu0 %v1409
    %1579 = vmatprep.subr.mxu0 %v1394
    %1580 = vmatpush1.msra.mxu0 %v1393
    %1581 = vmatprep.subr.mxu0 %v1378
    %1582 = vmatpush1.msra.mxu0 %v1377
    %1583 = vmatprep.subr.mxu0 %v1362
    %1584 = vmatpush1.msra.mxu0 %v1361
    %1585 = vmatprep.subr.mxu0 0.0
    %1586 = vmatpush2.msra.mxu0 0.0
    %1587 = vmatprep.subr.mxu0 0.0
    %1588 = vmatpush2.msra.mxu0 0.0
    %1589 = vmatprep.subr.mxu0 0.0
    %1590 = vmatpush2.msra.mxu0 0.0
    %1591 = vmatprep.subr.mxu0 0.0
    %1592 = vmatpush2.msra.mxu0 0.0
    %1593 = vmatprep.subr.mxu0 0.0
    %1594 = vmatpush2.msra.mxu0 0.0
    %1595 = vmatprep.subr.mxu0 0.0
    %1596 = vmatpush2.msra.mxu0 0.0
    %1597 = vmatprep.subr.mxu0 0.0
    %1598 = vmatpush2.msra.mxu0 0.0
    %1599 = vmatprep.subr.mxu0 0.0
    %1600 = vmatpush2.msra.mxu0 0.0
    %1601 = vmatprep.subr.mxu0 0.0
    %1602 = vmatpush2.msra.mxu0 0.0
    %1603 = vmatprep.subr.mxu0 0.0
    %1604 = vmatpush2.msra.mxu0 0.0
    %1605 = vmatprep.subr.mxu0 0.0
    %1606 = vmatpush2.msra.mxu0 0.0
    %1607 = vmatprep.subr.mxu0 0.0
    %1608 = vmatpush2.msra.mxu0 0.0
    %1609 = vmatprep.subr.mxu0 0.0
    %1610 = vmatpush2.msra.mxu0 0.0
    %1611 = vmatprep.subr.mxu0 0.0
    %1612 = vmatpush2.msra.mxu0 0.0
    %1613 = vmatprep.subr.mxu0 0.0
    %1614 = vmatpush2.msra.mxu0 0.0
    %1615 = vmatprep.subr.mxu0 0.0
    %1616 = vmatpush2.msra.mxu0 0.0
    %1617 = vmatprep.mubr.f32.mxu0 0.0
    %1618 = vmatmul.mubr.f32.gmra.mxu0 %v1453
    %v1619 = vpop.f32.mrf.mxu0
    %v1620 = vadd.f32 %v1434, %v1619
    %v1621 = vpop.f32.mrf.mxu0
    %v1622 = vadd.f32 %v1434, %v1621
    %1623 = vmatprep.mubr.f32.mxu0 0.0
    %1624 = vmatmul.mubr.f32.gmra.mxu0 %v1456
    %v1625 = vpop.f32.mrf.mxu0
    %v1626 = vadd.f32 %v1439, %v1625
    %v1627 = vpop.f32.mrf.mxu0
    %v1628 = vadd.f32 %v1439, %v1627
    %1629 = vmatprep.mubr.f32.mxu0 0.0
    %1630 = vmatmul.mubr.f32.gmra.mxu0 %v1459
    %v1631 = vpop.f32.mrf.mxu0
    %v1632 = vadd.f32 %v1444, %v1631
    %v1633 = vpop.f32.mrf.mxu0
    %v1634 = vadd.f32 %v1444, %v1633
    %1635 = vmatprep.mubr.f32.mxu0 0.0
    %1636 = vmatmul.mubr.f32.gmra.mxu0 %v1462
    %v1637 = vpop.f32.mrf.mxu0
    %v1638 = vadd.f32 %v1449, %v1637
    %v1639 = vpop.f32.mrf.mxu0
    %v1640 = vadd.f32 %v1449, %v1639
    %1641 = vdwg.mxu0
    %1642 = vmatprep.subr.mxu0 0.0
    %1643 = vmatpush1.msra.mxu0 0.0
    %1644 = vmatprep.subr.mxu0 0.0
    %1645 = vmatpush1.msra.mxu0 0.0
    %1646 = vmatprep.subr.mxu0 0.0
    %1647 = vmatpush1.msra.mxu0 0.0
    %1648 = vmatprep.subr.mxu0 0.0
    %1649 = vmatpush1.msra.mxu0 0.0
    %1650 = vmatprep.subr.mxu0 0.0
    %1651 = vmatpush1.msra.mxu0 0.0
    %1652 = vmatprep.subr.mxu0 0.0
    %1653 = vmatpush1.msra.mxu0 0.0
    %1654 = vmatprep.subr.mxu0 0.0
    %1655 = vmatpush1.msra.mxu0 0.0
    %1656 = vmatprep.subr.mxu0 0.0
    %1657 = vmatpush1.msra.mxu0 0.0
    %1658 = vmatprep.subr.mxu0 0.0
    %1659 = vmatpush1.msra.mxu0 0.0
    %1660 = vmatprep.subr.mxu0 0.0
    %1661 = vmatpush1.msra.mxu0 0.0
    %1662 = vmatprep.subr.mxu0 0.0
    %1663 = vmatpush1.msra.mxu0 0.0
    %1664 = vmatprep.subr.mxu0 0.0
    %1665 = vmatpush1.msra.mxu0 0.0
    %1666 = vmatprep.subr.mxu0 %v1412
    %1667 = vmatpush1.msra.mxu0 %v1411
    %1668 = vmatprep.subr.mxu0 %v1396
    %1669 = vmatpush1.msra.mxu0 %v1395
    %1670 = vmatprep.subr.mxu0 %v1380
    %1671 = vmatpush1.msra.mxu0 %v1379
    %1672 = vmatprep.subr.mxu0 %v1364
    %1673 = vmatpush1.msra.mxu0 %v1363
    %1674 = vmatprep.subr.mxu0 0.0
    %1675 = vmatpush2.msra.mxu0 0.0
    %1676 = vmatprep.subr.mxu0 0.0
    %1677 = vmatpush2.msra.mxu0 0.0
    %1678 = vmatprep.subr.mxu0 0.0
    %1679 = vmatpush2.msra.mxu0 0.0
    %1680 = vmatprep.subr.mxu0 0.0
    %1681 = vmatpush2.msra.mxu0 0.0
    %1682 = vmatprep.subr.mxu0 0.0
    %1683 = vmatpush2.msra.mxu0 0.0
    %1684 = vmatprep.subr.mxu0 0.0
    %1685 = vmatpush2.msra.mxu0 0.0
    %1686 = vmatprep.subr.mxu0 0.0
    %1687 = vmatpush2.msra.mxu0 0.0
    %1688 = vmatprep.subr.mxu0 0.0
    %1689 = vmatpush2.msra.mxu0 0.0
    %1690 = vmatprep.subr.mxu0 0.0
    %1691 = vmatpush2.msra.mxu0 0.0
    %1692 = vmatprep.subr.mxu0 0.0
    %1693 = vmatpush2.msra.mxu0 0.0
    %1694 = vmatprep.subr.mxu0 0.0
    %1695 = vmatpush2.msra.mxu0 0.0
    %1696 = vmatprep.subr.mxu0 0.0
    %1697 = vmatpush2.msra.mxu0 0.0
    %1698 = vmatprep.subr.mxu0 0.0
    %1699 = vmatpush2.msra.mxu0 0.0
    %1700 = vmatprep.subr.mxu0 0.0
    %1701 = vmatpush2.msra.mxu0 0.0
    %1702 = vmatprep.subr.mxu0 0.0
    %1703 = vmatpush2.msra.mxu0 0.0
    %1704 = vmatprep.subr.mxu0 0.0
    %1705 = vmatpush2.msra.mxu0 0.0
    %1706 = vmatprep.mubr.f32.mxu0 0.0
    %1707 = vmatmul.mubr.f32.gmra.mxu0 %v1453
    %v1708 = vpop.f32.mrf.mxu0
    %v1709 = vadd.f32 %v1434, %v1708
    %v1710 = vpop.f32.mrf.mxu0
    %v1711 = vadd.f32 %v1434, %v1710
    %1712 = vmatprep.mubr.f32.mxu0 0.0
    %1713 = vmatmul.mubr.f32.gmra.mxu0 %v1456
    %v1714 = vpop.f32.mrf.mxu0
    %v1715 = vadd.f32 %v1439, %v1714
    %v1716 = vpop.f32.mrf.mxu0
    %v1717 = vadd.f32 %v1439, %v1716
    %1718 = vmatprep.mubr.f32.mxu0 0.0
    %1719 = vmatmul.mubr.f32.gmra.mxu0 %v1459
    %v1720 = vpop.f32.mrf.mxu0
    %v1721 = vadd.f32 %v1444, %v1720
    %v1722 = vpop.f32.mrf.mxu0
    %v1723 = vadd.f32 %v1444, %v1722
    %1724 = vmatprep.mubr.f32.mxu0 0.0
    %1725 = vmatmul.mubr.f32.gmra.mxu0 %v1462
    %v1726 = vpop.f32.mrf.mxu0
    %v1727 = vadd.f32 %v1449, %v1726
    %v1728 = vpop.f32.mrf.mxu0
    %v1729 = vadd.f32 %v1449, %v1728
    %1730 = vdwg.mxu0
    %1731 = vmatprep.subr.mxu0 0.0
    %1732 = vmatpush1.msra.mxu0 0.0
    %1733 = vmatprep.subr.mxu0 0.0
    %1734 = vmatpush1.msra.mxu0 0.0
    %1735 = vmatprep.subr.mxu0 0.0
    %1736 = vmatpush1.msra.mxu0 0.0
    %1737 = vmatprep.subr.mxu0 0.0
    %1738 = vmatpush1.msra.mxu0 0.0
    %1739 = vmatprep.subr.mxu0 0.0
    %1740 = vmatpush1.msra.mxu0 0.0
    %1741 = vmatprep.subr.mxu0 0.0
    %1742 = vmatpush1.msra.mxu0 0.0
    %1743 = vmatprep.subr.mxu0 0.0
    %1744 = vmatpush1.msra.mxu0 0.0
    %1745 = vmatprep.subr.mxu0 0.0
    %1746 = vmatpush1.msra.mxu0 0.0
    %1747 = vmatprep.subr.mxu0 0.0
    %1748 = vmatpush1.msra.mxu0 0.0
    %1749 = vmatprep.subr.mxu0 0.0
    %1750 = vmatpush1.msra.mxu0 0.0
    %1751 = vmatprep.subr.mxu0 0.0
    %1752 = vmatpush1.msra.mxu0 0.0
    %1753 = vmatprep.subr.mxu0 0.0
    %1754 = vmatpush1.msra.mxu0 0.0
    %1755 = vmatprep.subr.mxu0 %v1414
    %1756 = vmatpush1.msra.mxu0 %v1413
    %1757 = vmatprep.subr.mxu0 %v1398
    %1758 = vmatpush1.msra.mxu0 %v1397
    %1759 = vmatprep.subr.mxu0 %v1382
    %1760 = vmatpush1.msra.mxu0 %v1381
    %1761 = vmatprep.subr.mxu0 %v1366
    %1762 = vmatpush1.msra.mxu0 %v1365
    %1763 = vmatprep.subr.mxu0 0.0
    %1764 = vmatpush2.msra.mxu0 0.0
    %1765 = vmatprep.subr.mxu0 0.0
    %1766 = vmatpush2.msra.mxu0 0.0
    %1767 = vmatprep.subr.mxu0 0.0
    %1768 = vmatpush2.msra.mxu0 0.0
    %1769 = vmatprep.subr.mxu0 0.0
    %1770 = vmatpush2.msra.mxu0 0.0
    %1771 = vmatprep.subr.mxu0 0.0
    %1772 = vmatpush2.msra.mxu0 0.0
    %1773 = vmatprep.subr.mxu0 0.0
    %1774 = vmatpush2.msra.mxu0 0.0
    %1775 = vmatprep.subr.mxu0 0.0
    %1776 = vmatpush2.msra.mxu0 0.0
    %1777 = vmatprep.subr.mxu0 0.0
    %1778 = vmatpush2.msra.mxu0 0.0
    %1779 = vmatprep.subr.mxu0 0.0
    %1780 = vmatpush2.msra.mxu0 0.0
    %1781 = vmatprep.subr.mxu0 0.0
    %1782 = vmatpush2.msra.mxu0 0.0
    %1783 = vmatprep.subr.mxu0 0.0
    %1784 = vmatpush2.msra.mxu0 0.0
    %1785 = vmatprep.subr.mxu0 0.0
    %1786 = vmatpush2.msra.mxu0 0.0
    %1787 = vmatprep.subr.mxu0 0.0
    %1788 = vmatpush2.msra.mxu0 0.0
    %1789 = vmatprep.subr.mxu0 0.0
    %1790 = vmatpush2.msra.mxu0 0.0
    %1791 = vmatprep.subr.mxu0 0.0
    %1792 = vmatpush2.msra.mxu0 0.0
    %1793 = vmatprep.subr.mxu0 0.0
    %1794 = vmatpush2.msra.mxu0 0.0
    %1795 = vmatprep.mubr.f32.mxu0 0.0
    %1796 = vmatmul.mubr.f32.gmra.mxu0 %v1453
    %v1797 = vpop.f32.mrf.mxu0
    %v1798 = vadd.f32 %v1434, %v1797
    %v1799 = vpop.f32.mrf.mxu0
    %v1800 = vadd.f32 %v1434, %v1799
    %1801 = vmatprep.mubr.f32.mxu0 0.0
    %1802 = vmatmul.mubr.f32.gmra.mxu0 %v1456
    %v1803 = vpop.f32.mrf.mxu0
    %v1804 = vadd.f32 %v1439, %v1803
    %v1805 = vpop.f32.mrf.mxu0
    %v1806 = vadd.f32 %v1439, %v1805
    %1807 = vmatprep.mubr.f32.mxu0 0.0
    %1808 = vmatmul.mubr.f32.gmra.mxu0 %v1459
    %v1809 = vpop.f32.mrf.mxu0
    %v1810 = vadd.f32 %v1444, %v1809
    %v1811 = vpop.f32.mrf.mxu0
    %v1812 = vadd.f32 %v1444, %v1811
    %1813 = vmatprep.mubr.f32.mxu0 0.0
    %1814 = vmatmul.mubr.f32.gmra.mxu0 %v1462
    %v1815 = vpop.f32.mrf.mxu0
    %v1816 = vadd.f32 %v1449, %v1815
    %v1817 = vpop.f32.mrf.mxu0
    %v1818 = vadd.f32 %v1449, %v1817
    %1819 = vdwg.mxu0
    %1820 = vmatprep.subr.mxu0 0.0
    %1821 = vmatpush1.msra.mxu0 0.0
    %1822 = vmatprep.subr.mxu0 0.0
    %1823 = vmatpush1.msra.mxu0 0.0
    %1824 = vmatprep.subr.mxu0 0.0
    %1825 = vmatpush1.msra.mxu0 0.0
    %1826 = vmatprep.subr.mxu0 0.0
    %1827 = vmatpush1.msra.mxu0 0.0
    %1828 = vmatprep.subr.mxu0 0.0
    %1829 = vmatpush1.msra.mxu0 0.0
    %1830 = vmatprep.subr.mxu0 0.0
    %1831 = vmatpush1.msra.mxu0 0.0
    %1832 = vmatprep.subr.mxu0 0.0
    %1833 = vmatpush1.msra.mxu0 0.0
    %1834 = vmatprep.subr.mxu0 0.0
    %1835 = vmatpush1.msra.mxu0 0.0
    %1836 = vmatprep.subr.mxu0 0.0
    %1837 = vmatpush1.msra.mxu0 0.0
    %1838 = vmatprep.subr.mxu0 0.0
    %1839 = vmatpush1.msra.mxu0 0.0
    %1840 = vmatprep.subr.mxu0 0.0
    %1841 = vmatpush1.msra.mxu0 0.0
    %1842 = vmatprep.subr.mxu0 0.0
    %1843 = vmatpush1.msra.mxu0 0.0
    %1844 = vmatprep.subr.mxu0 %v1416
    %1845 = vmatpush1.msra.mxu0 %v1415
    %1846 = vmatprep.subr.mxu0 %v1400
    %1847 = vmatpush1.msra.mxu0 %v1399
    %1848 = vmatprep.subr.mxu0 %v1384
    %1849 = vmatpush1.msra.mxu0 %v1383
    %1850 = vmatprep.subr.mxu0 %v1368
    %1851 = vmatpush1.msra.mxu0 %v1367
    %1852 = vmatprep.subr.mxu0 0.0
    %1853 = vmatpush2.msra.mxu0 0.0
    %1854 = vmatprep.subr.mxu0 0.0
    %1855 = vmatpush2.msra.mxu0 0.0
    %1856 = vmatprep.subr.mxu0 0.0
    %1857 = vmatpush2.msra.mxu0 0.0
    %1858 = vmatprep.subr.mxu0 0.0
    %1859 = vmatpush2.msra.mxu0 0.0
    %1860 = vmatprep.subr.mxu0 0.0
    %1861 = vmatpush2.msra.mxu0 0.0
    %1862 = vmatprep.subr.mxu0 0.0
    %1863 = vmatpush2.msra.mxu0 0.0
    %1864 = vmatprep.subr.mxu0 0.0
    %1865 = vmatpush2.msra.mxu0 0.0
    %1866 = vmatprep.subr.mxu0 0.0
    %1867 = vmatpush2.msra.mxu0 0.0
    %1868 = vmatprep.subr.mxu0 0.0
    %1869 = vmatpush2.msra.mxu0 0.0
    %1870 = vmatprep.subr.mxu0 0.0
    %1871 = vmatpush2.msra.mxu0 0.0
    %1872 = vmatprep.subr.mxu0 0.0
    %1873 = vmatpush2.msra.mxu0 0.0
    %1874 = vmatprep.subr.mxu0 0.0
    %1875 = vmatpush2.msra.mxu0 0.0
    %1876 = vmatprep.subr.mxu0 0.0
    %1877 = vmatpush2.msra.mxu0 0.0
    %1878 = vmatprep.subr.mxu0 0.0
    %1879 = vmatpush2.msra.mxu0 0.0
    %1880 = vmatprep.subr.mxu0 0.0
    %1881 = vmatpush2.msra.mxu0 0.0
    %1882 = vmatprep.subr.mxu0 0.0
    %1883 = vmatpush2.msra.mxu0 0.0
    %1884 = vmatprep.mubr.f32.mxu0 0.0
    %1885 = vmatmul.mubr.f32.gmra.mxu0 %v1453
    %v1886 = vpop.f32.mrf.mxu0
    %v1887 = vadd.f32 %v1434, %v1886
    %v1888 = vpop.f32.mrf.mxu0
    %v1889 = vadd.f32 %v1434, %v1888
    %1890 = vmatprep.mubr.f32.mxu0 0.0
    %1891 = vmatmul.mubr.f32.gmra.mxu0 %v1456
    %v1892 = vpop.f32.mrf.mxu0
    %v1893 = vadd.f32 %v1439, %v1892
    %v1894 = vpop.f32.mrf.mxu0
    %v1895 = vadd.f32 %v1439, %v1894
    %1896 = vmatprep.mubr.f32.mxu0 0.0
    %1897 = vmatmul.mubr.f32.gmra.mxu0 %v1459
    %v1898 = vpop.f32.mrf.mxu0
    %v1899 = vadd.f32 %v1444, %v1898
    %v1900 = vpop.f32.mrf.mxu0
    %v1901 = vadd.f32 %v1444, %v1900
    %1902 = vmatprep.mubr.f32.mxu0 0.0
    %1903 = vmatmul.mubr.f32.gmra.mxu0 %v1462
    %v1904 = vpop.f32.mrf.mxu0
    %v1905 = vadd.f32 %v1449, %v1904
    %v1906 = vpop.f32.mrf.mxu0
    %v1907 = vadd.f32 %v1449, %v1906
    %1908 = vdwg.mxu0
    %1909 = vmatprep.subr.mxu0 0.0
    %1910 = vmatpush1.msra.mxu0 0.0
    %1911 = vmatprep.subr.mxu0 0.0
    %1912 = vmatpush1.msra.mxu0 0.0
    %1913 = vmatprep.subr.mxu0 0.0
    %1914 = vmatpush1.msra.mxu0 0.0
    %1915 = vmatprep.subr.mxu0 0.0
    %1916 = vmatpush1.msra.mxu0 0.0
    %1917 = vmatprep.subr.mxu0 0.0
    %1918 = vmatpush1.msra.mxu0 0.0
    %1919 = vmatprep.subr.mxu0 0.0
    %1920 = vmatpush1.msra.mxu0 0.0
    %1921 = vmatprep.subr.mxu0 0.0
    %1922 = vmatpush1.msra.mxu0 0.0
    %1923 = vmatprep.subr.mxu0 0.0
    %1924 = vmatpush1.msra.mxu0 0.0
    %1925 = vmatprep.subr.mxu0 0.0
    %1926 = vmatpush1.msra.mxu0 0.0
    %1927 = vmatprep.subr.mxu0 0.0
    %1928 = vmatpush1.msra.mxu0 0.0
    %1929 = vmatprep.subr.mxu0 0.0
    %1930 = vmatpush1.msra.mxu0 0.0
    %1931 = vmatprep.subr.mxu0 0.0
    %1932 = vmatpush1.msra.mxu0 0.0
    %1933 = vmatprep.subr.mxu0 %v1418
    %1934 = vmatpush1.msra.mxu0 %v1417
    %1935 = vmatprep.subr.mxu0 %v1402
    %1936 = vmatpush1.msra.mxu0 %v1401
    %1937 = vmatprep.subr.mxu0 %v1386
    %1938 = vmatpush1.msra.mxu0 %v1385
    %1939 = vmatprep.subr.mxu0 %v1370
    %1940 = vmatpush1.msra.mxu0 %v1369
    %1941 = vmatprep.subr.mxu0 0.0
    %1942 = vmatpush2.msra.mxu0 0.0
    %1943 = vmatprep.subr.mxu0 0.0
    %1944 = vmatpush2.msra.mxu0 0.0
    %1945 = vmatprep.subr.mxu0 0.0
    %1946 = vmatpush2.msra.mxu0 0.0
    %1947 = vmatprep.subr.mxu0 0.0
    %1948 = vmatpush2.msra.mxu0 0.0
    %1949 = vmatprep.subr.mxu0 0.0
    %1950 = vmatpush2.msra.mxu0 0.0
    %1951 = vmatprep.subr.mxu0 0.0
    %1952 = vmatpush2.msra.mxu0 0.0
    %1953 = vmatprep.subr.mxu0 0.0
    %1954 = vmatpush2.msra.mxu0 0.0
    %1955 = vmatprep.subr.mxu0 0.0
    %1956 = vmatpush2.msra.mxu0 0.0
    %1957 = vmatprep.subr.mxu0 0.0
    %1958 = vmatpush2.msra.mxu0 0.0
    %1959 = vmatprep.subr.mxu0 0.0
    %1960 = vmatpush2.msra.mxu0 0.0
    %1961 = vmatprep.subr.mxu0 0.0
    %1962 = vmatpush2.msra.mxu0 0.0
    %1963 = vmatprep.subr.mxu0 0.0
    %1964 = vmatpush2.msra.mxu0 0.0
    %1965 = vmatprep.subr.mxu0 0.0
    %1966 = vmatpush2.msra.mxu0 0.0
    %1967 = vmatprep.subr.mxu0 0.0
    %1968 = vmatpush2.msra.mxu0 0.0
    %1969 = vmatprep.subr.mxu0 0.0
    %1970 = vmatpush2.msra.mxu0 0.0
    %1971 = vmatprep.subr.mxu0 0.0
    %1972 = vmatpush2.msra.mxu0 0.0
    %1973 = vmatprep.mubr.f32.mxu0 0.0
    %1974 = vmatmul.mubr.f32.gmra.mxu0 %v1453
    %v1975 = vpop.f32.mrf.mxu0
    %v1976 = vadd.f32 %v1434, %v1975
    %v1977 = vpop.f32.mrf.mxu0
    %v1978 = vadd.f32 %v1434, %v1977
    %1979 = vmatprep.mubr.f32.mxu0 0.0
    %1980 = vmatmul.mubr.f32.gmra.mxu0 %v1456
    %v1981 = vpop.f32.mrf.mxu0
    %v1982 = vadd.f32 %v1439, %v1981
    %v1983 = vpop.f32.mrf.mxu0
    %v1984 = vadd.f32 %v1439, %v1983
    %1985 = vmatprep.mubr.f32.mxu0 0.0
    %1986 = vmatmul.mubr.f32.gmra.mxu0 %v1459
    %v1987 = vpop.f32.mrf.mxu0
    %v1988 = vadd.f32 %v1444, %v1987
    %v1989 = vpop.f32.mrf.mxu0
    %v1990 = vadd.f32 %v1444, %v1989
    %1991 = vmatprep.mubr.f32.mxu0 0.0
    %1992 = vmatmul.mubr.f32.gmra.mxu0 %v1462
    %v1993 = vpop.f32.mrf.mxu0
    %v1994 = vadd.f32 %v1449, %v1993
    %v1995 = vpop.f32.mrf.mxu0
    %v1996 = vadd.f32 %v1449, %v1995
    %1997 = vdwg.mxu0
    %1998 = vmatprep.subr.mxu0 0.0
    %1999 = vmatpush1.msra.mxu0 0.0
    %2000 = vmatprep.subr.mxu0 0.0
    %2001 = vmatpush1.msra.mxu0 0.0
    %2002 = vmatprep.subr.mxu0 0.0
    %2003 = vmatpush1.msra.mxu0 0.0
    %2004 = vmatprep.subr.mxu0 0.0
    %2005 = vmatpush1.msra.mxu0 0.0
    %2006 = vmatprep.subr.mxu0 0.0
    %2007 = vmatpush1.msra.mxu0 0.0
    %2008 = vmatprep.subr.mxu0 0.0
    %2009 = vmatpush1.msra.mxu0 0.0
    %2010 = vmatprep.subr.mxu0 0.0
    %2011 = vmatpush1.msra.mxu0 0.0
    %2012 = vmatprep.subr.mxu0 0.0
    %2013 = vmatpush1.msra.mxu0 0.0
    %2014 = vmatprep.subr.mxu0 0.0
    %2015 = vmatpush1.msra.mxu0 0.0
    %2016 = vmatprep.subr.mxu0 0.0
    %2017 = vmatpush1.msra.mxu0 0.0
    %2018 = vmatprep.subr.mxu0 0.0
    %2019 = vmatpush1.msra.mxu0 0.0
    %2020 = vmatprep.subr.mxu0 0.0
    %2021 = vmatpush1.msra.mxu0 0.0
    %2022 = vmatprep.subr.mxu0 %v1420
    %2023 = vmatpush1.msra.mxu0 %v1419
    %2024 = vmatprep.subr.mxu0 %v1404
    %2025 = vmatpush1.msra.mxu0 %v1403
    %2026 = vmatprep.subr.mxu0 %v1388
    %2027 = vmatpush1.msra.mxu0 %v1387
    %2028 = vmatprep.subr.mxu0 %v1372
    %2029 = vmatpush1.msra.mxu0 %v1371
    %2030 = vmatprep.subr.mxu0 0.0
    %2031 = vmatpush2.msra.mxu0 0.0
    %2032 = vmatprep.subr.mxu0 0.0
    %2033 = vmatpush2.msra.mxu0 0.0
    %2034 = vmatprep.subr.mxu0 0.0
    %2035 = vmatpush2.msra.mxu0 0.0
    %2036 = vmatprep.subr.mxu0 0.0
    %2037 = vmatpush2.msra.mxu0 0.0
    %2038 = vmatprep.subr.mxu0 0.0
    %2039 = vmatpush2.msra.mxu0 0.0
    %2040 = vmatprep.subr.mxu0 0.0
    %2041 = vmatpush2.msra.mxu0 0.0
    %2042 = vmatprep.subr.mxu0 0.0
    %2043 = vmatpush2.msra.mxu0 0.0
    %2044 = vmatprep.subr.mxu0 0.0
    %2045 = vmatpush2.msra.mxu0 0.0
    %2046 = vmatprep.subr.mxu0 0.0
    %2047 = vmatpush2.msra.mxu0 0.0
    %2048 = vmatprep.subr.mxu0 0.0
    %2049 = vmatpush2.msra.mxu0 0.0
    %2050 = vmatprep.subr.mxu0 0.0
    %2051 = vmatpush2.msra.mxu0 0.0
    %2052 = vmatprep.subr.mxu0 0.0
    %2053 = vmatpush2.msra.mxu0 0.0
    %2054 = vmatprep.subr.mxu0 0.0
    %2055 = vmatpush2.msra.mxu0 0.0
    %2056 = vmatprep.subr.mxu0 0.0
    %2057 = vmatpush2.msra.mxu0 0.0
    %2058 = vmatprep.subr.mxu0 0.0
    %2059 = vmatpush2.msra.mxu0 0.0
    %2060 = vmatprep.subr.mxu0 0.0
    %2061 = vmatpush2.msra.mxu0 0.0
    %2062 = vmatprep.mubr.f32.mxu0 0.0
    %2063 = vmatmul.mubr.f32.gmra.mxu0 %v1453
    %v2064 = vpop.f32.mrf.mxu0
    %v2065 = vadd.f32 %v1434, %v2064
    %v2066 = vpop.f32.mrf.mxu0
    %v2067 = vadd.f32 %v1434, %v2066
    %2068 = vmatprep.mubr.f32.mxu0 0.0
    %2069 = vmatmul.mubr.f32.gmra.mxu0 %v1456
    %v2070 = vpop.f32.mrf.mxu0
    %v2071 = vadd.f32 %v1439, %v2070
    %v2072 = vpop.f32.mrf.mxu0
    %v2073 = vadd.f32 %v1439, %v2072
    %2074 = vmatprep.mubr.f32.mxu0 0.0
    %2075 = vmatmul.mubr.f32.gmra.mxu0 %v1459
    %v2076 = vpop.f32.mrf.mxu0
    %v2077 = vadd.f32 %v1444, %v2076
    %v2078 = vpop.f32.mrf.mxu0
    %v2079 = vadd.f32 %v1444, %v2078
    %2080 = vmatprep.mubr.f32.mxu0 0.0
    %2081 = vmatmul.mubr.f32.gmra.mxu0 %v1462
    %v2082 = vpop.f32.mrf.mxu0
    %v2083 = vadd.f32 %v1449, %v2082
    %v2084 = vpop.f32.mrf.mxu0
    %v2085 = vadd.f32 %v1449, %v2084
    %2086 = vdwg.mxu0
    %2087 = vmatprep.subr.mxu0 0.0
    %2088 = vmatpush1.msra.mxu0 0.0
    %2089 = vmatprep.subr.mxu0 0.0
    %2090 = vmatpush1.msra.mxu0 0.0
    %2091 = vmatprep.subr.mxu0 0.0
    %2092 = vmatpush1.msra.mxu0 0.0
    %2093 = vmatprep.subr.mxu0 0.0
    %2094 = vmatpush1.msra.mxu0 0.0
    %2095 = vmatprep.subr.mxu0 0.0
    %2096 = vmatpush1.msra.mxu0 0.0
    %2097 = vmatprep.subr.mxu0 0.0
    %2098 = vmatpush1.msra.mxu0 0.0
    %2099 = vmatprep.subr.mxu0 0.0
    %2100 = vmatpush1.msra.mxu0 0.0
    %2101 = vmatprep.subr.mxu0 0.0
    %2102 = vmatpush1.msra.mxu0 0.0
    %2103 = vmatprep.subr.mxu0 0.0
    %2104 = vmatpush1.msra.mxu0 0.0
    %2105 = vmatprep.subr.mxu0 0.0
    %2106 = vmatpush1.msra.mxu0 0.0
    %2107 = vmatprep.subr.mxu0 0.0
    %2108 = vmatpush1.msra.mxu0 0.0
    %2109 = vmatprep.subr.mxu0 0.0
    %2110 = vmatpush1.msra.mxu0 0.0
    %2111 = vmatprep.subr.mxu0 %v1422
    %2112 = vmatpush1.msra.mxu0 %v1421
    %2113 = vmatprep.subr.mxu0 %v1406
    %2114 = vmatpush1.msra.mxu0 %v1405
    %2115 = vmatprep.subr.mxu0 %v1390
    %2116 = vmatpush1.msra.mxu0 %v1389
    %2117 = vmatprep.subr.mxu0 %v1374
    %2118 = vmatpush1.msra.mxu0 %v1373
    %2119 = vmatprep.subr.mxu0 0.0
    %2120 = vmatpush2.msra.mxu0 0.0
    %2121 = vmatprep.subr.mxu0 0.0
    %2122 = vmatpush2.msra.mxu0 0.0
    %2123 = vmatprep.subr.mxu0 0.0
    %2124 = vmatpush2.msra.mxu0 0.0
    %2125 = vmatprep.subr.mxu0 0.0
    %2126 = vmatpush2.msra.mxu0 0.0
    %2127 = vmatprep.subr.mxu0 0.0
    %2128 = vmatpush2.msra.mxu0 0.0
    %2129 = vmatprep.subr.mxu0 0.0
    %2130 = vmatpush2.msra.mxu0 0.0
    %2131 = vmatprep.subr.mxu0 0.0
    %2132 = vmatpush2.msra.mxu0 0.0
    %2133 = vmatprep.subr.mxu0 0.0
    %2134 = vmatpush2.msra.mxu0 0.0
    %2135 = vmatprep.subr.mxu0 0.0
    %2136 = vmatpush2.msra.mxu0 0.0
    %2137 = vmatprep.subr.mxu0 0.0
    %2138 = vmatpush2.msra.mxu0 0.0
    %2139 = vmatprep.subr.mxu0 0.0
    %2140 = vmatpush2.msra.mxu0 0.0
    %2141 = vmatprep.subr.mxu0 0.0
    %2142 = vmatpush2.msra.mxu0 0.0
    %2143 = vmatprep.subr.mxu0 0.0
    %2144 = vmatpush2.msra.mxu0 0.0
    %2145 = vmatprep.subr.mxu0 0.0
    %2146 = vmatpush2.msra.mxu0 0.0
    %2147 = vmatprep.subr.mxu0 0.0
    %2148 = vmatpush2.msra.mxu0 0.0
    %2149 = vmatprep.subr.mxu0 0.0
    %2150 = vmatpush2.msra.mxu0 0.0
    %2151 = vmatprep.mubr.f32.mxu0 0.0
    %2152 = vmatmul.mubr.f32.gmra.mxu0 %v1453
    %v2153 = vpop.f32.mrf.mxu0
    %v2154 = vadd.f32 %v1434, %v2153
    %v2155 = vpop.f32.mrf.mxu0
    %v2156 = vadd.f32 %v1434, %v2155
    %2157 = vmatprep.mubr.f32.mxu0 0.0
    %2158 = vmatmul.mubr.f32.gmra.mxu0 %v1456
    %v2159 = vpop.f32.mrf.mxu0
    %v2160 = vadd.f32 %v1439, %v2159
    %v2161 = vpop.f32.mrf.mxu0
    %v2162 = vadd.f32 %v1439, %v2161
    %2163 = vmatprep.mubr.f32.mxu0 0.0
    %2164 = vmatmul.mubr.f32.gmra.mxu0 %v1459
    %v2165 = vpop.f32.mrf.mxu0
    %v2166 = vadd.f32 %v1444, %v2165
    %v2167 = vpop.f32.mrf.mxu0
    %v2168 = vadd.f32 %v1444, %v2167
    %2169 = vmatprep.mubr.f32.mxu0 0.0
    %2170 = vmatmul.mubr.f32.gmra.mxu0 %v1462
    %v2171 = vpop.f32.mrf.mxu0
    %v2172 = vadd.f32 %v1449, %v2171
    %v2173 = vpop.f32.mrf.mxu0
    %v2174 = vadd.f32 %v1449, %v2173
    %2175 = vdwg.mxu0
    %v2176 = vxor.u32 %v1531, 2147483648
    %v2177 = vxor.u32 %v1533, 2147483648
    %v2178 = vxor.u32 %v1620, 2147483648
    %v2179 = vxor.u32 %v1622, 2147483648
    %v2180 = vxor.u32 %v1709, 2147483648
    %v2181 = vxor.u32 %v1711, 2147483648
    %v2182 = vxor.u32 %v1798, 2147483648
    %v2183 = vxor.u32 %v1800, 2147483648
    %v2184 = vxor.u32 %v1887, 2147483648
    %v2185 = vxor.u32 %v1889, 2147483648
    %v2186 = vxor.u32 %v1976, 2147483648
    %v2187 = vxor.u32 %v1978, 2147483648
    %v2188 = vxor.u32 %v2065, 2147483648
    %v2189 = vxor.u32 %v2067, 2147483648
    %v2190 = vxor.u32 %v2154, 2147483648
    %v2191 = vxor.u32 %v2156, 2147483648
    %v2192 = vxor.u32 %v1537, 2147483648
    %v2193 = vxor.u32 %v1539, 2147483648
    %v2194 = vxor.u32 %v1626, 2147483648
    %v2195 = vxor.u32 %v1628, 2147483648
    %v2196 = vxor.u32 %v1715, 2147483648
    %v2197 = vxor.u32 %v1717, 2147483648
    %v2198 = vxor.u32 %v1804, 2147483648
    %v2199 = vxor.u32 %v1806, 2147483648
    %v2200 = vxor.u32 %v1893, 2147483648
    %v2201 = vxor.u32 %v1895, 2147483648
    %v2202 = vxor.u32 %v1982, 2147483648
    %v2203 = vxor.u32 %v1984, 2147483648
    %v2204 = vxor.u32 %v2071, 2147483648
    %v2205 = vxor.u32 %v2073, 2147483648
    %v2206 = vxor.u32 %v2160, 2147483648
    %v2207 = vxor.u32 %v2162, 2147483648
    %v2208 = vxor.u32 %v1543, 2147483648
    %v2209 = vxor.u32 %v1545, 2147483648
    %v2210 = vxor.u32 %v1632, 2147483648
    %v2211 = vxor.u32 %v1634, 2147483648
    %v2212 = vxor.u32 %v1721, 2147483648
    %v2213 = vxor.u32 %v1723, 2147483648
    %v2214 = vxor.u32 %v1810, 2147483648
    %v2215 = vxor.u32 %v1812, 2147483648
    %v2216 = vxor.u32 %v1899, 2147483648
    %v2217 = vxor.u32 %v1901, 2147483648
    %v2218 = vxor.u32 %v1988, 2147483648
    %v2219 = vxor.u32 %v1990, 2147483648
    %v2220 = vxor.u32 %v2077, 2147483648
    %v2221 = vxor.u32 %v2079, 2147483648
    %v2222 = vxor.u32 %v2166, 2147483648
    %v2223 = vxor.u32 %v2168, 2147483648
    %v2224 = vxor.u32 %v1549, 2147483648
    %v2225 = vxor.u32 %v1551, 2147483648
    %v2226 = vxor.u32 %v1638, 2147483648
    %v2227 = vxor.u32 %v1640, 2147483648
    %v2228 = vxor.u32 %v1727, 2147483648
    %v2229 = vxor.u32 %v1729, 2147483648
    %v2230 = vxor.u32 %v1816, 2147483648
    %v2231 = vxor.u32 %v1818, 2147483648
    %v2232 = vxor.u32 %v1905, 2147483648
    %v2233 = vxor.u32 %v1907, 2147483648
    %v2234 = vxor.u32 %v1994, 2147483648
    %v2235 = vxor.u32 %v1996, 2147483648
    %v2236 = vxor.u32 %v2083, 2147483648
    %v2237 = vxor.u32 %v2085, 2147483648
    %v2238 = vxor.u32 %v2172, 2147483648
    %v2239 = vxor.u32 %v2174, 2147483648
    %v2240 = vmul.f32 %v2176, 1.442695
    %v2241 = vpow.pop %v2240
    %v2242 = vmul.f32 %v2177, 1.442695
    %v2243 = vpow.pop %v2242
    %v2244 = vmul.f32 %v2178, 1.442695
    %v2245 = vpow.pop %v2244
    %v2246 = vmul.f32 %v2179, 1.442695
    %v2247 = vpow.pop %v2246
    %v2248 = vmul.f32 %v2180, 1.442695
    %v2249 = vpow.pop %v2248
    %v2250 = vmul.f32 %v2181, 1.442695
    %v2251 = vpow.pop %v2250
    %v2252 = vmul.f32 %v2182, 1.442695
    %v2253 = vpow.pop %v2252
    %v2254 = vmul.f32 %v2183, 1.442695
    %v2255 = vpow.pop %v2254
    %v2256 = vmul.f32 %v2184, 1.442695
    %v2257 = vpow.pop %v2256
    %v2258 = vmul.f32 %v2185, 1.442695
    %v2259 = vpow.pop %v2258
    %v2260 = vmul.f32 %v2186, 1.442695
    %v2261 = vpow.pop %v2260
    %v2262 = vmul.f32 %v2187, 1.442695
    %v2263 = vpow.pop %v2262
    %v2264 = vmul.f32 %v2188, 1.442695
    %v2265 = vpow.pop %v2264
    %v2266 = vmul.f32 %v2189, 1.442695
    %v2267 = vpow.pop %v2266
    %v2268 = vmul.f32 %v2190, 1.442695
    %v2269 = vpow.pop %v2268
    %v2270 = vmul.f32 %v2191, 1.442695
    %v2271 = vpow.pop %v2270
    %v2272 = vmul.f32 %v2192, 1.442695
    %v2273 = vpow.pop %v2272
    %v2274 = vmul.f32 %v2193, 1.442695
    %v2275 = vpow.pop %v2274
    %v2276 = vmul.f32 %v2194, 1.442695
    %v2277 = vpow.pop %v2276
    %v2278 = vmul.f32 %v2195, 1.442695
    %v2279 = vpow.pop %v2278
    %v2280 = vmul.f32 %v2196, 1.442695
    %v2281 = vpow.pop %v2280
    %v2282 = vmul.f32 %v2197, 1.442695
    %v2283 = vpow.pop %v2282
    %v2284 = vmul.f32 %v2198, 1.442695
    %v2285 = vpow.pop %v2284
    %v2286 = vmul.f32 %v2199, 1.442695
    %v2287 = vpow.pop %v2286
    %v2288 = vmul.f32 %v2200, 1.442695
    %v2289 = vpow.pop %v2288
    %v2290 = vmul.f32 %v2201, 1.442695
    %v2291 = vpow.pop %v2290
    %v2292 = vmul.f32 %v2202, 1.442695
    %v2293 = vpow.pop %v2292
    %v2294 = vmul.f32 %v2203, 1.442695
    %v2295 = vpow.pop %v2294
    %v2296 = vmul.f32 %v2204, 1.442695
    %v2297 = vpow.pop %v2296
    %v2298 = vmul.f32 %v2205, 1.442695
    %v2299 = vpow.pop %v2298
    %v2300 = vmul.f32 %v2206, 1.442695
    %v2301 = vpow.pop %v2300
    %v2302 = vmul.f32 %v2207, 1.442695
    %v2303 = vpow.pop %v2302
    %v2304 = vmul.f32 %v2208, 1.442695
    %v2305 = vpow.pop %v2304
    %v2306 = vmul.f32 %v2209, 1.442695
    %v2307 = vpow.pop %v2306
    %v2308 = vmul.f32 %v2210, 1.442695
    %v2309 = vpow.pop %v2308
    %v2310 = vmul.f32 %v2211, 1.442695
    %v2311 = vpow.pop %v2310
    %v2312 = vmul.f32 %v2212, 1.442695
    %v2313 = vpow.pop %v2312
    %v2314 = vmul.f32 %v2213, 1.442695
    %v2315 = vpow.pop %v2314
    %v2316 = vmul.f32 %v2214, 1.442695
    %v2317 = vpow.pop %v2316
    %v2318 = vmul.f32 %v2215, 1.442695
    %v2319 = vpow.pop %v2318
    %v2320 = vmul.f32 %v2216, 1.442695
    %v2321 = vpow.pop %v2320
    %v2322 = vmul.f32 %v2217, 1.442695
    %v2323 = vpow.pop %v2322
    %v2324 = vmul.f32 %v2218, 1.442695
    %v2325 = vpow.pop %v2324
    %v2326 = vmul.f32 %v2219, 1.442695
    %v2327 = vpow.pop %v2326
    %v2328 = vmul.f32 %v2220, 1.442695
    %v2329 = vpow.pop %v2328
    %v2330 = vmul.f32 %v2221, 1.442695
    %v2331 = vpow.pop %v2330
    %v2332 = vmul.f32 %v2222, 1.442695
    %v2333 = vpow.pop %v2332
    %v2334 = vmul.f32 %v2223, 1.442695
    %v2335 = vpow.pop %v2334
    %v2336 = vmul.f32 %v2224, 1.442695
    %v2337 = vpow.pop %v2336
    %v2338 = vmul.f32 %v2225, 1.442695
    %v2339 = vpow.pop %v2338
    %v2340 = vmul.f32 %v2226, 1.442695
    %v2341 = vpow.pop %v2340
    %v2342 = vmul.f32 %v2227, 1.442695
    %v2343 = vpow.pop %v2342
    %v2344 = vmul.f32 %v2228, 1.442695
    %v2345 = vpow.pop %v2344
    %v2346 = vmul.f32 %v2229, 1.442695
    %v2347 = vpow.pop %v2346
    %v2348 = vmul.f32 %v2230, 1.442695
    %v2349 = vpow.pop %v2348
    %v2350 = vmul.f32 %v2231, 1.442695
    %v2351 = vpow.pop %v2350
    %v2352 = vmul.f32 %v2232, 1.442695
    %v2353 = vpow.pop %v2352
    %v2354 = vmul.f32 %v2233, 1.442695
    %v2355 = vpow.pop %v2354
    %v2356 = vmul.f32 %v2234, 1.442695
    %v2357 = vpow.pop %v2356
    %v2358 = vmul.f32 %v2235, 1.442695
    %v2359 = vpow.pop %v2358
    %v2360 = vmul.f32 %v2236, 1.442695
    %v2361 = vpow.pop %v2360
    %v2362 = vmul.f32 %v2237, 1.442695
    %v2363 = vpow.pop %v2362
    %v2364 = vmul.f32 %v2238, 1.442695
    %v2365 = vpow.pop %v2364
    %v2366 = vmul.f32 %v2239, 1.442695
    %v2367 = vpow.pop %v2366
    %v2368 = vadd.f32 %v2241, 1.0
    %v2369 = vadd.f32 %v2243, 1.0
    %v2370 = vadd.f32 %v2245, 1.0
    %v2371 = vadd.f32 %v2247, 1.0
    %v2372 = vadd.f32 %v2249, 1.0
    %v2373 = vadd.f32 %v2251, 1.0
    %v2374 = vadd.f32 %v2253, 1.0
    %v2375 = vadd.f32 %v2255, 1.0
    %v2376 = vadd.f32 %v2257, 1.0
    %v2377 = vadd.f32 %v2259, 1.0
    %v2378 = vadd.f32 %v2261, 1.0
    %v2379 = vadd.f32 %v2263, 1.0
    %v2380 = vadd.f32 %v2265, 1.0
    %v2381 = vadd.f32 %v2267, 1.0
    %v2382 = vadd.f32 %v2269, 1.0
    %v2383 = vadd.f32 %v2271, 1.0
    %v2384 = vadd.f32 %v2273, 1.0
    %v2385 = vadd.f32 %v2275, 1.0
    %v2386 = vadd.f32 %v2277, 1.0
    %v2387 = vadd.f32 %v2279, 1.0
    %v2388 = vadd.f32 %v2281, 1.0
    %v2389 = vadd.f32 %v2283, 1.0
    %v2390 = vadd.f32 %v2285, 1.0
    %v2391 = vadd.f32 %v2287, 1.0
    %v2392 = vadd.f32 %v2289, 1.0
    %v2393 = vadd.f32 %v2291, 1.0
    %v2394 = vadd.f32 %v2293, 1.0
    %v2395 = vadd.f32 %v2295, 1.0
    %v2396 = vadd.f32 %v2297, 1.0
    %v2397 = vadd.f32 %v2299, 1.0
    %v2398 = vadd.f32 %v2301, 1.0
    %v2399 = vadd.f32 %v2303, 1.0
    %v2400 = vadd.f32 %v2305, 1.0
    %v2401 = vadd.f32 %v2307, 1.0
    %v2402 = vadd.f32 %v2309, 1.0
    %v2403 = vadd.f32 %v2311, 1.0
    %v2404 = vadd.f32 %v2313, 1.0
    %v2405 = vadd.f32 %v2315, 1.0
    %v2406 = vadd.f32 %v2317, 1.0
    %v2407 = vadd.f32 %v2319, 1.0
    %v2408 = vadd.f32 %v2321, 1.0
    %v2409 = vadd.f32 %v2323, 1.0
    %v2410 = vadd.f32 %v2325, 1.0
    %v2411 = vadd.f32 %v2327, 1.0
    %v2412 = vadd.f32 %v2329, 1.0
    %v2413 = vadd.f32 %v2331, 1.0
    %v2414 = vadd.f32 %v2333, 1.0
    %v2415 = vadd.f32 %v2335, 1.0
    %v2416 = vadd.f32 %v2337, 1.0
    %v2417 = vadd.f32 %v2339, 1.0
    %v2418 = vadd.f32 %v2341, 1.0
    %v2419 = vadd.f32 %v2343, 1.0
    %v2420 = vadd.f32 %v2345, 1.0
    %v2421 = vadd.f32 %v2347, 1.0
    %v2422 = vadd.f32 %v2349, 1.0
    %v2423 = vadd.f32 %v2351, 1.0
    %v2424 = vadd.f32 %v2353, 1.0
    %v2425 = vadd.f32 %v2355, 1.0
    %v2426 = vadd.f32 %v2357, 1.0
    %v2427 = vadd.f32 %v2359, 1.0
    %v2428 = vadd.f32 %v2361, 1.0
    %v2429 = vadd.f32 %v2363, 1.0
    %v2430 = vadd.f32 %v2365, 1.0
    %v2431 = vadd.f32 %v2367, 1.0
    %v2432 = vrcp.pop %v2368
    %v2433 = vmul.f32 1.0, %v2432
    %v2434 = vrcp.pop %v2369
    %v2435 = vmul.f32 1.0, %v2434
    %v2436 = vrcp.pop %v2370
    %v2437 = vmul.f32 1.0, %v2436
    %v2438 = vrcp.pop %v2371
    %v2439 = vmul.f32 1.0, %v2438
    %v2440 = vrcp.pop %v2372
    %v2441 = vmul.f32 1.0, %v2440
    %v2442 = vrcp.pop %v2373
    %v2443 = vmul.f32 1.0, %v2442
    %v2444 = vrcp.pop %v2374
    %v2445 = vmul.f32 1.0, %v2444
    %v2446 = vrcp.pop %v2375
    %v2447 = vmul.f32 1.0, %v2446
    %v2448 = vrcp.pop %v2376
    %v2449 = vmul.f32 1.0, %v2448
    %v2450 = vrcp.pop %v2377
    %v2451 = vmul.f32 1.0, %v2450
    %v2452 = vrcp.pop %v2378
    %v2453 = vmul.f32 1.0, %v2452
    %v2454 = vrcp.pop %v2379
    %v2455 = vmul.f32 1.0, %v2454
    %v2456 = vrcp.pop %v2380
    %v2457 = vmul.f32 1.0, %v2456
    %v2458 = vrcp.pop %v2381
    %v2459 = vmul.f32 1.0, %v2458
    %v2460 = vrcp.pop %v2382
    %v2461 = vmul.f32 1.0, %v2460
    %v2462 = vrcp.pop %v2383
    %v2463 = vmul.f32 1.0, %v2462
    %v2464 = vrcp.pop %v2384
    %v2465 = vmul.f32 1.0, %v2464
    %v2466 = vrcp.pop %v2385
    %v2467 = vmul.f32 1.0, %v2466
    %v2468 = vrcp.pop %v2386
    %v2469 = vmul.f32 1.0, %v2468
    %v2470 = vrcp.pop %v2387
    %v2471 = vmul.f32 1.0, %v2470
    %v2472 = vrcp.pop %v2388
    %v2473 = vmul.f32 1.0, %v2472
    %v2474 = vrcp.pop %v2389
    %v2475 = vmul.f32 1.0, %v2474
    %v2476 = vrcp.pop %v2390
    %v2477 = vmul.f32 1.0, %v2476
    %v2478 = vrcp.pop %v2391
    %v2479 = vmul.f32 1.0, %v2478
    %v2480 = vrcp.pop %v2392
    %v2481 = vmul.f32 1.0, %v2480
    %v2482 = vrcp.pop %v2393
    %v2483 = vmul.f32 1.0, %v2482
    %v2484 = vrcp.pop %v2394
    %v2485 = vmul.f32 1.0, %v2484
    %v2486 = vrcp.pop %v2395
    %v2487 = vmul.f32 1.0, %v2486
    %v2488 = vrcp.pop %v2396
    %v2489 = vmul.f32 1.0, %v2488
    %v2490 = vrcp.pop %v2397
    %v2491 = vmul.f32 1.0, %v2490
    %v2492 = vrcp.pop %v2398
    %v2493 = vmul.f32 1.0, %v2492
    %v2494 = vrcp.pop %v2399
    %v2495 = vmul.f32 1.0, %v2494
    %v2496 = vrcp.pop %v2400
    %v2497 = vmul.f32 1.0, %v2496
    %v2498 = vrcp.pop %v2401
    %v2499 = vmul.f32 1.0, %v2498
    %v2500 = vrcp.pop %v2402
    %v2501 = vmul.f32 1.0, %v2500
    %v2502 = vrcp.pop %v2403
    %v2503 = vmul.f32 1.0, %v2502
    %v2504 = vrcp.pop %v2404
    %v2505 = vmul.f32 1.0, %v2504
    %v2506 = vrcp.pop %v2405
    %v2507 = vmul.f32 1.0, %v2506
    %v2508 = vrcp.pop %v2406
    %v2509 = vmul.f32 1.0, %v2508
    %v2510 = vrcp.pop %v2407
    %v2511 = vmul.f32 1.0, %v2510
    %v2512 = vrcp.pop %v2408
    %v2513 = vmul.f32 1.0, %v2512
    %v2514 = vrcp.pop %v2409
    %v2515 = vmul.f32 1.0, %v2514
    %v2516 = vrcp.pop %v2410
    %v2517 = vmul.f32 1.0, %v2516
    %v2518 = vrcp.pop %v2411
    %v2519 = vmul.f32 1.0, %v2518
    %v2520 = vrcp.pop %v2412
    %v2521 = vmul.f32 1.0, %v2520
    %v2522 = vrcp.pop %v2413
    %v2523 = vmul.f32 1.0, %v2522
    %v2524 = vrcp.pop %v2414
    %v2525 = vmul.f32 1.0, %v2524
    %v2526 = vrcp.pop %v2415
    %v2527 = vmul.f32 1.0, %v2526
    %v2528 = vrcp.pop %v2416
    %v2529 = vmul.f32 1.0, %v2528
    %v2530 = vrcp.pop %v2417
    %v2531 = vmul.f32 1.0, %v2530
    %v2532 = vrcp.pop %v2418
    %v2533 = vmul.f32 1.0, %v2532
    %v2534 = vrcp.pop %v2419
    %v2535 = vmul.f32 1.0, %v2534
    %v2536 = vrcp.pop %v2420
    %v2537 = vmul.f32 1.0, %v2536
    %v2538 = vrcp.pop %v2421
    %v2539 = vmul.f32 1.0, %v2538
    %v2540 = vrcp.pop %v2422
    %v2541 = vmul.f32 1.0, %v2540
    %v2542 = vrcp.pop %v2423
    %v2543 = vmul.f32 1.0, %v2542
    %v2544 = vrcp.pop %v2424
    %v2545 = vmul.f32 1.0, %v2544
    %v2546 = vrcp.pop %v2425
    %v2547 = vmul.f32 1.0, %v2546
    %v2548 = vrcp.pop %v2426
    %v2549 = vmul.f32 1.0, %v2548
    %v2550 = vrcp.pop %v2427
    %v2551 = vmul.f32 1.0, %v2550
    %v2552 = vrcp.pop %v2428
    %v2553 = vmul.f32 1.0, %v2552
    %v2554 = vrcp.pop %v2429
    %v2555 = vmul.f32 1.0, %v2554
    %v2556 = vrcp.pop %v2430
    %v2557 = vmul.f32 1.0, %v2556
    %v2558 = vrcp.pop %v2431
    %v2559 = vmul.f32 1.0, %v2558
    %v2560 = vmul.f32 %v1531, %v2433
    %v2561 = vmul.f32 %v1533, %v2435
    %v2562 = vmul.f32 %v1620, %v2437
    %v2563 = vmul.f32 %v1622, %v2439
    %v2564 = vmul.f32 %v1709, %v2441
    %v2565 = vmul.f32 %v1711, %v2443
    %v2566 = vmul.f32 %v1798, %v2445
    %v2567 = vmul.f32 %v1800, %v2447
    %v2568 = vmul.f32 %v1887, %v2449
    %v2569 = vmul.f32 %v1889, %v2451
    %v2570 = vmul.f32 %v1976, %v2453
    %v2571 = vmul.f32 %v1978, %v2455
    %v2572 = vmul.f32 %v2065, %v2457
    %v2573 = vmul.f32 %v2067, %v2459
    %v2574 = vmul.f32 %v2154, %v2461
    %v2575 = vmul.f32 %v2156, %v2463
    %v2576 = vmul.f32 %v1537, %v2465
    %v2577 = vmul.f32 %v1539, %v2467
    %v2578 = vmul.f32 %v1626, %v2469
    %v2579 = vmul.f32 %v1628, %v2471
    %v2580 = vmul.f32 %v1715, %v2473
    %v2581 = vmul.f32 %v1717, %v2475
    %v2582 = vmul.f32 %v1804, %v2477
    %v2583 = vmul.f32 %v1806, %v2479
    %v2584 = vmul.f32 %v1893, %v2481
    %v2585 = vmul.f32 %v1895, %v2483
    %v2586 = vmul.f32 %v1982, %v2485
    %v2587 = vmul.f32 %v1984, %v2487
    %v2588 = vmul.f32 %v2071, %v2489
    %v2589 = vmul.f32 %v2073, %v2491
    %v2590 = vmul.f32 %v2160, %v2493
    %v2591 = vmul.f32 %v2162, %v2495
    %v2592 = vmul.f32 %v1543, %v2497
    %v2593 = vmul.f32 %v1545, %v2499
    %v2594 = vmul.f32 %v1632, %v2501
    %v2595 = vmul.f32 %v1634, %v2503
    %v2596 = vmul.f32 %v1721, %v2505
    %v2597 = vmul.f32 %v1723, %v2507
    %v2598 = vmul.f32 %v1810, %v2509
    %v2599 = vmul.f32 %v1812, %v2511
    %v2600 = vmul.f32 %v1899, %v2513
    %v2601 = vmul.f32 %v1901, %v2515
    %v2602 = vmul.f32 %v1988, %v2517
    %v2603 = vmul.f32 %v1990, %v2519
    %v2604 = vmul.f32 %v2077, %v2521
    %v2605 = vmul.f32 %v2079, %v2523
    %v2606 = vmul.f32 %v2166, %v2525
    %v2607 = vmul.f32 %v2168, %v2527
    %v2608 = vmul.f32 %v1549, %v2529
    %v2609 = vmul.f32 %v1551, %v2531
    %v2610 = vmul.f32 %v1638, %v2533
    %v2611 = vmul.f32 %v1640, %v2535
    %v2612 = vmul.f32 %v1727, %v2537
    %v2613 = vmul.f32 %v1729, %v2539
    %v2614 = vmul.f32 %v1816, %v2541
    %v2615 = vmul.f32 %v1818, %v2543
    %v2616 = vmul.f32 %v1905, %v2545
    %v2617 = vmul.f32 %v1907, %v2547
    %v2618 = vmul.f32 %v1994, %v2549
    %v2619 = vmul.f32 %v1996, %v2551
    %v2620 = vmul.f32 %v2083, %v2553
    %v2621 = vmul.f32 %v2085, %v2555
    %v2622 = vmul.f32 %v2172, %v2557
    %v2623 = vmul.f32 %v2174, %v2559
    %v2624 = vld [vmem:[#allocation5] sm:$0xff]
    %v2625 = vld [vmem:[#allocation5 + $0x8] sm:$0xff]
    %v2626 = vld [vmem:[%s8] sm:$0xff]
    %v2627 = vld [vmem:[%s8 + $0x8] sm:$0xff]
    %2629 = vset.pattern.permute.xlu0 0
    %2630 = vperm.xlu0 %2629, %v2626
    %v2631 = vpop.permute.xlu0 %2630
    %2634 = vset.pattern.permute.xlu0 0
    %2635 = vperm.xlu0 %2634, %v2627
    %v2636 = vpop.permute.xlu0 %2635
    %v2639 = vsel %vm1451, %v2624, 0
    %v2642 = vsel %vm1451, %v2625, 0
    %2644 = vmatprep.subr.mxu0 0.0
    %2645 = vmatpush1.msra.mxu0 0.0
    %2646 = vmatprep.subr.mxu0 0.0
    %2647 = vmatpush1.msra.mxu0 0.0
    %2648 = vmatprep.subr.mxu0 0.0
    %2649 = vmatpush1.msra.mxu0 0.0
    %2650 = vmatprep.subr.mxu0 0.0
    %2651 = vmatpush1.msra.mxu0 0.0
    %2652 = vmatprep.subr.mxu0 0.0
    %2653 = vmatpush1.msra.mxu0 0.0
    %2654 = vmatprep.subr.mxu0 0.0
    %2655 = vmatpush1.msra.mxu0 0.0
    %2656 = vmatprep.subr.mxu0 0.0
    %2657 = vmatpush1.msra.mxu0 0.0
    %2658 = vmatprep.subr.mxu0 0.0
    %2659 = vmatpush1.msra.mxu0 0.0
    %2660 = vmatprep.subr.mxu0 0.0
    %2661 = vmatpush1.msra.mxu0 0.0
    %2662 = vmatprep.subr.mxu0 0.0
    %2663 = vmatpush1.msra.mxu0 0.0
    %2664 = vmatprep.subr.mxu0 0.0
    %2665 = vmatpush1.msra.mxu0 0.0
    %2666 = vmatprep.subr.mxu0 0.0
    %2667 = vmatpush1.msra.mxu0 0.0
    %2668 = vmatprep.subr.mxu0 %v2609
    %2669 = vmatpush1.msra.mxu0 %v2608
    %2670 = vmatprep.subr.mxu0 %v2593
    %2671 = vmatpush1.msra.mxu0 %v2592
    %2672 = vmatprep.subr.mxu0 %v2577
    %2673 = vmatpush1.msra.mxu0 %v2576
    %2674 = vmatprep.subr.mxu0 %v2561
    %2675 = vmatpush1.msra.mxu0 %v2560
    %2676 = vmatprep.subr.mxu0 0.0
    %2677 = vmatpush2.msra.mxu0 0.0
    %2678 = vmatprep.subr.mxu0 0.0
    %2679 = vmatpush2.msra.mxu0 0.0
    %2680 = vmatprep.subr.mxu0 0.0
    %2681 = vmatpush2.msra.mxu0 0.0
    %2682 = vmatprep.subr.mxu0 0.0
    %2683 = vmatpush2.msra.mxu0 0.0
    %2684 = vmatprep.subr.mxu0 0.0
    %2685 = vmatpush2.msra.mxu0 0.0
    %2686 = vmatprep.subr.mxu0 0.0
    %2687 = vmatpush2.msra.mxu0 0.0
    %2688 = vmatprep.subr.mxu0 0.0
    %2689 = vmatpush2.msra.mxu0 0.0
    %2690 = vmatprep.subr.mxu0 0.0
    %2691 = vmatpush2.msra.mxu0 0.0
    %2692 = vmatprep.subr.mxu0 0.0
    %2693 = vmatpush2.msra.mxu0 0.0
    %2694 = vmatprep.subr.mxu0 0.0
    %2695 = vmatpush2.msra.mxu0 0.0
    %2696 = vmatprep.subr.mxu0 0.0
    %2697 = vmatpush2.msra.mxu0 0.0
    %2698 = vmatprep.subr.mxu0 0.0
    %2699 = vmatpush2.msra.mxu0 0.0
    %2700 = vmatprep.subr.mxu0 0.0
    %2701 = vmatpush2.msra.mxu0 0.0
    %2702 = vmatprep.subr.mxu0 0.0
    %2703 = vmatpush2.msra.mxu0 0.0
    %2704 = vmatprep.subr.mxu0 0.0
    %2705 = vmatpush2.msra.mxu0 0.0
    %2706 = vmatprep.subr.mxu0 0.0
    %2707 = vmatpush2.msra.mxu0 0.0
    %2708 = vmatprep.mubr.f32.mxu0 0.0
    %2709 = vmatmul.mubr.f32.gmra.mxu0 %v2639
    %v2710 = vpop.f32.mrf.mxu0
    %v2711 = vadd.f32 %v2631, %v2710
    %v2712 = vpop.f32.mrf.mxu0
    %v2713 = vadd.f32 %v2631, %v2712
    %2714 = vmatprep.mubr.f32.mxu0 0.0
    %2715 = vmatmul.mubr.f32.gmra.mxu0 %v2642
    %v2716 = vpop.f32.mrf.mxu0
    %v2717 = vadd.f32 %v2636, %v2716
    %v2718 = vpop.f32.mrf.mxu0
    %v2719 = vadd.f32 %v2636, %v2718
    %2720 = vdwg.mxu0
    %2721 = vmatprep.subr.mxu0 0.0
    %2722 = vmatpush1.msra.mxu0 0.0
    %2723 = vmatprep.subr.mxu0 0.0
    %2724 = vmatpush1.msra.mxu0 0.0
    %2725 = vmatprep.subr.mxu0 0.0
    %2726 = vmatpush1.msra.mxu0 0.0
    %2727 = vmatprep.subr.mxu0 0.0
    %2728 = vmatpush1.msra.mxu0 0.0
    %2729 = vmatprep.subr.mxu0 0.0
    %2730 = vmatpush1.msra.mxu0 0.0
    %2731 = vmatprep.subr.mxu0 0.0
    %2732 = vmatpush1.msra.mxu0 0.0
    %2733 = vmatprep.subr.mxu0 0.0
    %2734 = vmatpush1.msra.mxu0 0.0
    %2735 = vmatprep.subr.mxu0 0.0
    %2736 = vmatpush1.msra.mxu0 0.0
    %2737 = vmatprep.subr.mxu0 0.0
    %2738 = vmatpush1.msra.mxu0 0.0
    %2739 = vmatprep.subr.mxu0 0.0
    %2740 = vmatpush1.msra.mxu0 0.0
    %2741 = vmatprep.subr.mxu0 0.0
    %2742 = vmatpush1.msra.mxu0 0.0
    %2743 = vmatprep.subr.mxu0 0.0
    %2744 = vmatpush1.msra.mxu0 0.0
    %2745 = vmatprep.subr.mxu0 %v2611
    %2746 = vmatpush1.msra.mxu0 %v2610
    %2747 = vmatprep.subr.mxu0 %v2595
    %2748 = vmatpush1.msra.mxu0 %v2594
    %2749 = vmatprep.subr.mxu0 %v2579
    %2750 = vmatpush1.msra.mxu0 %v2578
    %2751 = vmatprep.subr.mxu0 %v2563
    %2752 = vmatpush1.msra.mxu0 %v2562
    %2753 = vmatprep.subr.mxu0 0.0
    %2754 = vmatpush2.msra.mxu0 0.0
    %2755 = vmatprep.subr.mxu0 0.0
    %2756 = vmatpush2.msra.mxu0 0.0
    %2757 = vmatprep.subr.mxu0 0.0
    %2758 = vmatpush2.msra.mxu0 0.0
    %2759 = vmatprep.subr.mxu0 0.0
    %2760 = vmatpush2.msra.mxu0 0.0
    %2761 = vmatprep.subr.mxu0 0.0
    %2762 = vmatpush2.msra.mxu0 0.0
    %2763 = vmatprep.subr.mxu0 0.0
    %2764 = vmatpush2.msra.mxu0 0.0
    %2765 = vmatprep.subr.mxu0 0.0
    %2766 = vmatpush2.msra.mxu0 0.0
    %2767 = vmatprep.subr.mxu0 0.0
    %2768 = vmatpush2.msra.mxu0 0.0
    %2769 = vmatprep.subr.mxu0 0.0
    %2770 = vmatpush2.msra.mxu0 0.0
    %2771 = vmatprep.subr.mxu0 0.0
    %2772 = vmatpush2.msra.mxu0 0.0
    %2773 = vmatprep.subr.mxu0 0.0
    %2774 = vmatpush2.msra.mxu0 0.0
    %2775 = vmatprep.subr.mxu0 0.0
    %2776 = vmatpush2.msra.mxu0 0.0
    %2777 = vmatprep.subr.mxu0 0.0
    %2778 = vmatpush2.msra.mxu0 0.0
    %2779 = vmatprep.subr.mxu0 0.0
    %2780 = vmatpush2.msra.mxu0 0.0
    %2781 = vmatprep.subr.mxu0 0.0
    %2782 = vmatpush2.msra.mxu0 0.0
    %2783 = vmatprep.subr.mxu0 0.0
    %2784 = vmatpush2.msra.mxu0 0.0
    %2785 = vmatprep.mubr.f32.mxu0 0.0
    %2786 = vmatmul.mubr.f32.gmra.mxu0 %v2639
    %v2787 = vpop.f32.mrf.mxu0
    %v2788 = vadd.f32 %v2631, %v2787
    %v2789 = vpop.f32.mrf.mxu0
    %v2790 = vadd.f32 %v2631, %v2789
    %2791 = vmatprep.mubr.f32.mxu0 0.0
    %2792 = vmatmul.mubr.f32.gmra.mxu0 %v2642
    %v2793 = vpop.f32.mrf.mxu0
    %v2794 = vadd.f32 %v2636, %v2793
    %v2795 = vpop.f32.mrf.mxu0
    %v2796 = vadd.f32 %v2636, %v2795
    %2797 = vdwg.mxu0
    %2798 = vmatprep.subr.mxu0 0.0
    %2799 = vmatpush1.msra.mxu0 0.0
    %2800 = vmatprep.subr.mxu0 0.0
    %2801 = vmatpush1.msra.mxu0 0.0
    %2802 = vmatprep.subr.mxu0 0.0
    %2803 = vmatpush1.msra.mxu0 0.0
    %2804 = vmatprep.subr.mxu0 0.0
    %2805 = vmatpush1.msra.mxu0 0.0
    %2806 = vmatprep.subr.mxu0 0.0
    %2807 = vmatpush1.msra.mxu0 0.0
    %2808 = vmatprep.subr.mxu0 0.0
    %2809 = vmatpush1.msra.mxu0 0.0
    %2810 = vmatprep.subr.mxu0 0.0
    %2811 = vmatpush1.msra.mxu0 0.0
    %2812 = vmatprep.subr.mxu0 0.0
    %2813 = vmatpush1.msra.mxu0 0.0
    %2814 = vmatprep.subr.mxu0 0.0
    %2815 = vmatpush1.msra.mxu0 0.0
    %2816 = vmatprep.subr.mxu0 0.0
    %2817 = vmatpush1.msra.mxu0 0.0
    %2818 = vmatprep.subr.mxu0 0.0
    %2819 = vmatpush1.msra.mxu0 0.0
    %2820 = vmatprep.subr.mxu0 0.0
    %2821 = vmatpush1.msra.mxu0 0.0
    %2822 = vmatprep.subr.mxu0 %v2613
    %2823 = vmatpush1.msra.mxu0 %v2612
    %2824 = vmatprep.subr.mxu0 %v2597
    %2825 = vmatpush1.msra.mxu0 %v2596
    %2826 = vmatprep.subr.mxu0 %v2581
    %2827 = vmatpush1.msra.mxu0 %v2580
    %2828 = vmatprep.subr.mxu0 %v2565
    %2829 = vmatpush1.msra.mxu0 %v2564
    %2830 = vmatprep.subr.mxu0 0.0
    %2831 = vmatpush2.msra.mxu0 0.0
    %2832 = vmatprep.subr.mxu0 0.0
    %2833 = vmatpush2.msra.mxu0 0.0
    %2834 = vmatprep.subr.mxu0 0.0
    %2835 = vmatpush2.msra.mxu0 0.0
    %2836 = vmatprep.subr.mxu0 0.0
    %2837 = vmatpush2.msra.mxu0 0.0
    %2838 = vmatprep.subr.mxu0 0.0
    %2839 = vmatpush2.msra.mxu0 0.0
    %2840 = vmatprep.subr.mxu0 0.0
    %2841 = vmatpush2.msra.mxu0 0.0
    %2842 = vmatprep.subr.mxu0 0.0
    %2843 = vmatpush2.msra.mxu0 0.0
    %2844 = vmatprep.subr.mxu0 0.0
    %2845 = vmatpush2.msra.mxu0 0.0
    %2846 = vmatprep.subr.mxu0 0.0
    %2847 = vmatpush2.msra.mxu0 0.0
    %2848 = vmatprep.subr.mxu0 0.0
    %2849 = vmatpush2.msra.mxu0 0.0
    %2850 = vmatprep.subr.mxu0 0.0
    %2851 = vmatpush2.msra.mxu0 0.0
    %2852 = vmatprep.subr.mxu0 0.0
    %2853 = vmatpush2.msra.mxu0 0.0
    %2854 = vmatprep.subr.mxu0 0.0
    %2855 = vmatpush2.msra.mxu0 0.0
    %2856 = vmatprep.subr.mxu0 0.0
    %2857 = vmatpush2.msra.mxu0 0.0
    %2858 = vmatprep.subr.mxu0 0.0
    %2859 = vmatpush2.msra.mxu0 0.0
    %2860 = vmatprep.subr.mxu0 0.0
    %2861 = vmatpush2.msra.mxu0 0.0
    %2862 = vmatprep.mubr.f32.mxu0 0.0
    %2863 = vmatmul.mubr.f32.gmra.mxu0 %v2639
    %v2864 = vpop.f32.mrf.mxu0
    %v2865 = vadd.f32 %v2631, %v2864
    %v2866 = vpop.f32.mrf.mxu0
    %v2867 = vadd.f32 %v2631, %v2866
    %2868 = vmatprep.mubr.f32.mxu0 0.0
    %2869 = vmatmul.mubr.f32.gmra.mxu0 %v2642
    %v2870 = vpop.f32.mrf.mxu0
    %v2871 = vadd.f32 %v2636, %v2870
    %v2872 = vpop.f32.mrf.mxu0
    %v2873 = vadd.f32 %v2636, %v2872
    %2874 = vdwg.mxu0
    %2875 = vmatprep.subr.mxu0 0.0
    %2876 = vmatpush1.msra.mxu0 0.0
    %2877 = vmatprep.subr.mxu0 0.0
    %2878 = vmatpush1.msra.mxu0 0.0
    %2879 = vmatprep.subr.mxu0 0.0
    %2880 = vmatpush1.msra.mxu0 0.0
    %2881 = vmatprep.subr.mxu0 0.0
    %2882 = vmatpush1.msra.mxu0 0.0
    %2883 = vmatprep.subr.mxu0 0.0
    %2884 = vmatpush1.msra.mxu0 0.0
    %2885 = vmatprep.subr.mxu0 0.0
    %2886 = vmatpush1.msra.mxu0 0.0
    %2887 = vmatprep.subr.mxu0 0.0
    %2888 = vmatpush1.msra.mxu0 0.0
    %2889 = vmatprep.subr.mxu0 0.0
    %2890 = vmatpush1.msra.mxu0 0.0
    %2891 = vmatprep.subr.mxu0 0.0
    %2892 = vmatpush1.msra.mxu0 0.0
    %2893 = vmatprep.subr.mxu0 0.0
    %2894 = vmatpush1.msra.mxu0 0.0
    %2895 = vmatprep.subr.mxu0 0.0
    %2896 = vmatpush1.msra.mxu0 0.0
    %2897 = vmatprep.subr.mxu0 0.0
    %2898 = vmatpush1.msra.mxu0 0.0
    %2899 = vmatprep.subr.mxu0 %v2615
    %2900 = vmatpush1.msra.mxu0 %v2614
    %2901 = vmatprep.subr.mxu0 %v2599
    %2902 = vmatpush1.msra.mxu0 %v2598
    %2903 = vmatprep.subr.mxu0 %v2583
    %2904 = vmatpush1.msra.mxu0 %v2582
    %2905 = vmatprep.subr.mxu0 %v2567
    %2906 = vmatpush1.msra.mxu0 %v2566
    %2907 = vmatprep.subr.mxu0 0.0
    %2908 = vmatpush2.msra.mxu0 0.0
    %2909 = vmatprep.subr.mxu0 0.0
    %2910 = vmatpush2.msra.mxu0 0.0
    %2911 = vmatprep.subr.mxu0 0.0
    %2912 = vmatpush2.msra.mxu0 0.0
    %2913 = vmatprep.subr.mxu0 0.0
    %2914 = vmatpush2.msra.mxu0 0.0
    %2915 = vmatprep.subr.mxu0 0.0
    %2916 = vmatpush2.msra.mxu0 0.0
    %2917 = vmatprep.subr.mxu0 0.0
    %2918 = vmatpush2.msra.mxu0 0.0
    %2919 = vmatprep.subr.mxu0 0.0
    %2920 = vmatpush2.msra.mxu0 0.0
    %2921 = vmatprep.subr.mxu0 0.0
    %2922 = vmatpush2.msra.mxu0 0.0
    %2923 = vmatprep.subr.mxu0 0.0
    %2924 = vmatpush2.msra.mxu0 0.0
    %2925 = vmatprep.subr.mxu0 0.0
    %2926 = vmatpush2.msra.mxu0 0.0
    %2927 = vmatprep.subr.mxu0 0.0
    %2928 = vmatpush2.msra.mxu0 0.0
    %2929 = vmatprep.subr.mxu0 0.0
    %2930 = vmatpush2.msra.mxu0 0.0
    %2931 = vmatprep.subr.mxu0 0.0
    %2932 = vmatpush2.msra.mxu0 0.0
    %2933 = vmatprep.subr.mxu0 0.0
    %2934 = vmatpush2.msra.mxu0 0.0
    %2935 = vmatprep.subr.mxu0 0.0
    %2936 = vmatpush2.msra.mxu0 0.0
    %2937 = vmatprep.subr.mxu0 0.0
    %2938 = vmatpush2.msra.mxu0 0.0
    %2939 = vmatprep.mubr.f32.mxu0 0.0
    %2940 = vmatmul.mubr.f32.gmra.mxu0 %v2639
    %v2941 = vpop.f32.mrf.mxu0
    %v2942 = vadd.f32 %v2631, %v2941
    %v2943 = vpop.f32.mrf.mxu0
    %v2944 = vadd.f32 %v2631, %v2943
    %2945 = vmatprep.mubr.f32.mxu0 0.0
    %2946 = vmatmul.mubr.f32.gmra.mxu0 %v2642
    %v2947 = vpop.f32.mrf.mxu0
    %v2948 = vadd.f32 %v2636, %v2947
    %v2949 = vpop.f32.mrf.mxu0
    %v2950 = vadd.f32 %v2636, %v2949
    %2951 = vdwg.mxu0
    %2952 = vmatprep.subr.mxu0 0.0
    %2953 = vmatpush1.msra.mxu0 0.0
    %2954 = vmatprep.subr.mxu0 0.0
    %2955 = vmatpush1.msra.mxu0 0.0
    %2956 = vmatprep.subr.mxu0 0.0
    %2957 = vmatpush1.msra.mxu0 0.0
    %2958 = vmatprep.subr.mxu0 0.0
    %2959 = vmatpush1.msra.mxu0 0.0
    %2960 = vmatprep.subr.mxu0 0.0
    %2961 = vmatpush1.msra.mxu0 0.0
    %2962 = vmatprep.subr.mxu0 0.0
    %2963 = vmatpush1.msra.mxu0 0.0
    %2964 = vmatprep.subr.mxu0 0.0
    %2965 = vmatpush1.msra.mxu0 0.0
    %2966 = vmatprep.subr.mxu0 0.0
    %2967 = vmatpush1.msra.mxu0 0.0
    %2968 = vmatprep.subr.mxu0 0.0
    %2969 = vmatpush1.msra.mxu0 0.0
    %2970 = vmatprep.subr.mxu0 0.0
    %2971 = vmatpush1.msra.mxu0 0.0
    %2972 = vmatprep.subr.mxu0 0.0
    %2973 = vmatpush1.msra.mxu0 0.0
    %2974 = vmatprep.subr.mxu0 0.0
    %2975 = vmatpush1.msra.mxu0 0.0
    %2976 = vmatprep.subr.mxu0 %v2617
    %2977 = vmatpush1.msra.mxu0 %v2616
    %2978 = vmatprep.subr.mxu0 %v2601
    %2979 = vmatpush1.msra.mxu0 %v2600
    %2980 = vmatprep.subr.mxu0 %v2585
    %2981 = vmatpush1.msra.mxu0 %v2584
    %2982 = vmatprep.subr.mxu0 %v2569
    %2983 = vmatpush1.msra.mxu0 %v2568
    %2984 = vmatprep.subr.mxu0 0.0
    %2985 = vmatpush2.msra.mxu0 0.0
    %2986 = vmatprep.subr.mxu0 0.0
    %2987 = vmatpush2.msra.mxu0 0.0
    %2988 = vmatprep.subr.mxu0 0.0
    %2989 = vmatpush2.msra.mxu0 0.0
    %2990 = vmatprep.subr.mxu0 0.0
    %2991 = vmatpush2.msra.mxu0 0.0
    %2992 = vmatprep.subr.mxu0 0.0
    %2993 = vmatpush2.msra.mxu0 0.0
    %2994 = vmatprep.subr.mxu0 0.0
    %2995 = vmatpush2.msra.mxu0 0.0
    %2996 = vmatprep.subr.mxu0 0.0
    %2997 = vmatpush2.msra.mxu0 0.0
    %2998 = vmatprep.subr.mxu0 0.0
    %2999 = vmatpush2.msra.mxu0 0.0
    %3000 = vmatprep.subr.mxu0 0.0
    %3001 = vmatpush2.msra.mxu0 0.0
    %3002 = vmatprep.subr.mxu0 0.0
    %3003 = vmatpush2.msra.mxu0 0.0
    %3004 = vmatprep.subr.mxu0 0.0
    %3005 = vmatpush2.msra.mxu0 0.0
    %3006 = vmatprep.subr.mxu0 0.0
    %3007 = vmatpush2.msra.mxu0 0.0
    %3008 = vmatprep.subr.mxu0 0.0
    %3009 = vmatpush2.msra.mxu0 0.0
    %3010 = vmatprep.subr.mxu0 0.0
    %3011 = vmatpush2.msra.mxu0 0.0
    %3012 = vmatprep.subr.mxu0 0.0
    %3013 = vmatpush2.msra.mxu0 0.0
    %3014 = vmatprep.subr.mxu0 0.0
    %3015 = vmatpush2.msra.mxu0 0.0
    %3016 = vmatprep.mubr.f32.mxu0 0.0
    %3017 = vmatmul.mubr.f32.gmra.mxu0 %v2639
    %v3018 = vpop.f32.mrf.mxu0
    %v3019 = vadd.f32 %v2631, %v3018
    %v3020 = vpop.f32.mrf.mxu0
    %v3021 = vadd.f32 %v2631, %v3020
    %3022 = vmatprep.mubr.f32.mxu0 0.0
    %3023 = vmatmul.mubr.f32.gmra.mxu0 %v2642
    %v3024 = vpop.f32.mrf.mxu0
    %v3025 = vadd.f32 %v2636, %v3024
    %v3026 = vpop.f32.mrf.mxu0
    %v3027 = vadd.f32 %v2636, %v3026
    %3028 = vdwg.mxu0
    %3029 = vmatprep.subr.mxu0 0.0
    %3030 = vmatpush1.msra.mxu0 0.0
    %3031 = vmatprep.subr.mxu0 0.0
    %3032 = vmatpush1.msra.mxu0 0.0
    %3033 = vmatprep.subr.mxu0 0.0
    %3034 = vmatpush1.msra.mxu0 0.0
    %3035 = vmatprep.subr.mxu0 0.0
    %3036 = vmatpush1.msra.mxu0 0.0
    %3037 = vmatprep.subr.mxu0 0.0
    %3038 = vmatpush1.msra.mxu0 0.0
    %3039 = vmatprep.subr.mxu0 0.0
    %3040 = vmatpush1.msra.mxu0 0.0
    %3041 = vmatprep.subr.mxu0 0.0
    %3042 = vmatpush1.msra.mxu0 0.0
    %3043 = vmatprep.subr.mxu0 0.0
    %3044 = vmatpush1.msra.mxu0 0.0
    %3045 = vmatprep.subr.mxu0 0.0
    %3046 = vmatpush1.msra.mxu0 0.0
    %3047 = vmatprep.subr.mxu0 0.0
    %3048 = vmatpush1.msra.mxu0 0.0
    %3049 = vmatprep.subr.mxu0 0.0
    %3050 = vmatpush1.msra.mxu0 0.0
    %3051 = vmatprep.subr.mxu0 0.0
    %3052 = vmatpush1.msra.mxu0 0.0
    %3053 = vmatprep.subr.mxu0 %v2619
    %3054 = vmatpush1.msra.mxu0 %v2618
    %3055 = vmatprep.subr.mxu0 %v2603
    %3056 = vmatpush1.msra.mxu0 %v2602
    %3057 = vmatprep.subr.mxu0 %v2587
    %3058 = vmatpush1.msra.mxu0 %v2586
    %3059 = vmatprep.subr.mxu0 %v2571
    %3060 = vmatpush1.msra.mxu0 %v2570
    %3061 = vmatprep.subr.mxu0 0.0
    %3062 = vmatpush2.msra.mxu0 0.0
    %3063 = vmatprep.subr.mxu0 0.0
    %3064 = vmatpush2.msra.mxu0 0.0
    %3065 = vmatprep.subr.mxu0 0.0
    %3066 = vmatpush2.msra.mxu0 0.0
    %3067 = vmatprep.subr.mxu0 0.0
    %3068 = vmatpush2.msra.mxu0 0.0
    %3069 = vmatprep.subr.mxu0 0.0
    %3070 = vmatpush2.msra.mxu0 0.0
    %3071 = vmatprep.subr.mxu0 0.0
    %3072 = vmatpush2.msra.mxu0 0.0
    %3073 = vmatprep.subr.mxu0 0.0
    %3074 = vmatpush2.msra.mxu0 0.0
    %3075 = vmatprep.subr.mxu0 0.0
    %3076 = vmatpush2.msra.mxu0 0.0
    %3077 = vmatprep.subr.mxu0 0.0
    %3078 = vmatpush2.msra.mxu0 0.0
    %3079 = vmatprep.subr.mxu0 0.0
    %3080 = vmatpush2.msra.mxu0 0.0
    %3081 = vmatprep.subr.mxu0 0.0
    %3082 = vmatpush2.msra.mxu0 0.0
    %3083 = vmatprep.subr.mxu0 0.0
    %3084 = vmatpush2.msra.mxu0 0.0
    %3085 = vmatprep.subr.mxu0 0.0
    %3086 = vmatpush2.msra.mxu0 0.0
    %3087 = vmatprep.subr.mxu0 0.0
    %3088 = vmatpush2.msra.mxu0 0.0
    %3089 = vmatprep.subr.mxu0 0.0
    %3090 = vmatpush2.msra.mxu0 0.0
    %3091 = vmatprep.subr.mxu0 0.0
    %3092 = vmatpush2.msra.mxu0 0.0
    %3093 = vmatprep.mubr.f32.mxu0 0.0
    %3094 = vmatmul.mubr.f32.gmra.mxu0 %v2639
    %v3095 = vpop.f32.mrf.mxu0
    %v3096 = vadd.f32 %v2631, %v3095
    %v3097 = vpop.f32.mrf.mxu0
    %v3098 = vadd.f32 %v2631, %v3097
    %3099 = vmatprep.mubr.f32.mxu0 0.0
    %3100 = vmatmul.mubr.f32.gmra.mxu0 %v2642
    %v3101 = vpop.f32.mrf.mxu0
    %v3102 = vadd.f32 %v2636, %v3101
    %v3103 = vpop.f32.mrf.mxu0
    %v3104 = vadd.f32 %v2636, %v3103
    %3105 = vdwg.mxu0
    %3106 = vmatprep.subr.mxu0 0.0
    %3107 = vmatpush1.msra.mxu0 0.0
    %3108 = vmatprep.subr.mxu0 0.0
    %3109 = vmatpush1.msra.mxu0 0.0
    %3110 = vmatprep.subr.mxu0 0.0
    %3111 = vmatpush1.msra.mxu0 0.0
    %3112 = vmatprep.subr.mxu0 0.0
    %3113 = vmatpush1.msra.mxu0 0.0
    %3114 = vmatprep.subr.mxu0 0.0
    %3115 = vmatpush1.msra.mxu0 0.0
    %3116 = vmatprep.subr.mxu0 0.0
    %3117 = vmatpush1.msra.mxu0 0.0
    %3118 = vmatprep.subr.mxu0 0.0
    %3119 = vmatpush1.msra.mxu0 0.0
    %3120 = vmatprep.subr.mxu0 0.0
    %3121 = vmatpush1.msra.mxu0 0.0
    %3122 = vmatprep.subr.mxu0 0.0
    %3123 = vmatpush1.msra.mxu0 0.0
    %3124 = vmatprep.subr.mxu0 0.0
    %3125 = vmatpush1.msra.mxu0 0.0
    %3126 = vmatprep.subr.mxu0 0.0
    %3127 = vmatpush1.msra.mxu0 0.0
    %3128 = vmatprep.subr.mxu0 0.0
    %3129 = vmatpush1.msra.mxu0 0.0
    %3130 = vmatprep.subr.mxu0 %v2621
    %3131 = vmatpush1.msra.mxu0 %v2620
    %3132 = vmatprep.subr.mxu0 %v2605
    %3133 = vmatpush1.msra.mxu0 %v2604
    %3134 = vmatprep.subr.mxu0 %v2589
    %3135 = vmatpush1.msra.mxu0 %v2588
    %3136 = vmatprep.subr.mxu0 %v2573
    %3137 = vmatpush1.msra.mxu0 %v2572
    %3138 = vmatprep.subr.mxu0 0.0
    %3139 = vmatpush2.msra.mxu0 0.0
    %3140 = vmatprep.subr.mxu0 0.0
    %3141 = vmatpush2.msra.mxu0 0.0
    %3142 = vmatprep.subr.mxu0 0.0
    %3143 = vmatpush2.msra.mxu0 0.0
    %3144 = vmatprep.subr.mxu0 0.0
    %3145 = vmatpush2.msra.mxu0 0.0
    %3146 = vmatprep.subr.mxu0 0.0
    %3147 = vmatpush2.msra.mxu0 0.0
    %3148 = vmatprep.subr.mxu0 0.0
    %3149 = vmatpush2.msra.mxu0 0.0
    %3150 = vmatprep.subr.mxu0 0.0
    %3151 = vmatpush2.msra.mxu0 0.0
    %3152 = vmatprep.subr.mxu0 0.0
    %3153 = vmatpush2.msra.mxu0 0.0
    %3154 = vmatprep.subr.mxu0 0.0
    %3155 = vmatpush2.msra.mxu0 0.0
    %3156 = vmatprep.subr.mxu0 0.0
    %3157 = vmatpush2.msra.mxu0 0.0
    %3158 = vmatprep.subr.mxu0 0.0
    %3159 = vmatpush2.msra.mxu0 0.0
    %3160 = vmatprep.subr.mxu0 0.0
    %3161 = vmatpush2.msra.mxu0 0.0
    %3162 = vmatprep.subr.mxu0 0.0
    %3163 = vmatpush2.msra.mxu0 0.0
    %3164 = vmatprep.subr.mxu0 0.0
    %3165 = vmatpush2.msra.mxu0 0.0
    %3166 = vmatprep.subr.mxu0 0.0
    %3167 = vmatpush2.msra.mxu0 0.0
    %3168 = vmatprep.subr.mxu0 0.0
    %3169 = vmatpush2.msra.mxu0 0.0
    %3170 = vmatprep.mubr.f32.mxu0 0.0
    %3171 = vmatmul.mubr.f32.gmra.mxu0 %v2639
    %v3172 = vpop.f32.mrf.mxu0
    %v3173 = vadd.f32 %v2631, %v3172
    %v3174 = vpop.f32.mrf.mxu0
    %v3175 = vadd.f32 %v2631, %v3174
    %3176 = vmatprep.mubr.f32.mxu0 0.0
    %3177 = vmatmul.mubr.f32.gmra.mxu0 %v2642
    %v3178 = vpop.f32.mrf.mxu0
    %v3179 = vadd.f32 %v2636, %v3178
    %v3180 = vpop.f32.mrf.mxu0
    %v3181 = vadd.f32 %v2636, %v3180
    %3182 = vdwg.mxu0
    %3183 = vmatprep.subr.mxu0 0.0
    %3184 = vmatpush1.msra.mxu0 0.0
    %3185 = vmatprep.subr.mxu0 0.0
    %3186 = vmatpush1.msra.mxu0 0.0
    %3187 = vmatprep.subr.mxu0 0.0
    %3188 = vmatpush1.msra.mxu0 0.0
    %3189 = vmatprep.subr.mxu0 0.0
    %3190 = vmatpush1.msra.mxu0 0.0
    %3191 = vmatprep.subr.mxu0 0.0
    %3192 = vmatpush1.msra.mxu0 0.0
    %3193 = vmatprep.subr.mxu0 0.0
    %3194 = vmatpush1.msra.mxu0 0.0
    %3195 = vmatprep.subr.mxu0 0.0
    %3196 = vmatpush1.msra.mxu0 0.0
    %3197 = vmatprep.subr.mxu0 0.0
    %3198 = vmatpush1.msra.mxu0 0.0
    %3199 = vmatprep.subr.mxu0 0.0
    %3200 = vmatpush1.msra.mxu0 0.0
    %3201 = vmatprep.subr.mxu0 0.0
    %3202 = vmatpush1.msra.mxu0 0.0
    %3203 = vmatprep.subr.mxu0 0.0
    %3204 = vmatpush1.msra.mxu0 0.0
    %3205 = vmatprep.subr.mxu0 0.0
    %3206 = vmatpush1.msra.mxu0 0.0
    %3207 = vmatprep.subr.mxu0 %v2623
    %3208 = vmatpush1.msra.mxu0 %v2622
    %3209 = vmatprep.subr.mxu0 %v2607
    %3210 = vmatpush1.msra.mxu0 %v2606
    %3211 = vmatprep.subr.mxu0 %v2591
    %3212 = vmatpush1.msra.mxu0 %v2590
    %3213 = vmatprep.subr.mxu0 %v2575
    %3214 = vmatpush1.msra.mxu0 %v2574
    %3215 = vmatprep.subr.mxu0 0.0
    %3216 = vmatpush2.msra.mxu0 0.0
    %3217 = vmatprep.subr.mxu0 0.0
    %3218 = vmatpush2.msra.mxu0 0.0
    %3219 = vmatprep.subr.mxu0 0.0
    %3220 = vmatpush2.msra.mxu0 0.0
    %3221 = vmatprep.subr.mxu0 0.0
    %3222 = vmatpush2.msra.mxu0 0.0
    %3223 = vmatprep.subr.mxu0 0.0
    %3224 = vmatpush2.msra.mxu0 0.0
    %3225 = vmatprep.subr.mxu0 0.0
    %3226 = vmatpush2.msra.mxu0 0.0
    %3227 = vmatprep.subr.mxu0 0.0
    %3228 = vmatpush2.msra.mxu0 0.0
    %3229 = vmatprep.subr.mxu0 0.0
    %3230 = vmatpush2.msra.mxu0 0.0
    %3231 = vmatprep.subr.mxu0 0.0
    %3232 = vmatpush2.msra.mxu0 0.0
    %3233 = vmatprep.subr.mxu0 0.0
    %3234 = vmatpush2.msra.mxu0 0.0
    %3235 = vmatprep.subr.mxu0 0.0
    %3236 = vmatpush2.msra.mxu0 0.0
    %3237 = vmatprep.subr.mxu0 0.0
    %3238 = vmatpush2.msra.mxu0 0.0
    %3239 = vmatprep.subr.mxu0 0.0
    %3240 = vmatpush2.msra.mxu0 0.0
    %3241 = vmatprep.subr.mxu0 0.0
    %3242 = vmatpush2.msra.mxu0 0.0
    %3243 = vmatprep.subr.mxu0 0.0
    %3244 = vmatpush2.msra.mxu0 0.0
    %3245 = vmatprep.subr.mxu0 0.0
    %3246 = vmatpush2.msra.mxu0 0.0
    %3247 = vmatprep.mubr.f32.mxu0 0.0
    %3248 = vmatmul.mubr.f32.gmra.mxu0 %v2639
    %v3249 = vpop.f32.mrf.mxu0
    %v3250 = vadd.f32 %v2631, %v3249
    %v3251 = vpop.f32.mrf.mxu0
    %v3252 = vadd.f32 %v2631, %v3251
    %3253 = vmatprep.mubr.f32.mxu0 0.0
    %3254 = vmatmul.mubr.f32.gmra.mxu0 %v2642
    %v3255 = vpop.f32.mrf.mxu0
    %v3256 = vadd.f32 %v2636, %v3255
    %v3257 = vpop.f32.mrf.mxu0
    %v3258 = vadd.f32 %v2636, %v3257
    %3259 = vdwg.mxu0
    %v3260 = vxor.u32 %v2711, 2147483648
    %v3261 = vxor.u32 %v2713, 2147483648
    %v3262 = vxor.u32 %v2788, 2147483648
    %v3263 = vxor.u32 %v2790, 2147483648
    %v3264 = vxor.u32 %v2865, 2147483648
    %v3265 = vxor.u32 %v2867, 2147483648
    %v3266 = vxor.u32 %v2942, 2147483648
    %v3267 = vxor.u32 %v2944, 2147483648
    %v3268 = vxor.u32 %v3019, 2147483648
    %v3269 = vxor.u32 %v3021, 2147483648
    %v3270 = vxor.u32 %v3096, 2147483648
    %v3271 = vxor.u32 %v3098, 2147483648
    %v3272 = vxor.u32 %v3173, 2147483648
    %v3273 = vxor.u32 %v3175, 2147483648
    %v3274 = vxor.u32 %v3250, 2147483648
    %v3275 = vxor.u32 %v3252, 2147483648
    %v3276 = vxor.u32 %v2717, 2147483648
    %v3277 = vxor.u32 %v2719, 2147483648
    %v3278 = vxor.u32 %v2794, 2147483648
    %v3279 = vxor.u32 %v2796, 2147483648
    %v3280 = vxor.u32 %v2871, 2147483648
    %v3281 = vxor.u32 %v2873, 2147483648
    %v3282 = vxor.u32 %v2948, 2147483648
    %v3283 = vxor.u32 %v2950, 2147483648
    %v3284 = vxor.u32 %v3025, 2147483648
    %v3285 = vxor.u32 %v3027, 2147483648
    %v3286 = vxor.u32 %v3102, 2147483648
    %v3287 = vxor.u32 %v3104, 2147483648
    %v3288 = vxor.u32 %v3179, 2147483648
    %v3289 = vxor.u32 %v3181, 2147483648
    %v3290 = vxor.u32 %v3256, 2147483648
    %v3291 = vxor.u32 %v3258, 2147483648
    %v3292 = vmul.f32 %v3260, 1.442695
    %v3293 = vpow.pop %v3292
    %v3294 = vmul.f32 %v3261, 1.442695
    %v3295 = vpow.pop %v3294
    %v3296 = vmul.f32 %v3262, 1.442695
    %v3297 = vpow.pop %v3296
    %v3298 = vmul.f32 %v3263, 1.442695
    %v3299 = vpow.pop %v3298
    %v3300 = vmul.f32 %v3264, 1.442695
    %v3301 = vpow.pop %v3300
    %v3302 = vmul.f32 %v3265, 1.442695
    %v3303 = vpow.pop %v3302
    %v3304 = vmul.f32 %v3266, 1.442695
    %v3305 = vpow.pop %v3304
    %v3306 = vmul.f32 %v3267, 1.442695
    %v3307 = vpow.pop %v3306
    %v3308 = vmul.f32 %v3268, 1.442695
    %v3309 = vpow.pop %v3308
    %v3310 = vmul.f32 %v3269, 1.442695
    %v3311 = vpow.pop %v3310
    %v3312 = vmul.f32 %v3270, 1.442695
    %v3313 = vpow.pop %v3312
    %v3314 = vmul.f32 %v3271, 1.442695
    %v3315 = vpow.pop %v3314
    %v3316 = vmul.f32 %v3272, 1.442695
    %v3317 = vpow.pop %v3316
    %v3318 = vmul.f32 %v3273, 1.442695
    %v3319 = vpow.pop %v3318
    %v3320 = vmul.f32 %v3274, 1.442695
    %v3321 = vpow.pop %v3320
    %v3322 = vmul.f32 %v3275, 1.442695
    %v3323 = vpow.pop %v3322
    %v3324 = vmul.f32 %v3276, 1.442695
    %v3325 = vpow.pop %v3324
    %v3326 = vmul.f32 %v3277, 1.442695
    %v3327 = vpow.pop %v3326
    %v3328 = vmul.f32 %v3278, 1.442695
    %v3329 = vpow.pop %v3328
    %v3330 = vmul.f32 %v3279, 1.442695
    %v3331 = vpow.pop %v3330
    %v3332 = vmul.f32 %v3280, 1.442695
    %v3333 = vpow.pop %v3332
    %v3334 = vmul.f32 %v3281, 1.442695
    %v3335 = vpow.pop %v3334
    %v3336 = vmul.f32 %v3282, 1.442695
    %v3337 = vpow.pop %v3336
    %v3338 = vmul.f32 %v3283, 1.442695
    %v3339 = vpow.pop %v3338
    %v3340 = vmul.f32 %v3284, 1.442695
    %v3341 = vpow.pop %v3340
    %v3342 = vmul.f32 %v3285, 1.442695
    %v3343 = vpow.pop %v3342
    %v3344 = vmul.f32 %v3286, 1.442695
    %v3345 = vpow.pop %v3344
    %v3346 = vmul.f32 %v3287, 1.442695
    %v3347 = vpow.pop %v3346
    %v3348 = vmul.f32 %v3288, 1.442695
    %v3349 = vpow.pop %v3348
    %v3350 = vmul.f32 %v3289, 1.442695
    %v3351 = vpow.pop %v3350
    %v3352 = vmul.f32 %v3290, 1.442695
    %v3353 = vpow.pop %v3352
    %v3354 = vmul.f32 %v3291, 1.442695
    %v3355 = vpow.pop %v3354
    %v3356 = vadd.f32 %v3293, 1.0
    %v3357 = vadd.f32 %v3295, 1.0
    %v3358 = vadd.f32 %v3297, 1.0
    %v3359 = vadd.f32 %v3299, 1.0
    %v3360 = vadd.f32 %v3301, 1.0
    %v3361 = vadd.f32 %v3303, 1.0
    %v3362 = vadd.f32 %v3305, 1.0
    %v3363 = vadd.f32 %v3307, 1.0
    %v3364 = vadd.f32 %v3309, 1.0
    %v3365 = vadd.f32 %v3311, 1.0
    %v3366 = vadd.f32 %v3313, 1.0
    %v3367 = vadd.f32 %v3315, 1.0
    %v3368 = vadd.f32 %v3317, 1.0
    %v3369 = vadd.f32 %v3319, 1.0
    %v3370 = vadd.f32 %v3321, 1.0
    %v3371 = vadd.f32 %v3323, 1.0
    %v3372 = vadd.f32 %v3325, 1.0
    %v3373 = vadd.f32 %v3327, 1.0
    %v3374 = vadd.f32 %v3329, 1.0
    %v3375 = vadd.f32 %v3331, 1.0
    %v3376 = vadd.f32 %v3333, 1.0
    %v3377 = vadd.f32 %v3335, 1.0
    %v3378 = vadd.f32 %v3337, 1.0
    %v3379 = vadd.f32 %v3339, 1.0
    %v3380 = vadd.f32 %v3341, 1.0
    %v3381 = vadd.f32 %v3343, 1.0
    %v3382 = vadd.f32 %v3345, 1.0
    %v3383 = vadd.f32 %v3347, 1.0
    %v3384 = vadd.f32 %v3349, 1.0
    %v3385 = vadd.f32 %v3351, 1.0
    %v3386 = vadd.f32 %v3353, 1.0
    %v3387 = vadd.f32 %v3355, 1.0
    %v3388 = vrcp.pop %v3356
    %v3389 = vmul.f32 1.0, %v3388
    %v3390 = vrcp.pop %v3357
    %v3391 = vmul.f32 1.0, %v3390
    %v3392 = vrcp.pop %v3358
    %v3393 = vmul.f32 1.0, %v3392
    %v3394 = vrcp.pop %v3359
    %v3395 = vmul.f32 1.0, %v3394
    %v3396 = vrcp.pop %v3360
    %v3397 = vmul.f32 1.0, %v3396
    %v3398 = vrcp.pop %v3361
    %v3399 = vmul.f32 1.0, %v3398
    %v3400 = vrcp.pop %v3362
    %v3401 = vmul.f32 1.0, %v3400
    %v3402 = vrcp.pop %v3363
    %v3403 = vmul.f32 1.0, %v3402
    %v3404 = vrcp.pop %v3364
    %v3405 = vmul.f32 1.0, %v3404
    %v3406 = vrcp.pop %v3365
    %v3407 = vmul.f32 1.0, %v3406
    %v3408 = vrcp.pop %v3366
    %v3409 = vmul.f32 1.0, %v3408
    %v3410 = vrcp.pop %v3367
    %v3411 = vmul.f32 1.0, %v3410
    %v3412 = vrcp.pop %v3368
    %v3413 = vmul.f32 1.0, %v3412
    %v3414 = vrcp.pop %v3369
    %v3415 = vmul.f32 1.0, %v3414
    %v3416 = vrcp.pop %v3370
    %v3417 = vmul.f32 1.0, %v3416
    %v3418 = vrcp.pop %v3371
    %v3419 = vmul.f32 1.0, %v3418
    %v3420 = vrcp.pop %v3372
    %v3421 = vmul.f32 1.0, %v3420
    %v3422 = vrcp.pop %v3373
    %v3423 = vmul.f32 1.0, %v3422
    %v3424 = vrcp.pop %v3374
    %v3425 = vmul.f32 1.0, %v3424
    %v3426 = vrcp.pop %v3375
    %v3427 = vmul.f32 1.0, %v3426
    %v3428 = vrcp.pop %v3376
    %v3429 = vmul.f32 1.0, %v3428
    %v3430 = vrcp.pop %v3377
    %v3431 = vmul.f32 1.0, %v3430
    %v3432 = vrcp.pop %v3378
    %v3433 = vmul.f32 1.0, %v3432
    %v3434 = vrcp.pop %v3379
    %v3435 = vmul.f32 1.0, %v3434
    %v3436 = vrcp.pop %v3380
    %v3437 = vmul.f32 1.0, %v3436
    %v3438 = vrcp.pop %v3381
    %v3439 = vmul.f32 1.0, %v3438
    %v3440 = vrcp.pop %v3382
    %v3441 = vmul.f32 1.0, %v3440
    %v3442 = vrcp.pop %v3383
    %v3443 = vmul.f32 1.0, %v3442
    %v3444 = vrcp.pop %v3384
    %v3445 = vmul.f32 1.0, %v3444
    %v3446 = vrcp.pop %v3385
    %v3447 = vmul.f32 1.0, %v3446
    %v3448 = vrcp.pop %v3386
    %v3449 = vmul.f32 1.0, %v3448
    %v3450 = vrcp.pop %v3387
    %v3451 = vmul.f32 1.0, %v3450
    %v3452 = vmul.f32 %v2711, %v3389
    %v3453 = vmul.f32 %v2713, %v3391
    %v3454 = vmul.f32 %v2788, %v3393
    %v3455 = vmul.f32 %v2790, %v3395
    %v3456 = vmul.f32 %v2865, %v3397
    %v3457 = vmul.f32 %v2867, %v3399
    %v3458 = vmul.f32 %v2942, %v3401
    %v3459 = vmul.f32 %v2944, %v3403
    %v3460 = vmul.f32 %v3019, %v3405
    %v3461 = vmul.f32 %v3021, %v3407
    %v3462 = vmul.f32 %v3096, %v3409
    %v3463 = vmul.f32 %v3098, %v3411
    %v3464 = vmul.f32 %v3173, %v3413
    %v3465 = vmul.f32 %v3175, %v3415
    %v3466 = vmul.f32 %v3250, %v3417
    %v3467 = vmul.f32 %v3252, %v3419
    %v3468 = vmul.f32 %v2717, %v3421
    %v3469 = vmul.f32 %v2719, %v3423
    %v3470 = vmul.f32 %v2794, %v3425
    %v3471 = vmul.f32 %v2796, %v3427
    %v3472 = vmul.f32 %v2871, %v3429
    %v3473 = vmul.f32 %v2873, %v3431
    %v3474 = vmul.f32 %v2948, %v3433
    %v3475 = vmul.f32 %v2950, %v3435
    %v3476 = vmul.f32 %v3025, %v3437
    %v3477 = vmul.f32 %v3027, %v3439
    %v3478 = vmul.f32 %v3102, %v3441
    %v3479 = vmul.f32 %v3104, %v3443
    %v3480 = vmul.f32 %v3179, %v3445
    %v3481 = vmul.f32 %v3181, %v3447
    %v3482 = vmul.f32 %v3256, %v3449
    %v3483 = vmul.f32 %v3258, %v3451
    %v3484 = vld [vmem:[%s9] sm:$0xff]
    %v3485 = vld [vmem:[%s9 + $0x8] sm:$0xff]
    %v3486 = vld [vmem:[%s9 + $0x10] sm:$0xff]
    %v3487 = vld [vmem:[%s9 + $0x18] sm:$0xff]
    %vm3488 = vcmask 130048
    %v3490 = vsel %vm3488, %v3484, 0
    %v3493 = vsel %vm3488, %v3485, 0
    %v3496 = vsel %vm3488, %v3486, 0
    %v3499 = vsel %vm3488, %v3487, 0
    %3501 = vmatprep.subr.mxu0 0.0
    %3502 = vmatpush1.msra.mxu0 0.0
    %3503 = vmatprep.subr.mxu0 0.0
    %3504 = vmatpush1.msra.mxu0 0.0
    %3505 = vmatprep.subr.mxu0 0.0
    %3506 = vmatpush1.msra.mxu0 0.0
    %3507 = vmatprep.subr.mxu0 0.0
    %3508 = vmatpush1.msra.mxu0 0.0
    %3509 = vmatprep.subr.mxu0 0.0
    %3510 = vmatpush1.msra.mxu0 0.0
    %3511 = vmatprep.subr.mxu0 0.0
    %3512 = vmatpush1.msra.mxu0 0.0
    %3513 = vmatprep.subr.mxu0 0.0
    %3514 = vmatpush1.msra.mxu0 0.0
    %3515 = vmatprep.subr.mxu0 0.0
    %3516 = vmatpush1.msra.mxu0 0.0
    %3517 = vmatprep.subr.mxu0 0.0
    %3518 = vmatpush1.msra.mxu0 0.0
    %3519 = vmatprep.subr.mxu0 0.0
    %3520 = vmatpush1.msra.mxu0 0.0
    %3521 = vmatprep.subr.mxu0 0.0
    %3522 = vmatpush1.msra.mxu0 0.0
    %3523 = vmatprep.subr.mxu0 0.0
    %3524 = vmatpush1.msra.mxu0 0.0
    %3525 = vmatprep.subr.mxu0 0.0
    %3526 = vmatpush1.msra.mxu0 0.0
    %3527 = vmatprep.subr.mxu0 0.0
    %3528 = vmatpush1.msra.mxu0 0.0
    %3529 = vmatprep.subr.mxu0 %v3469
    %3530 = vmatpush1.msra.mxu0 %v3468
    %3531 = vmatprep.subr.mxu0 %v3453
    %3532 = vmatpush1.msra.mxu0 %v3452
    %3533 = vmatprep.subr.mxu0 0.0
    %3534 = vmatpush2.msra.mxu0 0.0
    %3535 = vmatprep.subr.mxu0 0.0
    %3536 = vmatpush2.msra.mxu0 0.0
    %3537 = vmatprep.subr.mxu0 0.0
    %3538 = vmatpush2.msra.mxu0 0.0
    %3539 = vmatprep.subr.mxu0 0.0
    %3540 = vmatpush2.msra.mxu0 0.0
    %3541 = vmatprep.subr.mxu0 0.0
    %3542 = vmatpush2.msra.mxu0 0.0
    %3543 = vmatprep.subr.mxu0 0.0
    %3544 = vmatpush2.msra.mxu0 0.0
    %3545 = vmatprep.subr.mxu0 0.0
    %3546 = vmatpush2.msra.mxu0 0.0
    %3547 = vmatprep.subr.mxu0 0.0
    %3548 = vmatpush2.msra.mxu0 0.0
    %3549 = vmatprep.subr.mxu0 0.0
    %3550 = vmatpush2.msra.mxu0 0.0
    %3551 = vmatprep.subr.mxu0 0.0
    %3552 = vmatpush2.msra.mxu0 0.0
    %3553 = vmatprep.subr.mxu0 0.0
    %3554 = vmatpush2.msra.mxu0 0.0
    %3555 = vmatprep.subr.mxu0 0.0
    %3556 = vmatpush2.msra.mxu0 0.0
    %3557 = vmatprep.subr.mxu0 0.0
    %3558 = vmatpush2.msra.mxu0 0.0
    %3559 = vmatprep.subr.mxu0 0.0
    %3560 = vmatpush2.msra.mxu0 0.0
    %3561 = vmatprep.subr.mxu0 0.0
    %3562 = vmatpush2.msra.mxu0 0.0
    %3563 = vmatprep.subr.mxu0 0.0
    %3564 = vmatpush2.msra.mxu0 0.0
    %3565 = vmatprep.mubr.f32.mxu0 0.0
    %3566 = vmatmul.mubr.f32.gmra.mxu0 %v3490
    %v3567 = vpop.f32.mrf.mxu0
    %v3568 = vadd.f32 0.0, %v3567
    %v3569 = vpop.f32.mrf.mxu0
    %v3570 = vadd.f32 0.0, %v3569
    %3571 = vmatprep.mubr.f32.mxu0 0.0
    %3572 = vmatmul.mubr.f32.gmra.mxu0 %v3493
    %v3573 = vpop.f32.mrf.mxu0
    %v3574 = vadd.f32 0.0, %v3573
    %v3575 = vpop.f32.mrf.mxu0
    %v3576 = vadd.f32 0.0, %v3575
    %3577 = vmatprep.mubr.f32.mxu0 0.0
    %3578 = vmatmul.mubr.f32.gmra.mxu0 %v3496
    %v3579 = vpop.f32.mrf.mxu0
    %v3580 = vadd.f32 0.0, %v3579
    %v3581 = vpop.f32.mrf.mxu0
    %v3582 = vadd.f32 0.0, %v3581
    %3583 = vmatprep.mubr.f32.mxu0 0.0
    %3584 = vmatmul.mubr.f32.gmra.mxu0 %v3499
    %v3585 = vpop.f32.mrf.mxu0
    %v3586 = vadd.f32 0.0, %v3585
    %v3587 = vpop.f32.mrf.mxu0
    %v3588 = vadd.f32 0.0, %v3587
    %3589 = vdwg.mxu0
    %3590 = vmatprep.subr.mxu0 0.0
    %3591 = vmatpush1.msra.mxu0 0.0
    %3592 = vmatprep.subr.mxu0 0.0
    %3593 = vmatpush1.msra.mxu0 0.0
    %3594 = vmatprep.subr.mxu0 0.0
    %3595 = vmatpush1.msra.mxu0 0.0
    %3596 = vmatprep.subr.mxu0 0.0
    %3597 = vmatpush1.msra.mxu0 0.0
    %3598 = vmatprep.subr.mxu0 0.0
    %3599 = vmatpush1.msra.mxu0 0.0
    %3600 = vmatprep.subr.mxu0 0.0
    %3601 = vmatpush1.msra.mxu0 0.0
    %3602 = vmatprep.subr.mxu0 0.0
    %3603 = vmatpush1.msra.mxu0 0.0
    %3604 = vmatprep.subr.mxu0 0.0
    %3605 = vmatpush1.msra.mxu0 0.0
    %3606 = vmatprep.subr.mxu0 0.0
    %3607 = vmatpush1.msra.mxu0 0.0
    %3608 = vmatprep.subr.mxu0 0.0
    %3609 = vmatpush1.msra.mxu0 0.0
    %3610 = vmatprep.subr.mxu0 0.0
    %3611 = vmatpush1.msra.mxu0 0.0
    %3612 = vmatprep.subr.mxu0 0.0
    %3613 = vmatpush1.msra.mxu0 0.0
    %3614 = vmatprep.subr.mxu0 0.0
    %3615 = vmatpush1.msra.mxu0 0.0
    %3616 = vmatprep.subr.mxu0 0.0
    %3617 = vmatpush1.msra.mxu0 0.0
    %3618 = vmatprep.subr.mxu0 %v3471
    %3619 = vmatpush1.msra.mxu0 %v3470
    %3620 = vmatprep.subr.mxu0 %v3455
    %3621 = vmatpush1.msra.mxu0 %v3454
    %3622 = vmatprep.subr.mxu0 0.0
    %3623 = vmatpush2.msra.mxu0 0.0
    %3624 = vmatprep.subr.mxu0 0.0
    %3625 = vmatpush2.msra.mxu0 0.0
    %3626 = vmatprep.subr.mxu0 0.0
    %3627 = vmatpush2.msra.mxu0 0.0
    %3628 = vmatprep.subr.mxu0 0.0
    %3629 = vmatpush2.msra.mxu0 0.0
    %3630 = vmatprep.subr.mxu0 0.0
    %3631 = vmatpush2.msra.mxu0 0.0
    %3632 = vmatprep.subr.mxu0 0.0
    %3633 = vmatpush2.msra.mxu0 0.0
    %3634 = vmatprep.subr.mxu0 0.0
    %3635 = vmatpush2.msra.mxu0 0.0
    %3636 = vmatprep.subr.mxu0 0.0
    %3637 = vmatpush2.msra.mxu0 0.0
    %3638 = vmatprep.subr.mxu0 0.0
    %3639 = vmatpush2.msra.mxu0 0.0
    %3640 = vmatprep.subr.mxu0 0.0
    %3641 = vmatpush2.msra.mxu0 0.0
    %3642 = vmatprep.subr.mxu0 0.0
    %3643 = vmatpush2.msra.mxu0 0.0
    %3644 = vmatprep.subr.mxu0 0.0
    %3645 = vmatpush2.msra.mxu0 0.0
    %3646 = vmatprep.subr.mxu0 0.0
    %3647 = vmatpush2.msra.mxu0 0.0
    %3648 = vmatprep.subr.mxu0 0.0
    %3649 = vmatpush2.msra.mxu0 0.0
    %3650 = vmatprep.subr.mxu0 0.0
    %3651 = vmatpush2.msra.mxu0 0.0
    %3652 = vmatprep.subr.mxu0 0.0
    %3653 = vmatpush2.msra.mxu0 0.0
    %3654 = vmatprep.mubr.f32.mxu0 0.0
    %3655 = vmatmul.mubr.f32.gmra.mxu0 %v3490
    %v3656 = vpop.f32.mrf.mxu0
    %v3657 = vadd.f32 0.0, %v3656
    %v3658 = vpop.f32.mrf.mxu0
    %v3659 = vadd.f32 0.0, %v3658
    %3660 = vmatprep.mubr.f32.mxu0 0.0
    %3661 = vmatmul.mubr.f32.gmra.mxu0 %v3493
    %v3662 = vpop.f32.mrf.mxu0
    %v3663 = vadd.f32 0.0, %v3662
    %v3664 = vpop.f32.mrf.mxu0
    %v3665 = vadd.f32 0.0, %v3664
    %3666 = vmatprep.mubr.f32.mxu0 0.0
    %3667 = vmatmul.mubr.f32.gmra.mxu0 %v3496
    %v3668 = vpop.f32.mrf.mxu0
    %v3669 = vadd.f32 0.0, %v3668
    %v3670 = vpop.f32.mrf.mxu0
    %v3671 = vadd.f32 0.0, %v3670
    %3672 = vmatprep.mubr.f32.mxu0 0.0
    %3673 = vmatmul.mubr.f32.gmra.mxu0 %v3499
    %v3674 = vpop.f32.mrf.mxu0
    %v3675 = vadd.f32 0.0, %v3674
    %v3676 = vpop.f32.mrf.mxu0
    %v3677 = vadd.f32 0.0, %v3676
    %3678 = vdwg.mxu0
    %3679 = vmatprep.subr.mxu0 0.0
    %3680 = vmatpush1.msra.mxu0 0.0
    %3681 = vmatprep.subr.mxu0 0.0
    %3682 = vmatpush1.msra.mxu0 0.0
    %3683 = vmatprep.subr.mxu0 0.0
    %3684 = vmatpush1.msra.mxu0 0.0
    %3685 = vmatprep.subr.mxu0 0.0
    %3686 = vmatpush1.msra.mxu0 0.0
    %3687 = vmatprep.subr.mxu0 0.0
    %3688 = vmatpush1.msra.mxu0 0.0
    %3689 = vmatprep.subr.mxu0 0.0
    %3690 = vmatpush1.msra.mxu0 0.0
    %3691 = vmatprep.subr.mxu0 0.0
    %3692 = vmatpush1.msra.mxu0 0.0
    %3693 = vmatprep.subr.mxu0 0.0
    %3694 = vmatpush1.msra.mxu0 0.0
    %3695 = vmatprep.subr.mxu0 0.0
    %3696 = vmatpush1.msra.mxu0 0.0
    %3697 = vmatprep.subr.mxu0 0.0
    %3698 = vmatpush1.msra.mxu0 0.0
    %3699 = vmatprep.subr.mxu0 0.0
    %3700 = vmatpush1.msra.mxu0 0.0
    %3701 = vmatprep.subr.mxu0 0.0
    %3702 = vmatpush1.msra.mxu0 0.0
    %3703 = vmatprep.subr.mxu0 0.0
    %3704 = vmatpush1.msra.mxu0 0.0
    %3705 = vmatprep.subr.mxu0 0.0
    %3706 = vmatpush1.msra.mxu0 0.0
    %3707 = vmatprep.subr.mxu0 %v3473
    %3708 = vmatpush1.msra.mxu0 %v3472
    %3709 = vmatprep.subr.mxu0 %v3457
    %3710 = vmatpush1.msra.mxu0 %v3456
    %3711 = vmatprep.subr.mxu0 0.0
    %3712 = vmatpush2.msra.mxu0 0.0
    %3713 = vmatprep.subr.mxu0 0.0
    %3714 = vmatpush2.msra.mxu0 0.0
    %3715 = vmatprep.subr.mxu0 0.0
    %3716 = vmatpush2.msra.mxu0 0.0
    %3717 = vmatprep.subr.mxu0 0.0
    %3718 = vmatpush2.msra.mxu0 0.0
    %3719 = vmatprep.subr.mxu0 0.0
    %3720 = vmatpush2.msra.mxu0 0.0
    %3721 = vmatprep.subr.mxu0 0.0
    %3722 = vmatpush2.msra.mxu0 0.0
    %3723 = vmatprep.subr.mxu0 0.0
    %3724 = vmatpush2.msra.mxu0 0.0
    %3725 = vmatprep.subr.mxu0 0.0
    %3726 = vmatpush2.msra.mxu0 0.0
    %3727 = vmatprep.subr.mxu0 0.0
    %3728 = vmatpush2.msra.mxu0 0.0
    %3729 = vmatprep.subr.mxu0 0.0
    %3730 = vmatpush2.msra.mxu0 0.0
    %3731 = vmatprep.subr.mxu0 0.0
    %3732 = vmatpush2.msra.mxu0 0.0
    %3733 = vmatprep.subr.mxu0 0.0
    %3734 = vmatpush2.msra.mxu0 0.0
    %3735 = vmatprep.subr.mxu0 0.0
    %3736 = vmatpush2.msra.mxu0 0.0
    %3737 = vmatprep.subr.mxu0 0.0
    %3738 = vmatpush2.msra.mxu0 0.0
    %3739 = vmatprep.subr.mxu0 0.0
    %3740 = vmatpush2.msra.mxu0 0.0
    %3741 = vmatprep.subr.mxu0 0.0
    %3742 = vmatpush2.msra.mxu0 0.0
    %3743 = vmatprep.mubr.f32.mxu0 0.0
    %3744 = vmatmul.mubr.f32.gmra.mxu0 %v3490
    %v3745 = vpop.f32.mrf.mxu0
    %v3746 = vadd.f32 0.0, %v3745
    %v3747 = vpop.f32.mrf.mxu0
    %v3748 = vadd.f32 0.0, %v3747
    %3749 = vmatprep.mubr.f32.mxu0 0.0
    %3750 = vmatmul.mubr.f32.gmra.mxu0 %v3493
    %v3751 = vpop.f32.mrf.mxu0
    %v3752 = vadd.f32 0.0, %v3751
    %v3753 = vpop.f32.mrf.mxu0
    %v3754 = vadd.f32 0.0, %v3753
    %3755 = vmatprep.mubr.f32.mxu0 0.0
    %3756 = vmatmul.mubr.f32.gmra.mxu0 %v3496
    %v3757 = vpop.f32.mrf.mxu0
    %v3758 = vadd.f32 0.0, %v3757
    %v3759 = vpop.f32.mrf.mxu0
    %v3760 = vadd.f32 0.0, %v3759
    %3761 = vmatprep.mubr.f32.mxu0 0.0
    %3762 = vmatmul.mubr.f32.gmra.mxu0 %v3499
    %v3763 = vpop.f32.mrf.mxu0
    %v3764 = vadd.f32 0.0, %v3763
    %v3765 = vpop.f32.mrf.mxu0
    %v3766 = vadd.f32 0.0, %v3765
    %3767 = vdwg.mxu0
    %3768 = vmatprep.subr.mxu0 0.0
    %3769 = vmatpush1.msra.mxu0 0.0
    %3770 = vmatprep.subr.mxu0 0.0
    %3771 = vmatpush1.msra.mxu0 0.0
    %3772 = vmatprep.subr.mxu0 0.0
    %3773 = vmatpush1.msra.mxu0 0.0
    %3774 = vmatprep.subr.mxu0 0.0
    %3775 = vmatpush1.msra.mxu0 0.0
    %3776 = vmatprep.subr.mxu0 0.0
    %3777 = vmatpush1.msra.mxu0 0.0
    %3778 = vmatprep.subr.mxu0 0.0
    %3779 = vmatpush1.msra.mxu0 0.0
    %3780 = vmatprep.subr.mxu0 0.0
    %3781 = vmatpush1.msra.mxu0 0.0
    %3782 = vmatprep.subr.mxu0 0.0
    %3783 = vmatpush1.msra.mxu0 0.0
    %3784 = vmatprep.subr.mxu0 0.0
    %3785 = vmatpush1.msra.mxu0 0.0
    %3786 = vmatprep.subr.mxu0 0.0
    %3787 = vmatpush1.msra.mxu0 0.0
    %3788 = vmatprep.subr.mxu0 0.0
    %3789 = vmatpush1.msra.mxu0 0.0
    %3790 = vmatprep.subr.mxu0 0.0
    %3791 = vmatpush1.msra.mxu0 0.0
    %3792 = vmatprep.subr.mxu0 0.0
    %3793 = vmatpush1.msra.mxu0 0.0
    %3794 = vmatprep.subr.mxu0 0.0
    %3795 = vmatpush1.msra.mxu0 0.0
    %3796 = vmatprep.subr.mxu0 %v3475
    %3797 = vmatpush1.msra.mxu0 %v3474
    %3798 = vmatprep.subr.mxu0 %v3459
    %3799 = vmatpush1.msra.mxu0 %v3458
    %3800 = vmatprep.subr.mxu0 0.0
    %3801 = vmatpush2.msra.mxu0 0.0
    %3802 = vmatprep.subr.mxu0 0.0
    %3803 = vmatpush2.msra.mxu0 0.0
    %3804 = vmatprep.subr.mxu0 0.0
    %3805 = vmatpush2.msra.mxu0 0.0
    %3806 = vmatprep.subr.mxu0 0.0
    %3807 = vmatpush2.msra.mxu0 0.0
    %3808 = vmatprep.subr.mxu0 0.0
    %3809 = vmatpush2.msra.mxu0 0.0
    %3810 = vmatprep.subr.mxu0 0.0
    %3811 = vmatpush2.msra.mxu0 0.0
    %3812 = vmatprep.subr.mxu0 0.0
    %3813 = vmatpush2.msra.mxu0 0.0
    %3814 = vmatprep.subr.mxu0 0.0
    %3815 = vmatpush2.msra.mxu0 0.0
    %3816 = vmatprep.subr.mxu0 0.0
    %3817 = vmatpush2.msra.mxu0 0.0
    %3818 = vmatprep.subr.mxu0 0.0
    %3819 = vmatpush2.msra.mxu0 0.0
    %3820 = vmatprep.subr.mxu0 0.0
    %3821 = vmatpush2.msra.mxu0 0.0
    %3822 = vmatprep.subr.mxu0 0.0
    %3823 = vmatpush2.msra.mxu0 0.0
    %3824 = vmatprep.subr.mxu0 0.0
    %3825 = vmatpush2.msra.mxu0 0.0
    %3826 = vmatprep.subr.mxu0 0.0
    %3827 = vmatpush2.msra.mxu0 0.0
    %3828 = vmatprep.subr.mxu0 0.0
    %3829 = vmatpush2.msra.mxu0 0.0
    %3830 = vmatprep.subr.mxu0 0.0
    %3831 = vmatpush2.msra.mxu0 0.0
    %3832 = vmatprep.mubr.f32.mxu0 0.0
    %3833 = vmatmul.mubr.f32.gmra.mxu0 %v3490
    %v3834 = vpop.f32.mrf.mxu0
    %v3835 = vadd.f32 0.0, %v3834
    %v3836 = vpop.f32.mrf.mxu0
    %v3837 = vadd.f32 0.0, %v3836
    %3838 = vmatprep.mubr.f32.mxu0 0.0
    %3839 = vmatmul.mubr.f32.gmra.mxu0 %v3493
    %v3840 = vpop.f32.mrf.mxu0
    %v3841 = vadd.f32 0.0, %v3840
    %v3842 = vpop.f32.mrf.mxu0
    %v3843 = vadd.f32 0.0, %v3842
    %3844 = vmatprep.mubr.f32.mxu0 0.0
    %3845 = vmatmul.mubr.f32.gmra.mxu0 %v3496
    %v3846 = vpop.f32.mrf.mxu0
    %v3847 = vadd.f32 0.0, %v3846
    %v3848 = vpop.f32.mrf.mxu0
    %v3849 = vadd.f32 0.0, %v3848
    %3850 = vmatprep.mubr.f32.mxu0 0.0
    %3851 = vmatmul.mubr.f32.gmra.mxu0 %v3499
    %v3852 = vpop.f32.mrf.mxu0
    %v3853 = vadd.f32 0.0, %v3852
    %v3854 = vpop.f32.mrf.mxu0
    %v3855 = vadd.f32 0.0, %v3854
    %3856 = vdwg.mxu0
    %3857 = vmatprep.subr.mxu0 0.0
    %3858 = vmatpush1.msra.mxu0 0.0
    %3859 = vmatprep.subr.mxu0 0.0
    %3860 = vmatpush1.msra.mxu0 0.0
    %3861 = vmatprep.subr.mxu0 0.0
    %3862 = vmatpush1.msra.mxu0 0.0
    %3863 = vmatprep.subr.mxu0 0.0
    %3864 = vmatpush1.msra.mxu0 0.0
    %3865 = vmatprep.subr.mxu0 0.0
    %3866 = vmatpush1.msra.mxu0 0.0
    %3867 = vmatprep.subr.mxu0 0.0
    %3868 = vmatpush1.msra.mxu0 0.0
    %3869 = vmatprep.subr.mxu0 0.0
    %3870 = vmatpush1.msra.mxu0 0.0
    %3871 = vmatprep.subr.mxu0 0.0
    %3872 = vmatpush1.msra.mxu0 0.0
    %3873 = vmatprep.subr.mxu0 0.0
    %3874 = vmatpush1.msra.mxu0 0.0
    %3875 = vmatprep.subr.mxu0 0.0
    %3876 = vmatpush1.msra.mxu0 0.0
    %3877 = vmatprep.subr.mxu0 0.0
    %3878 = vmatpush1.msra.mxu0 0.0
    %3879 = vmatprep.subr.mxu0 0.0
    %3880 = vmatpush1.msra.mxu0 0.0
    %3881 = vmatprep.subr.mxu0 0.0
    %3882 = vmatpush1.msra.mxu0 0.0
    %3883 = vmatprep.subr.mxu0 0.0
    %3884 = vmatpush1.msra.mxu0 0.0
    %3885 = vmatprep.subr.mxu0 %v3477
    %3886 = vmatpush1.msra.mxu0 %v3476
    %3887 = vmatprep.subr.mxu0 %v3461
    %3888 = vmatpush1.msra.mxu0 %v3460
    %3889 = vmatprep.subr.mxu0 0.0
    %3890 = vmatpush2.msra.mxu0 0.0
    %3891 = vmatprep.subr.mxu0 0.0
    %3892 = vmatpush2.msra.mxu0 0.0
    %3893 = vmatprep.subr.mxu0 0.0
    %3894 = vmatpush2.msra.mxu0 0.0
    %3895 = vmatprep.subr.mxu0 0.0
    %3896 = vmatpush2.msra.mxu0 0.0
    %3897 = vmatprep.subr.mxu0 0.0
    %3898 = vmatpush2.msra.mxu0 0.0
    %3899 = vmatprep.subr.mxu0 0.0
    %3900 = vmatpush2.msra.mxu0 0.0
    %3901 = vmatprep.subr.mxu0 0.0
    %3902 = vmatpush2.msra.mxu0 0.0
    %3903 = vmatprep.subr.mxu0 0.0
    %3904 = vmatpush2.msra.mxu0 0.0
    %3905 = vmatprep.subr.mxu0 0.0
    %3906 = vmatpush2.msra.mxu0 0.0
    %3907 = vmatprep.subr.mxu0 0.0
    %3908 = vmatpush2.msra.mxu0 0.0
    %3909 = vmatprep.subr.mxu0 0.0
    %3910 = vmatpush2.msra.mxu0 0.0
    %3911 = vmatprep.subr.mxu0 0.0
    %3912 = vmatpush2.msra.mxu0 0.0
    %3913 = vmatprep.subr.mxu0 0.0
    %3914 = vmatpush2.msra.mxu0 0.0
    %3915 = vmatprep.subr.mxu0 0.0
    %3916 = vmatpush2.msra.mxu0 0.0
    %3917 = vmatprep.subr.mxu0 0.0
    %3918 = vmatpush2.msra.mxu0 0.0
    %3919 = vmatprep.subr.mxu0 0.0
    %3920 = vmatpush2.msra.mxu0 0.0
    %3921 = vmatprep.mubr.f32.mxu0 0.0
    %3922 = vmatmul.mubr.f32.gmra.mxu0 %v3490
    %v3923 = vpop.f32.mrf.mxu0
    %v3924 = vadd.f32 0.0, %v3923
    %v3925 = vpop.f32.mrf.mxu0
    %v3926 = vadd.f32 0.0, %v3925
    %3927 = vmatprep.mubr.f32.mxu0 0.0
    %3928 = vmatmul.mubr.f32.gmra.mxu0 %v3493
    %v3929 = vpop.f32.mrf.mxu0
    %v3930 = vadd.f32 0.0, %v3929
    %v3931 = vpop.f32.mrf.mxu0
    %v3932 = vadd.f32 0.0, %v3931
    %3933 = vmatprep.mubr.f32.mxu0 0.0
    %3934 = vmatmul.mubr.f32.gmra.mxu0 %v3496
    %v3935 = vpop.f32.mrf.mxu0
    %v3936 = vadd.f32 0.0, %v3935
    %v3937 = vpop.f32.mrf.mxu0
    %v3938 = vadd.f32 0.0, %v3937
    %3939 = vmatprep.mubr.f32.mxu0 0.0
    %3940 = vmatmul.mubr.f32.gmra.mxu0 %v3499
    %v3941 = vpop.f32.mrf.mxu0
    %v3942 = vadd.f32 0.0, %v3941
    %v3943 = vpop.f32.mrf.mxu0
    %v3944 = vadd.f32 0.0, %v3943
    %3945 = vdwg.mxu0
    %3946 = vmatprep.subr.mxu0 0.0
    %3947 = vmatpush1.msra.mxu0 0.0
    %3948 = vmatprep.subr.mxu0 0.0
    %3949 = vmatpush1.msra.mxu0 0.0
    %3950 = vmatprep.subr.mxu0 0.0
    %3951 = vmatpush1.msra.mxu0 0.0
    %3952 = vmatprep.subr.mxu0 0.0
    %3953 = vmatpush1.msra.mxu0 0.0
    %3954 = vmatprep.subr.mxu0 0.0
    %3955 = vmatpush1.msra.mxu0 0.0
    %3956 = vmatprep.subr.mxu0 0.0
    %3957 = vmatpush1.msra.mxu0 0.0
    %3958 = vmatprep.subr.mxu0 0.0
    %3959 = vmatpush1.msra.mxu0 0.0
    %3960 = vmatprep.subr.mxu0 0.0
    %3961 = vmatpush1.msra.mxu0 0.0
    %3962 = vmatprep.subr.mxu0 0.0
    %3963 = vmatpush1.msra.mxu0 0.0
    %3964 = vmatprep.subr.mxu0 0.0
    %3965 = vmatpush1.msra.mxu0 0.0
    %3966 = vmatprep.subr.mxu0 0.0
    %3967 = vmatpush1.msra.mxu0 0.0
    %3968 = vmatprep.subr.mxu0 0.0
    %3969 = vmatpush1.msra.mxu0 0.0
    %3970 = vmatprep.subr.mxu0 0.0
    %3971 = vmatpush1.msra.mxu0 0.0
    %3972 = vmatprep.subr.mxu0 0.0
    %3973 = vmatpush1.msra.mxu0 0.0
    %3974 = vmatprep.subr.mxu0 %v3479
    %3975 = vmatpush1.msra.mxu0 %v3478
    %3976 = vmatprep.subr.mxu0 %v3463
    %3977 = vmatpush1.msra.mxu0 %v3462
    %3978 = vmatprep.subr.mxu0 0.0
    %3979 = vmatpush2.msra.mxu0 0.0
    %3980 = vmatprep.subr.mxu0 0.0
    %3981 = vmatpush2.msra.mxu0 0.0
    %3982 = vmatprep.subr.mxu0 0.0
    %3983 = vmatpush2.msra.mxu0 0.0
    %3984 = vmatprep.subr.mxu0 0.0
    %3985 = vmatpush2.msra.mxu0 0.0
    %3986 = vmatprep.subr.mxu0 0.0
    %3987 = vmatpush2.msra.mxu0 0.0
    %3988 = vmatprep.subr.mxu0 0.0
    %3989 = vmatpush2.msra.mxu0 0.0
    %3990 = vmatprep.subr.mxu0 0.0
    %3991 = vmatpush2.msra.mxu0 0.0
    %3992 = vmatprep.subr.mxu0 0.0
    %3993 = vmatpush2.msra.mxu0 0.0
    %3994 = vmatprep.subr.mxu0 0.0
    %3995 = vmatpush2.msra.mxu0 0.0
    %3996 = vmatprep.subr.mxu0 0.0
    %3997 = vmatpush2.msra.mxu0 0.0
    %3998 = vmatprep.subr.mxu0 0.0
    %3999 = vmatpush2.msra.mxu0 0.0
    %4000 = vmatprep.subr.mxu0 0.0
    %4001 = vmatpush2.msra.mxu0 0.0
    %4002 = vmatprep.subr.mxu0 0.0
    %4003 = vmatpush2.msra.mxu0 0.0
    %4004 = vmatprep.subr.mxu0 0.0
    %4005 = vmatpush2.msra.mxu0 0.0
    %4006 = vmatprep.subr.mxu0 0.0
    %4007 = vmatpush2.msra.mxu0 0.0
    %4008 = vmatprep.subr.mxu0 0.0
    %4009 = vmatpush2.msra.mxu0 0.0
    %4010 = vmatprep.mubr.f32.mxu0 0.0
    %4011 = vmatmul.mubr.f32.gmra.mxu0 %v3490
    %v4012 = vpop.f32.mrf.mxu0
    %v4013 = vadd.f32 0.0, %v4012
    %v4014 = vpop.f32.mrf.mxu0
    %v4015 = vadd.f32 0.0, %v4014
    %4016 = vmatprep.mubr.f32.mxu0 0.0
    %4017 = vmatmul.mubr.f32.gmra.mxu0 %v3493
    %v4018 = vpop.f32.mrf.mxu0
    %v4019 = vadd.f32 0.0, %v4018
    %v4020 = vpop.f32.mrf.mxu0
    %v4021 = vadd.f32 0.0, %v4020
    %4022 = vmatprep.mubr.f32.mxu0 0.0
    %4023 = vmatmul.mubr.f32.gmra.mxu0 %v3496
    %v4024 = vpop.f32.mrf.mxu0
    %v4025 = vadd.f32 0.0, %v4024
    %v4026 = vpop.f32.mrf.mxu0
    %v4027 = vadd.f32 0.0, %v4026
    %4028 = vmatprep.mubr.f32.mxu0 0.0
    %4029 = vmatmul.mubr.f32.gmra.mxu0 %v3499
    %v4030 = vpop.f32.mrf.mxu0
    %v4031 = vadd.f32 0.0, %v4030
    %v4032 = vpop.f32.mrf.mxu0
    %v4033 = vadd.f32 0.0, %v4032
    %4034 = vdwg.mxu0
    %4035 = vmatprep.subr.mxu0 0.0
    %4036 = vmatpush1.msra.mxu0 0.0
    %4037 = vmatprep.subr.mxu0 0.0
    %4038 = vmatpush1.msra.mxu0 0.0
    %4039 = vmatprep.subr.mxu0 0.0
    %4040 = vmatpush1.msra.mxu0 0.0
    %4041 = vmatprep.subr.mxu0 0.0
    %4042 = vmatpush1.msra.mxu0 0.0
    %4043 = vmatprep.subr.mxu0 0.0
    %4044 = vmatpush1.msra.mxu0 0.0
    %4045 = vmatprep.subr.mxu0 0.0
    %4046 = vmatpush1.msra.mxu0 0.0
    %4047 = vmatprep.subr.mxu0 0.0
    %4048 = vmatpush1.msra.mxu0 0.0
    %4049 = vmatprep.subr.mxu0 0.0
    %4050 = vmatpush1.msra.mxu0 0.0
    %4051 = vmatprep.subr.mxu0 0.0
    %4052 = vmatpush1.msra.mxu0 0.0
    %4053 = vmatprep.subr.mxu0 0.0
    %4054 = vmatpush1.msra.mxu0 0.0
    %4055 = vmatprep.subr.mxu0 0.0
    %4056 = vmatpush1.msra.mxu0 0.0
    %4057 = vmatprep.subr.mxu0 0.0
    %4058 = vmatpush1.msra.mxu0 0.0
    %4059 = vmatprep.subr.mxu0 0.0
    %4060 = vmatpush1.msra.mxu0 0.0
    %4061 = vmatprep.subr.mxu0 0.0
    %4062 = vmatpush1.msra.mxu0 0.0
    %4063 = vmatprep.subr.mxu0 %v3481
    %4064 = vmatpush1.msra.mxu0 %v3480
    %4065 = vmatprep.subr.mxu0 %v3465
    %4066 = vmatpush1.msra.mxu0 %v3464
    %4067 = vmatprep.subr.mxu0 0.0
    %4068 = vmatpush2.msra.mxu0 0.0
    %4069 = vmatprep.subr.mxu0 0.0
    %4070 = vmatpush2.msra.mxu0 0.0
    %4071 = vmatprep.subr.mxu0 0.0
    %4072 = vmatpush2.msra.mxu0 0.0
    %4073 = vmatprep.subr.mxu0 0.0
    %4074 = vmatpush2.msra.mxu0 0.0
    %4075 = vmatprep.subr.mxu0 0.0
    %4076 = vmatpush2.msra.mxu0 0.0
    %4077 = vmatprep.subr.mxu0 0.0
    %4078 = vmatpush2.msra.mxu0 0.0
    %4079 = vmatprep.subr.mxu0 0.0
    %4080 = vmatpush2.msra.mxu0 0.0
    %4081 = vmatprep.subr.mxu0 0.0
    %4082 = vmatpush2.msra.mxu0 0.0
    %4083 = vmatprep.subr.mxu0 0.0
    %4084 = vmatpush2.msra.mxu0 0.0
    %4085 = vmatprep.subr.mxu0 0.0
    %4086 = vmatpush2.msra.mxu0 0.0
    %4087 = vmatprep.subr.mxu0 0.0
    %4088 = vmatpush2.msra.mxu0 0.0
    %4089 = vmatprep.subr.mxu0 0.0
    %4090 = vmatpush2.msra.mxu0 0.0
    %4091 = vmatprep.subr.mxu0 0.0
    %4092 = vmatpush2.msra.mxu0 0.0
    %4093 = vmatprep.subr.mxu0 0.0
    %4094 = vmatpush2.msra.mxu0 0.0
    %4095 = vmatprep.subr.mxu0 0.0
    %4096 = vmatpush2.msra.mxu0 0.0
    %4097 = vmatprep.subr.mxu0 0.0
    %4098 = vmatpush2.msra.mxu0 0.0
    %4099 = vmatprep.mubr.f32.mxu0 0.0
    %4100 = vmatmul.mubr.f32.gmra.mxu0 %v3490
    %v4101 = vpop.f32.mrf.mxu0
    %v4102 = vadd.f32 0.0, %v4101
    %v4103 = vpop.f32.mrf.mxu0
    %v4104 = vadd.f32 0.0, %v4103
    %4105 = vmatprep.mubr.f32.mxu0 0.0
    %4106 = vmatmul.mubr.f32.gmra.mxu0 %v3493
    %v4107 = vpop.f32.mrf.mxu0
    %v4108 = vadd.f32 0.0, %v4107
    %v4109 = vpop.f32.mrf.mxu0
    %v4110 = vadd.f32 0.0, %v4109
    %4111 = vmatprep.mubr.f32.mxu0 0.0
    %4112 = vmatmul.mubr.f32.gmra.mxu0 %v3496
    %v4113 = vpop.f32.mrf.mxu0
    %v4114 = vadd.f32 0.0, %v4113
    %v4115 = vpop.f32.mrf.mxu0
    %v4116 = vadd.f32 0.0, %v4115
    %4117 = vmatprep.mubr.f32.mxu0 0.0
    %4118 = vmatmul.mubr.f32.gmra.mxu0 %v3499
    %v4119 = vpop.f32.mrf.mxu0
    %v4120 = vadd.f32 0.0, %v4119
    %v4121 = vpop.f32.mrf.mxu0
    %v4122 = vadd.f32 0.0, %v4121
    %4123 = vdwg.mxu0
    %4124 = vmatprep.subr.mxu0 0.0
    %4125 = vmatpush1.msra.mxu0 0.0
    %4126 = vmatprep.subr.mxu0 0.0
    %4127 = vmatpush1.msra.mxu0 0.0
    %4128 = vmatprep.subr.mxu0 0.0
    %4129 = vmatpush1.msra.mxu0 0.0
    %4130 = vmatprep.subr.mxu0 0.0
    %4131 = vmatpush1.msra.mxu0 0.0
    %4132 = vmatprep.subr.mxu0 0.0
    %4133 = vmatpush1.msra.mxu0 0.0
    %4134 = vmatprep.subr.mxu0 0.0
    %4135 = vmatpush1.msra.mxu0 0.0
    %4136 = vmatprep.subr.mxu0 0.0
    %4137 = vmatpush1.msra.mxu0 0.0
    %4138 = vmatprep.subr.mxu0 0.0
    %4139 = vmatpush1.msra.mxu0 0.0
    %4140 = vmatprep.subr.mxu0 0.0
    %4141 = vmatpush1.msra.mxu0 0.0
    %4142 = vmatprep.subr.mxu0 0.0
    %4143 = vmatpush1.msra.mxu0 0.0
    %4144 = vmatprep.subr.mxu0 0.0
    %4145 = vmatpush1.msra.mxu0 0.0
    %4146 = vmatprep.subr.mxu0 0.0
    %4147 = vmatpush1.msra.mxu0 0.0
    %4148 = vmatprep.subr.mxu0 0.0
    %4149 = vmatpush1.msra.mxu0 0.0
    %4150 = vmatprep.subr.mxu0 0.0
    %4151 = vmatpush1.msra.mxu0 0.0
    %4152 = vmatprep.subr.mxu0 %v3483
    %4153 = vmatpush1.msra.mxu0 %v3482
    %4154 = vmatprep.subr.mxu0 %v3467
    %4155 = vmatpush1.msra.mxu0 %v3466
    %4156 = vmatprep.subr.mxu0 0.0
    %4157 = vmatpush2.msra.mxu0 0.0
    %4158 = vmatprep.subr.mxu0 0.0
    %4159 = vmatpush2.msra.mxu0 0.0
    %4160 = vmatprep.subr.mxu0 0.0
    %4161 = vmatpush2.msra.mxu0 0.0
    %4162 = vmatprep.subr.mxu0 0.0
    %4163 = vmatpush2.msra.mxu0 0.0
    %4164 = vmatprep.subr.mxu0 0.0
    %4165 = vmatpush2.msra.mxu0 0.0
    %4166 = vmatprep.subr.mxu0 0.0
    %4167 = vmatpush2.msra.mxu0 0.0
    %4168 = vmatprep.subr.mxu0 0.0
    %4169 = vmatpush2.msra.mxu0 0.0
    %4170 = vmatprep.subr.mxu0 0.0
    %4171 = vmatpush2.msra.mxu0 0.0
    %4172 = vmatprep.subr.mxu0 0.0
    %4173 = vmatpush2.msra.mxu0 0.0
    %4174 = vmatprep.subr.mxu0 0.0
    %4175 = vmatpush2.msra.mxu0 0.0
    %4176 = vmatprep.subr.mxu0 0.0
    %4177 = vmatpush2.msra.mxu0 0.0
    %4178 = vmatprep.subr.mxu0 0.0
    %4179 = vmatpush2.msra.mxu0 0.0
    %4180 = vmatprep.subr.mxu0 0.0
    %4181 = vmatpush2.msra.mxu0 0.0
    %4182 = vmatprep.subr.mxu0 0.0
    %4183 = vmatpush2.msra.mxu0 0.0
    %4184 = vmatprep.subr.mxu0 0.0
    %4185 = vmatpush2.msra.mxu0 0.0
    %4186 = vmatprep.subr.mxu0 0.0
    %4187 = vmatpush2.msra.mxu0 0.0
    %4188 = vmatprep.mubr.f32.mxu0 0.0
    %4189 = vmatmul.mubr.f32.gmra.mxu0 %v3490
    %v4190 = vpop.f32.mrf.mxu0
    %v4191 = vadd.f32 0.0, %v4190
    %v4192 = vpop.f32.mrf.mxu0
    %v4193 = vadd.f32 0.0, %v4192
    %4194 = vmatprep.mubr.f32.mxu0 0.0
    %4195 = vmatmul.mubr.f32.gmra.mxu0 %v3493
    %v4196 = vpop.f32.mrf.mxu0
    %v4197 = vadd.f32 0.0, %v4196
    %v4198 = vpop.f32.mrf.mxu0
    %v4199 = vadd.f32 0.0, %v4198
    %4200 = vmatprep.mubr.f32.mxu0 0.0
    %4201 = vmatmul.mubr.f32.gmra.mxu0 %v3496
    %v4202 = vpop.f32.mrf.mxu0
    %v4203 = vadd.f32 0.0, %v4202
    %v4204 = vpop.f32.mrf.mxu0
    %v4205 = vadd.f32 0.0, %v4204
    %4206 = vmatprep.mubr.f32.mxu0 0.0
    %4207 = vmatmul.mubr.f32.gmra.mxu0 %v3499
    %v4208 = vpop.f32.mrf.mxu0
    %v4209 = vadd.f32 0.0, %v4208
    %v4210 = vpop.f32.mrf.mxu0
    %v4211 = vadd.f32 0.0, %v4210
    %4212 = vdwg.mxu0
    %v4221 = vlaneseq
    %v4222 = vshrl.u32 %v4221, 7
    %v4223 = vsub.s32 0, %v4222
    %v4224 = vrot.slane %v165, %v4223
    %v4225 = vlaneseq
    %v4226 = vshrl.u32 %v4225, 7
    %v4227 = vsub.s32 4, %v4226
    %v4228 = vrot.slane %v165, %v4227
    %v4229 = vlaneseq
    %v4230 = vshrl.u32 %v4229, 7
    %v4231 = vsub.s32 0, %v4230
    %v4232 = vrot.slane %v166, %v4231
    %v4233 = vlaneseq
    %v4234 = vshrl.u32 %v4233, 7
    %v4235 = vsub.s32 4, %v4234
    %v4236 = vrot.slane %v166, %v4235
    %v4237 = vlaneseq
    %v4238 = vshrl.u32 %v4237, 7
    %v4239 = vsub.s32 0, %v4238
    %v4240 = vrot.slane %v167, %v4239
    %v4241 = vlaneseq
    %v4242 = vshrl.u32 %v4241, 7
    %v4243 = vsub.s32 4, %v4242
    %v4244 = vrot.slane %v167, %v4243
    %v4245 = vlaneseq
    %v4246 = vshrl.u32 %v4245, 7
    %v4247 = vsub.s32 0, %v4246
    %v4248 = vrot.slane %v168, %v4247
    %v4249 = vlaneseq
    %v4250 = vshrl.u32 %v4249, 7
    %v4251 = vsub.s32 4, %v4250
    %v4252 = vrot.slane %v168, %v4251
    %v4253 = vlaneseq
    %v4254 = vshrl.u32 %v4253, 7
    %v4255 = vsub.s32 0, %v4254
    %v4256 = vrot.slane %v169, %v4255
    %v4257 = vlaneseq
    %v4258 = vshrl.u32 %v4257, 7
    %v4259 = vsub.s32 4, %v4258
    %v4260 = vrot.slane %v169, %v4259
    %v4261 = vlaneseq
    %v4262 = vshrl.u32 %v4261, 7
    %v4263 = vsub.s32 0, %v4262
    %v4264 = vrot.slane %v170, %v4263
    %v4265 = vlaneseq
    %v4266 = vshrl.u32 %v4265, 7
    %v4267 = vsub.s32 4, %v4266
    %v4268 = vrot.slane %v170, %v4267
    %v4269 = vlaneseq
    %v4270 = vshrl.u32 %v4269, 7
    %v4271 = vsub.s32 0, %v4270
    %v4272 = vrot.slane %v171, %v4271
    %v4273 = vlaneseq
    %v4274 = vshrl.u32 %v4273, 7
    %v4275 = vsub.s32 4, %v4274
    %v4276 = vrot.slane %v171, %v4275
    %v4277 = vlaneseq
    %v4278 = vshrl.u32 %v4277, 7
    %v4279 = vsub.s32 0, %v4278
    %v4280 = vrot.slane %v172, %v4279
    %v4281 = vlaneseq
    %v4282 = vshrl.u32 %v4281, 7
    %v4283 = vsub.s32 4, %v4282
    %v4284 = vrot.slane %v172, %v4283
    %v4301 = vlaneseq
    %v4302 = vshrl.u32 %v4301, 7
    %v4303 = vsub.s32 0, %v4302
    %v4304 = vrot.slane %v4224, %v4303
    %v4305 = vlaneseq
    %v4306 = vshrl.u32 %v4305, 7
    %v4307 = vsub.s32 0, %v4306
    %v4308 = vrot.slane %v4228, %v4307
    %v4309 = vlaneseq
    %v4310 = vshrl.u32 %v4309, 7
    %v4311 = vsub.s32 0, %v4310
    %v4312 = vrot.slane %v4232, %v4311
    %v4313 = vlaneseq
    %v4314 = vshrl.u32 %v4313, 7
    %v4315 = vsub.s32 0, %v4314
    %v4316 = vrot.slane %v4236, %v4315
    %v4317 = vlaneseq
    %v4318 = vshrl.u32 %v4317, 7
    %v4319 = vsub.s32 0, %v4318
    %v4320 = vrot.slane %v4240, %v4319
    %v4321 = vlaneseq
    %v4322 = vshrl.u32 %v4321, 7
    %v4323 = vsub.s32 0, %v4322
    %v4324 = vrot.slane %v4244, %v4323
    %v4325 = vlaneseq
    %v4326 = vshrl.u32 %v4325, 7
    %v4327 = vsub.s32 0, %v4326
    %v4328 = vrot.slane %v4248, %v4327
    %v4329 = vlaneseq
    %v4330 = vshrl.u32 %v4329, 7
    %v4331 = vsub.s32 0, %v4330
    %v4332 = vrot.slane %v4252, %v4331
    %v4333 = vlaneseq
    %v4334 = vshrl.u32 %v4333, 7
    %v4335 = vsub.s32 0, %v4334
    %v4336 = vrot.slane %v4256, %v4335
    %v4337 = vlaneseq
    %v4338 = vshrl.u32 %v4337, 7
    %v4339 = vsub.s32 0, %v4338
    %v4340 = vrot.slane %v4260, %v4339
    %v4341 = vlaneseq
    %v4342 = vshrl.u32 %v4341, 7
    %v4343 = vsub.s32 0, %v4342
    %v4344 = vrot.slane %v4264, %v4343
    %v4345 = vlaneseq
    %v4346 = vshrl.u32 %v4345, 7
    %v4347 = vsub.s32 0, %v4346
    %v4348 = vrot.slane %v4268, %v4347
    %v4349 = vlaneseq
    %v4350 = vshrl.u32 %v4349, 7
    %v4351 = vsub.s32 0, %v4350
    %v4352 = vrot.slane %v4272, %v4351
    %v4353 = vlaneseq
    %v4354 = vshrl.u32 %v4353, 7
    %v4355 = vsub.s32 0, %v4354
    %v4356 = vrot.slane %v4276, %v4355
    %v4357 = vlaneseq
    %v4358 = vshrl.u32 %v4357, 7
    %v4359 = vsub.s32 0, %v4358
    %v4360 = vrot.slane %v4280, %v4359
    %v4361 = vlaneseq
    %v4362 = vshrl.u32 %v4361, 7
    %v4363 = vsub.s32 0, %v4362
    %v4364 = vrot.slane %v4284, %v4363
    %v4365 = vmul.f32 %v4304, %v3568
    %v4366 = vmul.f32 %v4308, %v3570
    %v4367 = vmul.f32 %v4312, %v3657
    %v4368 = vmul.f32 %v4316, %v3659
    %v4369 = vmul.f32 %v4320, %v3746
    %v4370 = vmul.f32 %v4324, %v3748
    %v4371 = vmul.f32 %v4328, %v3835
    %v4372 = vmul.f32 %v4332, %v3837
    %v4373 = vmul.f32 %v4336, %v3924
    %v4374 = vmul.f32 %v4340, %v3926
    %v4375 = vmul.f32 %v4344, %v4013
    %v4376 = vmul.f32 %v4348, %v4015
    %v4377 = vmul.f32 %v4352, %v4102
    %v4378 = vmul.f32 %v4356, %v4104
    %v4379 = vmul.f32 %v4360, %v4191
    %v4380 = vmul.f32 %v4364, %v4193
    %v4381 = vlaneseq
    %v4382 = vshrl.u32 %v4381, 7
    %v4383 = vsub.s32 1, %v4382
    %v4384 = vrot.slane %v165, %v4383
    %v4385 = vlaneseq
    %v4386 = vshrl.u32 %v4385, 7
    %v4387 = vsub.s32 5, %v4386
    %v4388 = vrot.slane %v165, %v4387
    %v4389 = vlaneseq
    %v4390 = vshrl.u32 %v4389, 7
    %v4391 = vsub.s32 1, %v4390
    %v4392 = vrot.slane %v166, %v4391
    %v4393 = vlaneseq
    %v4394 = vshrl.u32 %v4393, 7
    %v4395 = vsub.s32 5, %v4394
    %v4396 = vrot.slane %v166, %v4395
    %v4397 = vlaneseq
    %v4398 = vshrl.u32 %v4397, 7
    %v4399 = vsub.s32 1, %v4398
    %v4400 = vrot.slane %v167, %v4399
    %v4401 = vlaneseq
    %v4402 = vshrl.u32 %v4401, 7
    %v4403 = vsub.s32 5, %v4402
    %v4404 = vrot.slane %v167, %v4403
    %v4405 = vlaneseq
    %v4406 = vshrl.u32 %v4405, 7
    %v4407 = vsub.s32 1, %v4406
    %v4408 = vrot.slane %v168, %v4407
    %v4409 = vlaneseq
    %v4410 = vshrl.u32 %v4409, 7
    %v4411 = vsub.s32 5, %v4410
    %v4412 = vrot.slane %v168, %v4411
    %v4413 = vlaneseq
    %v4414 = vshrl.u32 %v4413, 7
    %v4415 = vsub.s32 1, %v4414
    %v4416 = vrot.slane %v169, %v4415
    %v4417 = vlaneseq
    %v4418 = vshrl.u32 %v4417, 7
    %v4419 = vsub.s32 5, %v4418
    %v4420 = vrot.slane %v169, %v4419
    %v4421 = vlaneseq
    %v4422 = vshrl.u32 %v4421, 7
    %v4423 = vsub.s32 1, %v4422
    %v4424 = vrot.slane %v170, %v4423
    %v4425 = vlaneseq
    %v4426 = vshrl.u32 %v4425, 7
    %v4427 = vsub.s32 5, %v4426
    %v4428 = vrot.slane %v170, %v4427
    %v4429 = vlaneseq
    %v4430 = vshrl.u32 %v4429, 7
    %v4431 = vsub.s32 1, %v4430
    %v4432 = vrot.slane %v171, %v4431
    %v4433 = vlaneseq
    %v4434 = vshrl.u32 %v4433, 7
    %v4435 = vsub.s32 5, %v4434
    %v4436 = vrot.slane %v171, %v4435
    %v4437 = vlaneseq
    %v4438 = vshrl.u32 %v4437, 7
    %v4439 = vsub.s32 1, %v4438
    %v4440 = vrot.slane %v172, %v4439
    %v4441 = vlaneseq
    %v4442 = vshrl.u32 %v4441, 7
    %v4443 = vsub.s32 5, %v4442
    %v4444 = vrot.slane %v172, %v4443
    %v4461 = vlaneseq
    %v4462 = vshrl.u32 %v4461, 7
    %v4463 = vsub.s32 1, %v4462
    %v4464 = vrot.slane %v4384, %v4463
    %v4465 = vlaneseq
    %v4466 = vshrl.u32 %v4465, 7
    %v4467 = vsub.s32 1, %v4466
    %v4468 = vrot.slane %v4388, %v4467
    %v4469 = vlaneseq
    %v4470 = vshrl.u32 %v4469, 7
    %v4471 = vsub.s32 1, %v4470
    %v4472 = vrot.slane %v4392, %v4471
    %v4473 = vlaneseq
    %v4474 = vshrl.u32 %v4473, 7
    %v4475 = vsub.s32 1, %v4474
    %v4476 = vrot.slane %v4396, %v4475
    %v4477 = vlaneseq
    %v4478 = vshrl.u32 %v4477, 7
    %v4479 = vsub.s32 1, %v4478
    %v4480 = vrot.slane %v4400, %v4479
    %v4481 = vlaneseq
    %v4482 = vshrl.u32 %v4481, 7
    %v4483 = vsub.s32 1, %v4482
    %v4484 = vrot.slane %v4404, %v4483
    %v4485 = vlaneseq
    %v4486 = vshrl.u32 %v4485, 7
    %v4487 = vsub.s32 1, %v4486
    %v4488 = vrot.slane %v4408, %v4487
    %v4489 = vlaneseq
    %v4490 = vshrl.u32 %v4489, 7
    %v4491 = vsub.s32 1, %v4490
    %v4492 = vrot.slane %v4412, %v4491
    %v4493 = vlaneseq
    %v4494 = vshrl.u32 %v4493, 7
    %v4495 = vsub.s32 1, %v4494
    %v4496 = vrot.slane %v4416, %v4495
    %v4497 = vlaneseq
    %v4498 = vshrl.u32 %v4497, 7
    %v4499 = vsub.s32 1, %v4498
    %v4500 = vrot.slane %v4420, %v4499
    %v4501 = vlaneseq
    %v4502 = vshrl.u32 %v4501, 7
    %v4503 = vsub.s32 1, %v4502
    %v4504 = vrot.slane %v4424, %v4503
    %v4505 = vlaneseq
    %v4506 = vshrl.u32 %v4505, 7
    %v4507 = vsub.s32 1, %v4506
    %v4508 = vrot.slane %v4428, %v4507
    %v4509 = vlaneseq
    %v4510 = vshrl.u32 %v4509, 7
    %v4511 = vsub.s32 1, %v4510
    %v4512 = vrot.slane %v4432, %v4511
    %v4513 = vlaneseq
    %v4514 = vshrl.u32 %v4513, 7
    %v4515 = vsub.s32 1, %v4514
    %v4516 = vrot.slane %v4436, %v4515
    %v4517 = vlaneseq
    %v4518 = vshrl.u32 %v4517, 7
    %v4519 = vsub.s32 1, %v4518
    %v4520 = vrot.slane %v4440, %v4519
    %v4521 = vlaneseq
    %v4522 = vshrl.u32 %v4521, 7
    %v4523 = vsub.s32 1, %v4522
    %v4524 = vrot.slane %v4444, %v4523
    %v4525 = vmul.f32 %v4464, %v3574
    %v4526 = vmul.f32 %v4468, %v3576
    %v4527 = vmul.f32 %v4472, %v3663
    %v4528 = vmul.f32 %v4476, %v3665
    %v4529 = vmul.f32 %v4480, %v3752
    %v4530 = vmul.f32 %v4484, %v3754
    %v4531 = vmul.f32 %v4488, %v3841
    %v4532 = vmul.f32 %v4492, %v3843
    %v4533 = vmul.f32 %v4496, %v3930
    %v4534 = vmul.f32 %v4500, %v3932
    %v4535 = vmul.f32 %v4504, %v4019
    %v4536 = vmul.f32 %v4508, %v4021
    %v4537 = vmul.f32 %v4512, %v4108
    %v4538 = vmul.f32 %v4516, %v4110
    %v4539 = vmul.f32 %v4520, %v4197
    %v4540 = vmul.f32 %v4524, %v4199
    %v4541 = vadd.f32 %v4365, %v4525
    %v4542 = vadd.f32 %v4366, %v4526
    %v4543 = vadd.f32 %v4367, %v4527
    %v4544 = vadd.f32 %v4368, %v4528
    %v4545 = vadd.f32 %v4369, %v4529
    %v4546 = vadd.f32 %v4370, %v4530
    %v4547 = vadd.f32 %v4371, %v4531
    %v4548 = vadd.f32 %v4372, %v4532
    %v4549 = vadd.f32 %v4373, %v4533
    %v4550 = vadd.f32 %v4374, %v4534
    %v4551 = vadd.f32 %v4375, %v4535
    %v4552 = vadd.f32 %v4376, %v4536
    %v4553 = vadd.f32 %v4377, %v4537
    %v4554 = vadd.f32 %v4378, %v4538
    %v4555 = vadd.f32 %v4379, %v4539
    %v4556 = vadd.f32 %v4380, %v4540
    %v4557 = vlaneseq
    %v4558 = vshrl.u32 %v4557, 7
    %v4559 = vsub.s32 2, %v4558
    %v4560 = vrot.slane %v165, %v4559
    %v4561 = vlaneseq
    %v4562 = vshrl.u32 %v4561, 7
    %v4563 = vsub.s32 6, %v4562
    %v4564 = vrot.slane %v165, %v4563
    %v4565 = vlaneseq
    %v4566 = vshrl.u32 %v4565, 7
    %v4567 = vsub.s32 2, %v4566
    %v4568 = vrot.slane %v166, %v4567
    %v4569 = vlaneseq
    %v4570 = vshrl.u32 %v4569, 7
    %v4571 = vsub.s32 6, %v4570
    %v4572 = vrot.slane %v166, %v4571
    %v4573 = vlaneseq
    %v4574 = vshrl.u32 %v4573, 7
    %v4575 = vsub.s32 2, %v4574
    %v4576 = vrot.slane %v167, %v4575
    %v4577 = vlaneseq
    %v4578 = vshrl.u32 %v4577, 7
    %v4579 = vsub.s32 6, %v4578
    %v4580 = vrot.slane %v167, %v4579
    %v4581 = vlaneseq
    %v4582 = vshrl.u32 %v4581, 7
    %v4583 = vsub.s32 2, %v4582
    %v4584 = vrot.slane %v168, %v4583
    %v4585 = vlaneseq
    %v4586 = vshrl.u32 %v4585, 7
    %v4587 = vsub.s32 6, %v4586
    %v4588 = vrot.slane %v168, %v4587
    %v4589 = vlaneseq
    %v4590 = vshrl.u32 %v4589, 7
    %v4591 = vsub.s32 2, %v4590
    %v4592 = vrot.slane %v169, %v4591
    %v4593 = vlaneseq
    %v4594 = vshrl.u32 %v4593, 7
    %v4595 = vsub.s32 6, %v4594
    %v4596 = vrot.slane %v169, %v4595
    %v4597 = vlaneseq
    %v4598 = vshrl.u32 %v4597, 7
    %v4599 = vsub.s32 2, %v4598
    %v4600 = vrot.slane %v170, %v4599
    %v4601 = vlaneseq
    %v4602 = vshrl.u32 %v4601, 7
    %v4603 = vsub.s32 6, %v4602
    %v4604 = vrot.slane %v170, %v4603
    %v4605 = vlaneseq
    %v4606 = vshrl.u32 %v4605, 7
    %v4607 = vsub.s32 2, %v4606
    %v4608 = vrot.slane %v171, %v4607
    %v4609 = vlaneseq
    %v4610 = vshrl.u32 %v4609, 7
    %v4611 = vsub.s32 6, %v4610
    %v4612 = vrot.slane %v171, %v4611
    %v4613 = vlaneseq
    %v4614 = vshrl.u32 %v4613, 7
    %v4615 = vsub.s32 2, %v4614
    %v4616 = vrot.slane %v172, %v4615
    %v4617 = vlaneseq
    %v4618 = vshrl.u32 %v4617, 7
    %v4619 = vsub.s32 6, %v4618
    %v4620 = vrot.slane %v172, %v4619
    %v4637 = vlaneseq
    %v4638 = vshrl.u32 %v4637, 7
    %v4639 = vsub.s32 2, %v4638
    %v4640 = vrot.slane %v4560, %v4639
    %v4641 = vlaneseq
    %v4642 = vshrl.u32 %v4641, 7
    %v4643 = vsub.s32 2, %v4642
    %v4644 = vrot.slane %v4564, %v4643
    %v4645 = vlaneseq
    %v4646 = vshrl.u32 %v4645, 7
    %v4647 = vsub.s32 2, %v4646
    %v4648 = vrot.slane %v4568, %v4647
    %v4649 = vlaneseq
    %v4650 = vshrl.u32 %v4649, 7
    %v4651 = vsub.s32 2, %v4650
    %v4652 = vrot.slane %v4572, %v4651
    %v4653 = vlaneseq
    %v4654 = vshrl.u32 %v4653, 7
    %v4655 = vsub.s32 2, %v4654
    %v4656 = vrot.slane %v4576, %v4655
    %v4657 = vlaneseq
    %v4658 = vshrl.u32 %v4657, 7
    %v4659 = vsub.s32 2, %v4658
    %v4660 = vrot.slane %v4580, %v4659
    %v4661 = vlaneseq
    %v4662 = vshrl.u32 %v4661, 7
    %v4663 = vsub.s32 2, %v4662
    %v4664 = vrot.slane %v4584, %v4663
    %v4665 = vlaneseq
    %v4666 = vshrl.u32 %v4665, 7
    %v4667 = vsub.s32 2, %v4666
    %v4668 = vrot.slane %v4588, %v4667
    %v4669 = vlaneseq
    %v4670 = vshrl.u32 %v4669, 7
    %v4671 = vsub.s32 2, %v4670
    %v4672 = vrot.slane %v4592, %v4671
    %v4673 = vlaneseq
    %v4674 = vshrl.u32 %v4673, 7
    %v4675 = vsub.s32 2, %v4674
    %v4676 = vrot.slane %v4596, %v4675
    %v4677 = vlaneseq
    %v4678 = vshrl.u32 %v4677, 7
    %v4679 = vsub.s32 2, %v4678
    %v4680 = vrot.slane %v4600, %v4679
    %v4681 = vlaneseq
    %v4682 = vshrl.u32 %v4681, 7
    %v4683 = vsub.s32 2, %v4682
    %v4684 = vrot.slane %v4604, %v4683
    %v4685 = vlaneseq
    %v4686 = vshrl.u32 %v4685, 7
    %v4687 = vsub.s32 2, %v4686
    %v4688 = vrot.slane %v4608, %v4687
    %v4689 = vlaneseq
    %v4690 = vshrl.u32 %v4689, 7
    %v4691 = vsub.s32 2, %v4690
    %v4692 = vrot.slane %v4612, %v4691
    %v4693 = vlaneseq
    %v4694 = vshrl.u32 %v4693, 7
    %v4695 = vsub.s32 2, %v4694
    %v4696 = vrot.slane %v4616, %v4695
    %v4697 = vlaneseq
    %v4698 = vshrl.u32 %v4697, 7
    %v4699 = vsub.s32 2, %v4698
    %v4700 = vrot.slane %v4620, %v4699
    %v4701 = vmul.f32 %v4640, %v3580
    %v4702 = vmul.f32 %v4644, %v3582
    %v4703 = vmul.f32 %v4648, %v3669
    %v4704 = vmul.f32 %v4652, %v3671
    %v4705 = vmul.f32 %v4656, %v3758
    %v4706 = vmul.f32 %v4660, %v3760
    %v4707 = vmul.f32 %v4664, %v3847
    %v4708 = vmul.f32 %v4668, %v3849
    %v4709 = vmul.f32 %v4672, %v3936
    %v4710 = vmul.f32 %v4676, %v3938
    %v4711 = vmul.f32 %v4680, %v4025
    %v4712 = vmul.f32 %v4684, %v4027
    %v4713 = vmul.f32 %v4688, %v4114
    %v4714 = vmul.f32 %v4692, %v4116
    %v4715 = vmul.f32 %v4696, %v4203
    %v4716 = vmul.f32 %v4700, %v4205
    %v4717 = vadd.f32 %v4541, %v4701
    %v4718 = vadd.f32 %v4542, %v4702
    %v4719 = vadd.f32 %v4543, %v4703
    %v4720 = vadd.f32 %v4544, %v4704
    %v4721 = vadd.f32 %v4545, %v4705
    %v4722 = vadd.f32 %v4546, %v4706
    %v4723 = vadd.f32 %v4547, %v4707
    %v4724 = vadd.f32 %v4548, %v4708
    %v4725 = vadd.f32 %v4549, %v4709
    %v4726 = vadd.f32 %v4550, %v4710
    %v4727 = vadd.f32 %v4551, %v4711
    %v4728 = vadd.f32 %v4552, %v4712
    %v4729 = vadd.f32 %v4553, %v4713
    %v4730 = vadd.f32 %v4554, %v4714
    %v4731 = vadd.f32 %v4555, %v4715
    %v4732 = vadd.f32 %v4556, %v4716
    %v4733 = vlaneseq
    %v4734 = vshrl.u32 %v4733, 7
    %v4735 = vsub.s32 3, %v4734
    %v4736 = vrot.slane %v165, %v4735
    %v4737 = vlaneseq
    %v4738 = vshrl.u32 %v4737, 7
    %v4739 = vsub.s32 7, %v4738
    %v4740 = vrot.slane %v165, %v4739
    %v4741 = vlaneseq
    %v4742 = vshrl.u32 %v4741, 7
    %v4743 = vsub.s32 3, %v4742
    %v4744 = vrot.slane %v166, %v4743
    %v4745 = vlaneseq
    %v4746 = vshrl.u32 %v4745, 7
    %v4747 = vsub.s32 7, %v4746
    %v4748 = vrot.slane %v166, %v4747
    %v4749 = vlaneseq
    %v4750 = vshrl.u32 %v4749, 7
    %v4751 = vsub.s32 3, %v4750
    %v4752 = vrot.slane %v167, %v4751
    %v4753 = vlaneseq
    %v4754 = vshrl.u32 %v4753, 7
    %v4755 = vsub.s32 7, %v4754
    %v4756 = vrot.slane %v167, %v4755
    %v4757 = vlaneseq
    %v4758 = vshrl.u32 %v4757, 7
    %v4759 = vsub.s32 3, %v4758
    %v4760 = vrot.slane %v168, %v4759
    %v4761 = vlaneseq
    %v4762 = vshrl.u32 %v4761, 7
    %v4763 = vsub.s32 7, %v4762
    %v4764 = vrot.slane %v168, %v4763
    %v4765 = vlaneseq
    %v4766 = vshrl.u32 %v4765, 7
    %v4767 = vsub.s32 3, %v4766
    %v4768 = vrot.slane %v169, %v4767
    %v4769 = vlaneseq
    %v4770 = vshrl.u32 %v4769, 7
    %v4771 = vsub.s32 7, %v4770
    %v4772 = vrot.slane %v169, %v4771
    %v4773 = vlaneseq
    %v4774 = vshrl.u32 %v4773, 7
    %v4775 = vsub.s32 3, %v4774
    %v4776 = vrot.slane %v170, %v4775
    %v4777 = vlaneseq
    %v4778 = vshrl.u32 %v4777, 7
    %v4779 = vsub.s32 7, %v4778
    %v4780 = vrot.slane %v170, %v4779
    %v4781 = vlaneseq
    %v4782 = vshrl.u32 %v4781, 7
    %v4783 = vsub.s32 3, %v4782
    %v4784 = vrot.slane %v171, %v4783
    %v4785 = vlaneseq
    %v4786 = vshrl.u32 %v4785, 7
    %v4787 = vsub.s32 7, %v4786
    %v4788 = vrot.slane %v171, %v4787
    %v4789 = vlaneseq
    %v4790 = vshrl.u32 %v4789, 7
    %v4791 = vsub.s32 3, %v4790
    %v4792 = vrot.slane %v172, %v4791
    %v4793 = vlaneseq
    %v4794 = vshrl.u32 %v4793, 7
    %v4795 = vsub.s32 7, %v4794
    %v4796 = vrot.slane %v172, %v4795
    %v4813 = vlaneseq
    %v4814 = vshrl.u32 %v4813, 7
    %v4815 = vsub.s32 3, %v4814
    %v4816 = vrot.slane %v4736, %v4815
    %v4817 = vlaneseq
    %v4818 = vshrl.u32 %v4817, 7
    %v4819 = vsub.s32 3, %v4818
    %v4820 = vrot.slane %v4740, %v4819
    %v4821 = vlaneseq
    %v4822 = vshrl.u32 %v4821, 7
    %v4823 = vsub.s32 3, %v4822
    %v4824 = vrot.slane %v4744, %v4823
    %v4825 = vlaneseq
    %v4826 = vshrl.u32 %v4825, 7
    %v4827 = vsub.s32 3, %v4826
    %v4828 = vrot.slane %v4748, %v4827
    %v4829 = vlaneseq
    %v4830 = vshrl.u32 %v4829, 7
    %v4831 = vsub.s32 3, %v4830
    %v4832 = vrot.slane %v4752, %v4831
    %v4833 = vlaneseq
    %v4834 = vshrl.u32 %v4833, 7
    %v4835 = vsub.s32 3, %v4834
    %v4836 = vrot.slane %v4756, %v4835
    %v4837 = vlaneseq
    %v4838 = vshrl.u32 %v4837, 7
    %v4839 = vsub.s32 3, %v4838
    %v4840 = vrot.slane %v4760, %v4839
    %v4841 = vlaneseq
    %v4842 = vshrl.u32 %v4841, 7
    %v4843 = vsub.s32 3, %v4842
    %v4844 = vrot.slane %v4764, %v4843
    %v4845 = vlaneseq
    %v4846 = vshrl.u32 %v4845, 7
    %v4847 = vsub.s32 3, %v4846
    %v4848 = vrot.slane %v4768, %v4847
    %v4849 = vlaneseq
    %v4850 = vshrl.u32 %v4849, 7
    %v4851 = vsub.s32 3, %v4850
    %v4852 = vrot.slane %v4772, %v4851
    %v4853 = vlaneseq
    %v4854 = vshrl.u32 %v4853, 7
    %v4855 = vsub.s32 3, %v4854
    %v4856 = vrot.slane %v4776, %v4855
    %v4857 = vlaneseq
    %v4858 = vshrl.u32 %v4857, 7
    %v4859 = vsub.s32 3, %v4858
    %v4860 = vrot.slane %v4780, %v4859
    %v4861 = vlaneseq
    %v4862 = vshrl.u32 %v4861, 7
    %v4863 = vsub.s32 3, %v4862
    %v4864 = vrot.slane %v4784, %v4863
    %v4865 = vlaneseq
    %v4866 = vshrl.u32 %v4865, 7
    %v4867 = vsub.s32 3, %v4866
    %v4868 = vrot.slane %v4788, %v4867
    %v4869 = vlaneseq
    %v4870 = vshrl.u32 %v4869, 7
    %v4871 = vsub.s32 3, %v4870
    %v4872 = vrot.slane %v4792, %v4871
    %v4873 = vlaneseq
    %v4874 = vshrl.u32 %v4873, 7
    %v4875 = vsub.s32 3, %v4874
    %v4876 = vrot.slane %v4796, %v4875
    %v4877 = vmul.f32 %v4816, %v3586
    %v4878 = vmul.f32 %v4820, %v3588
    %v4879 = vmul.f32 %v4824, %v3675
    %v4880 = vmul.f32 %v4828, %v3677
    %v4881 = vmul.f32 %v4832, %v3764
    %v4882 = vmul.f32 %v4836, %v3766
    %v4883 = vmul.f32 %v4840, %v3853
    %v4884 = vmul.f32 %v4844, %v3855
    %v4885 = vmul.f32 %v4848, %v3942
    %v4886 = vmul.f32 %v4852, %v3944
    %v4887 = vmul.f32 %v4856, %v4031
    %v4888 = vmul.f32 %v4860, %v4033
    %v4889 = vmul.f32 %v4864, %v4120
    %v4890 = vmul.f32 %v4868, %v4122
    %v4891 = vmul.f32 %v4872, %v4209
    %v4892 = vmul.f32 %v4876, %v4211
    %v4893 = vadd.f32 %v4717, %v4877
    %v4894 = vadd.f32 %v4718, %v4878
    %v4895 = vadd.f32 %v4719, %v4879
    %v4896 = vadd.f32 %v4720, %v4880
    %v4897 = vadd.f32 %v4721, %v4881
    %v4898 = vadd.f32 %v4722, %v4882
    %v4899 = vadd.f32 %v4723, %v4883
    %v4900 = vadd.f32 %v4724, %v4884
    %v4901 = vadd.f32 %v4725, %v4885
    %v4902 = vadd.f32 %v4726, %v4886
    %v4903 = vadd.f32 %v4727, %v4887
    %v4904 = vadd.f32 %v4728, %v4888
    %v4905 = vadd.f32 %v4729, %v4889
    %v4906 = vadd.f32 %v4730, %v4890
    %v4907 = vadd.f32 %v4731, %v4891
    %v4908 = vadd.f32 %v4732, %v4892
    %v4909 = vadd.f32 %v4893, %v4894
    %v4910 = vadd.f32 %v4909, %v4895
    %v4911 = vadd.f32 %v4910, %v4896
    %v4912 = vadd.f32 %v4911, %v4897
    %v4913 = vadd.f32 %v4912, %v4898
    %v4914 = vadd.f32 %v4913, %v4899
    %v4915 = vadd.f32 %v4914, %v4900
    %v4916 = vadd.f32 %v4915, %v4901
    %v4917 = vadd.f32 %v4916, %v4902
    %v4918 = vadd.f32 %v4917, %v4903
    %v4919 = vadd.f32 %v4918, %v4904
    %v4920 = vadd.f32 %v4919, %v4905
    %v4921 = vadd.f32 %v4920, %v4906
    %v4922 = vadd.f32 %v4921, %v4907
    %v4923 = vadd.f32 %v4922, %v4908
    %v4924 = vld [vmem:[%s10] sm:$0xff]
    %4926 = vset.pattern.permute.xlu0 0
    %4927 = vperm.xlu0 %4926, %v4924
    %v4928 = vpop.permute.xlu0 %4927
    %v4930 = vadd.f32 %v4923, %v4928
    %4931 = vst [vmem:[#allocation7] sm:$0xff] %v4930
    // Predicated region
    $region54: #{tpu_custom_call.1} parent=1 // pred_check
      _
    $region55: #{tpu_custom_call.1} parent=1 // pred_check_branch
      %4933 = sbr.rel (0) target = $region57
    $region56: #{tpu_custom_call.1} parent=1 // pred_region
      %s4935 = ssub.s32 128, 128
      %4936 = vsyncadd [#allocation4], %s4935
      %s4938 = sshll.u32 [#allocation7], 4
      %s4939 = int_to_ptr.vmem [resolvable:$true] %s4938
      %4941 = dma.vmem_to_hbm [thread:$0]  %s4939, 128, %s11, [#allocation4]
    $region57: #{tpu_custom_call.1} parent=1 // pred_fallthru
      _
    // Predicated region
    $region58: #{tpu_custom_call.1} parent=1 // pred_check
      _
    $region59: #{tpu_custom_call.1} parent=1 // pred_check_branch
      %4943 = sbr.rel (0) target = $region61
    $region60: #{tpu_custom_call.1} parent=1 // pred_region
      %4944 = dma.done [#allocation4], 128
    $region61: #{tpu_custom_call.1} parent=1 // pred_fallthru
      _
    %4945 = vsyncpa [#allocation3], 1
    %4946 = vsyncpa [#allocation6], 1
    %4947 = vsyncpa [#allocation4], 1

</llo_original>
